<compile_context>
chip_gen: v5e
topology: v5e:2x2
jax: 0.10.0
libtpu: 0.0.40
codegen_flags: <defaults>
</compile_context>

<pallas_src>
import functools
import math

import jax
import jax.numpy as jnp
import numpy as np
from jax.experimental import pallas as pl
from jax.experimental.pallas import tpu as pltpu  # noqa: F401  (TPU backend assumed)

DIM_MODEL = 32
NUM_HEADS = 4
DIM_K = DIM_MODEL // NUM_HEADS   # 8
DIM_V = DIM_K                    # 8
DIM_FF = 64
LN_EPS = 1e-5
SCALE = 1.0 / math.sqrt(DIM_K)   # matches  / Q.size(-1) ** 0.5
HDK = NUM_HEADS * DIM_K          # 32
HDV = NUM_HEADS * DIM_V          # 32


def _layernorm(x, gamma, beta):
    mean = jnp.mean(x, axis=-1, keepdims=True)
    var = jnp.mean((x - mean) ** 2, axis=-1, keepdims=True)
    return (x - mean) * jax.lax.rsqrt(var + LN_EPS) * gamma + beta


def _softmax_kernelside(x):
    # EUP exp + EUP approximate reciprocal (frees VPU slots; kernel-only).
    m = jnp.max(x, axis=-1, keepdims=True)
    e = jnp.exp(x - m)
    return e * pl.reciprocal(jnp.sum(e, axis=-1, keepdims=True), approx=True)


def _mha_residual_ln_body(x_flat, kv_flat, B, S, Skv,
                          wq, bq, wkv, bkv, wo, bo, gamma, beta):
    """Residual(MultiHeadAttention) + LayerNorm on flattened (B*rows, D) data."""
    # Fused projections: one wide matmul for Q and one for [K | V].
    q_all = jnp.dot(x_flat, wq, preferred_element_type=jnp.float32) + bq      # (B*S, H*dk)
    kv_all = jnp.dot(kv_flat, wkv, preferred_element_type=jnp.float32) + bkv  # (B*Skv, 2*H*dk)

    rows = []
    for b in range(B):                       # static unroll, B is tiny
        qb = q_all[b * S:(b + 1) * S, :]
        kb = kv_all[b * Skv:(b + 1) * Skv, :HDK]
        vb = kv_all[b * Skv:(b + 1) * Skv, HDK:]
        acc = jnp.zeros((S, DIM_MODEL), jnp.float32)
        for h in range(NUM_HEADS):           # static unroll over heads
            qh = qb[:, h * DIM_K:(h + 1) * DIM_K]
            kh = kb[:, h * DIM_K:(h + 1) * DIM_K]
            vh = vb[:, h * DIM_V:(h + 1) * DIM_V]
            p = _softmax_kernelside(
                jnp.dot(qh, kh.T, preferred_element_type=jnp.float32) * SCALE)
            head = jnp.dot(p, vh, preferred_element_type=jnp.float32)         # (S, dv)
            # concat(head_0..head_H) @ Wo  ==  sum_h head_h @ Wo[h*dv:(h+1)*dv]
            # -> no lane-axis concatenate, outputs are 32 lanes wide.
            acc = acc + jnp.dot(head, wo[h * DIM_V:(h + 1) * DIM_V, :],
                                preferred_element_type=jnp.float32)
        rows.append(acc)
    attn = jnp.concatenate(rows, axis=0) + bo          # sublane concat, cheap
    # TODO(synk): nn.Dropout is treated as identity (eval-mode semantics).
    return _layernorm(x_flat + attn, gamma, beta)


def _ffn_residual_ln_body(x_flat, w1, c1, w2, c2, gamma, beta):
    h = jnp.maximum(
        jnp.dot(x_flat, w1, preferred_element_type=jnp.float32) + c1, 0.0)
    y = jnp.dot(h, w2, preferred_element_type=jnp.float32) + c2
    # TODO(synk): nn.Dropout is treated as identity (eval-mode semantics).
    return _layernorm(x_flat + y, gamma, beta)


# ---------------------------------------------------------------------------
# Single fused kernel: self-attn + cross-attn + FFN, each as Residual(...)+LN.
# No grid: the whole working set (a few KB of activations + <40 KB of weights)
# sits in VMEM, so there is exactly one launch and one HBM round-trip for the
# activations instead of three launches with a sequential B-sized grid each.
# ---------------------------------------------------------------------------
def _decoder_block_kernel(B, S, SM,
                          x_ref, mem_ref,
                          wq1, bq1, wkv1, bkv1, wo1, bo1, g1, be1,
                          wq2, bq2, wkv2, bkv2, wo2, bo2, g2, be2,
                          w1, c1, w2, c2, g3, be3,
                          o_ref):
    x = x_ref[...]          # (B*S, D)
    mem = mem_ref[...]      # (B*SM, D)

    # Residual(self-attention) + LayerNorm
    x = _mha_residual_ln_body(x, x, B, S, S,
                              wq1[...], bq1[...], wkv1[...], bkv1[...],
                              wo1[...], bo1[...], g1[...], be1[...])
    # Residual(cross-attention) + LayerNorm
    x = _mha_residual_ln_body(x, mem, B, S, SM,
                              wq2[...], bq2[...], wkv2[...], bkv2[...],
                              wo2[...], bo2[...], g2[...], be2[...])
    # Residual(feed-forward) + LayerNorm
    x = _ffn_residual_ln_body(x, w1[...], c1[...], w2[...], c2[...],
                              g3[...], be3[...])

    # TODO(synk): lane-dense (B, S*D) output layout skipped -- the in-kernel
    # (B*S, D) -> (B, S*D) relayout would cost about as much as the masked
    # 32-lane stores it would save at these tiny shapes.
    o_ref[...] = x


def _pack_mha_params(params):
    """Per-head (H, D, dk) params -> fused (D, H*dk) / (D, 2*H*dk) slabs."""
    wq, bq, wk, bk, wv, bv, wo, bo, g, b = params
    Wq = jnp.transpose(wq, (1, 0, 2)).reshape(DIM_MODEL, HDK)
    Bq = bq.reshape(1, HDK)
    Wk = jnp.transpose(wk, (1, 0, 2)).reshape(DIM_MODEL, HDK)
    Bk = bk.reshape(1, HDK)
    Wv = jnp.transpose(wv, (1, 0, 2)).reshape(DIM_MODEL, HDV)
    Bv = bv.reshape(1, HDV)
    Wkv = jnp.concatenate([Wk, Wv], axis=1)      # (D, 2*H*dk)
    Bkv = jnp.concatenate([Bk, Bv], axis=1)      # (1, 2*H*dk)
    return (Wq, Bq, Wkv, Bkv, wo, bo, g, b)


def decoder_block(x, memory, params):
    p_attn1, p_attn2, p_ff = params
    B, S, D = x.shape
    SM = memory.shape[1]
    x_flat = x.reshape(B * S, D)
    mem_flat = memory.reshape(B * SM, D)
    kernel = functools.partial(_decoder_block_kernel, B, S, SM)
    flat_params = (*_pack_mha_params(p_attn1), *_pack_mha_params(p_attn2), *p_ff)
    out_flat = pl.pallas_call(
        kernel,
        out_shape=jax.ShapeDtypeStruct((B * S, D), jnp.float32),
    )(x_flat, mem_flat, *flat_params)
    return out_flat.reshape(B, S, D)


# --------------------------------------------------------------------------
# Pure-JAX reference (mirrors the PyTorch module, dropout = identity)
# --------------------------------------------------------------------------
def mha_residual_ln_ref(q, kv, params):
    wq, bq, wk, bk, wv, bv, wo, bo, g, b = params
    heads = []
    for h in range(NUM_HEADS):
        Q = q @ wq[h] + bq[h]
        K = kv @ wk[h] + bk[h]
        V = kv @ wv[h] + bv[h]
        s = jnp.einsum('bqk,bsk->bqs', Q, K) * SCALE
        p = jax.nn.softmax(s, axis=-1)
        heads.append(jnp.einsum('bqs,bsv->bqv', p, V))
    cat = jnp.concatenate(heads, axis=-1)
    attn = cat @ wo + bo
    return _layernorm(q + attn, g, b)


def ffn_residual_ln_ref(x, params):
    w1, b1, w2, b2, g, b = params
    y = jnp.maximum(x @ w1 + b1, 0.0) @ w2 + b2
    return _layernorm(x + y, g, b)


def decoder_block_ref(x, memory, params):
    p1, p2, pf = params
    x = mha_residual_ln_ref(x, x, p1)
    x = mha_residual_ln_ref(x, memory, p2)
    return ffn_residual_ln_ref(x, pf)


# --------------------------------------------------------------------------
# Deterministic parameter init (PyTorch-style per-head layout)
# --------------------------------------------------------------------------
def init_mha_params(key):
    ks = jax.random.split(key, 8)
    n = lambda k, shp: (0.1 * jax.random.normal(k, shp, jnp.float32))
    wq = n(ks[0], (NUM_HEADS, DIM_MODEL, DIM_K))
    bq = n(ks[1], (NUM_HEADS, 1, DIM_K))
    wk = n(ks[2], (NUM_HEADS, DIM_MODEL, DIM_K))
    bk = n(ks[3], (NUM_HEADS, 1, DIM_K))
    wv = n(ks[4], (NUM_HEADS, DIM_MODEL, DIM_V))
    bv = n(ks[5], (NUM_HEADS, 1, DIM_V))
    wo = n(ks[6], (NUM_HEADS * DIM_V, DIM_MODEL))
    bo = n(ks[7], (1, DIM_MODEL))
    g = jnp.ones((1, DIM_MODEL), jnp.float32)
    b = jnp.zeros((1, DIM_MODEL), jnp.float32)
    return (wq, bq, wk, bk, wv, bv, wo, bo, g, b)


def init_ffn_params(key):
    ks = jax.random.split(key, 4)
    n = lambda k, shp: (0.1 * jax.random.normal(k, shp, jnp.float32))
    w1 = n(ks[0], (DIM_MODEL, DIM_FF))
    b1 = n(ks[1], (1, DIM_FF))
    w2 = n(ks[2], (DIM_FF, DIM_MODEL))
    b2 = n(ks[3], (1, DIM_MODEL))
    g = jnp.ones((1, DIM_MODEL), jnp.float32)
    b = jnp.zeros((1, DIM_MODEL), jnp.float32)
    return (w1, b1, w2, b2, g, b)


if __name__ == "__main__":
    key = jax.random.PRNGKey(0)
    kx, km, k1, k2, k3 = jax.random.split(key, 5)

    B, S, SM = 2, 8, 8
    x = jax.random.normal(kx, (B, S, DIM_MODEL), jnp.float32)
    memory = jax.random.normal(km, (B, SM, DIM_MODEL), jnp.float32)

    params = (init_mha_params(k1), init_mha_params(k2), init_ffn_params(k3))

    out = jax.block_until_ready(decoder_block(x, memory, params))
    ref = jax.block_until_ready(decoder_block_ref(x, memory, params))

    assert out.shape == (B, S, DIM_MODEL), out.shape
    assert out.dtype == jnp.float32
    # Tolerance relaxed from 1e-4 to 1e-3: the softmax denominator now uses the
    # EUP approximate reciprocal (pl.reciprocal(..., approx=True)).
    assert np.allclose(np.asarray(out), np.asarray(ref), atol=1e-3, rtol=1e-3), \
        np.max(np.abs(np.asarray(out) - np.asarray(ref)))
    print("KERNEL_OK")
</pallas_src>

<mosaic_0001>
module attributes {stable_mosaic.version = 11 : i64} {
  func.func @_decoder_block_kernel(%arg0: memref<16x32xf32, #tpu.memory_space<vmem>>, %arg1: memref<16x32xf32, #tpu.memory_space<vmem>>, %arg2: memref<32x32xf32, #tpu.memory_space<vmem>>, %arg3: memref<1x32xf32, #tpu.memory_space<vmem>>, %arg4: memref<32x64xf32, #tpu.memory_space<vmem>>, %arg5: memref<1x64xf32, #tpu.memory_space<vmem>>, %arg6: memref<32x32xf32, #tpu.memory_space<vmem>>, %arg7: memref<1x32xf32, #tpu.memory_space<vmem>>, %arg8: memref<1x32xf32, #tpu.memory_space<vmem>>, %arg9: memref<1x32xf32, #tpu.memory_space<vmem>>, %arg10: memref<32x32xf32, #tpu.memory_space<vmem>>, %arg11: memref<1x32xf32, #tpu.memory_space<vmem>>, %arg12: memref<32x64xf32, #tpu.memory_space<vmem>>, %arg13: memref<1x64xf32, #tpu.memory_space<vmem>>, %arg14: memref<32x32xf32, #tpu.memory_space<vmem>>, %arg15: memref<1x32xf32, #tpu.memory_space<vmem>>, %arg16: memref<1x32xf32, #tpu.memory_space<vmem>>, %arg17: memref<1x32xf32, #tpu.memory_space<vmem>>, %arg18: memref<32x64xf32, #tpu.memory_space<vmem>>, %arg19: memref<1x64xf32, #tpu.memory_space<vmem>>, %arg20: memref<64x32xf32, #tpu.memory_space<vmem>>, %arg21: memref<1x32xf32, #tpu.memory_space<vmem>>, %arg22: memref<1x32xf32, #tpu.memory_space<vmem>>, %arg23: memref<1x32xf32, #tpu.memory_space<vmem>>, %arg24: memref<16x32xf32, #tpu.memory_space<vmem>>) attributes {dimension_semantics = [], scalar_prefetch = 0 : i64, scratch_operands = 0 : i64, tpu.core_type = #tpu.core_type<tc>} {
    %c0 = arith.constant 0 : index
    %c0_0 = arith.constant 0 : index
    %0 = vector.load %arg0[%c0, %c0_0] : memref<16x32xf32, #tpu.memory_space<vmem>>, vector<16x32xf32>
    %c0_1 = arith.constant 0 : index
    %c0_2 = arith.constant 0 : index
    %1 = vector.load %arg1[%c0_1, %c0_2] : memref<16x32xf32, #tpu.memory_space<vmem>>, vector<16x32xf32>
    %c0_3 = arith.constant 0 : index
    %c0_4 = arith.constant 0 : index
    %2 = vector.load %arg2[%c0_3, %c0_4] : memref<32x32xf32, #tpu.memory_space<vmem>>, vector<32x32xf32>
    %c0_5 = arith.constant 0 : index
    %c0_6 = arith.constant 0 : index
    %3 = vector.load %arg3[%c0_5, %c0_6] : memref<1x32xf32, #tpu.memory_space<vmem>>, vector<1x32xf32>
    %c0_7 = arith.constant 0 : index
    %c0_8 = arith.constant 0 : index
    %4 = vector.load %arg4[%c0_7, %c0_8] : memref<32x64xf32, #tpu.memory_space<vmem>>, vector<32x64xf32>
    %c0_9 = arith.constant 0 : index
    %c0_10 = arith.constant 0 : index
    %5 = vector.load %arg5[%c0_9, %c0_10] : memref<1x64xf32, #tpu.memory_space<vmem>>, vector<1x64xf32>
    %c0_11 = arith.constant 0 : index
    %c0_12 = arith.constant 0 : index
    %6 = vector.load %arg6[%c0_11, %c0_12] : memref<32x32xf32, #tpu.memory_space<vmem>>, vector<32x32xf32>
    %c0_13 = arith.constant 0 : index
    %c0_14 = arith.constant 0 : index
    %7 = vector.load %arg7[%c0_13, %c0_14] : memref<1x32xf32, #tpu.memory_space<vmem>>, vector<1x32xf32>
    %c0_15 = arith.constant 0 : index
    %c0_16 = arith.constant 0 : index
    %8 = vector.load %arg8[%c0_15, %c0_16] : memref<1x32xf32, #tpu.memory_space<vmem>>, vector<1x32xf32>
    %c0_17 = arith.constant 0 : index
    %c0_18 = arith.constant 0 : index
    %9 = vector.load %arg9[%c0_17, %c0_18] : memref<1x32xf32, #tpu.memory_space<vmem>>, vector<1x32xf32>
    %cst = arith.constant dense<0.000000e+00> : vector<16x32xf32>
    %10 = tpu.matmul %0, %2, %cst {dimension_numbers = #tpu.dot_dimension_numbers<[1], [0], [0], [1], [0, 0, 1, 1], [], []>} : vector<16x32xf32>, vector<32x32xf32>, vector<16x32xf32> -> vector<16x32xf32>
    %11 = vector.broadcast %3 : vector<1x32xf32> to vector<16x32xf32>
    %12 = arith.addf %10, %11 : vector<16x32xf32>
    %cst_19 = arith.constant dense<0.000000e+00> : vector<16x64xf32>
    %13 = tpu.matmul %0, %4, %cst_19 {dimension_numbers = #tpu.dot_dimension_numbers<[1], [0], [0], [1], [0, 0, 1, 1], [], []>} : vector<16x32xf32>, vector<32x64xf32>, vector<16x64xf32> -> vector<16x64xf32>
    %14 = vector.broadcast %5 : vector<1x64xf32> to vector<16x64xf32>
    %15 = arith.addf %13, %14 : vector<16x64xf32>
    %16 = vector.extract_strided_slice %12 {offsets = [0, 0], sizes = [8, 32], strides = [1, 1]} : vector<16x32xf32> to vector<8x32xf32>
    %17 = vector.extract_strided_slice %15 {offsets = [0, 0], sizes = [8, 32], strides = [1, 1]} : vector<16x64xf32> to vector<8x32xf32>
    %18 = vector.extract_strided_slice %15 {offsets = [0, 32], sizes = [8, 32], strides = [1, 1]} : vector<16x64xf32> to vector<8x32xf32>
    %cst_20 = arith.constant 0.000000e+00 : f32
    %19 = vector.broadcast %cst_20 : f32 to vector<8x32xf32>
    %20 = vector.extract_strided_slice %16 {offsets = [0, 0], sizes = [8, 8], strides = [1, 1]} : vector<8x32xf32> to vector<8x8xf32>
    %21 = vector.extract_strided_slice %17 {offsets = [0, 0], sizes = [8, 8], strides = [1, 1]} : vector<8x32xf32> to vector<8x8xf32>
    %22 = vector.extract_strided_slice %18 {offsets = [0, 0], sizes = [8, 8], strides = [1, 1]} : vector<8x32xf32> to vector<8x8xf32>
    %23 = tpu.transpose %21, [1, 0] : vector<8x8xf32> -> vector<8x8xf32>
    %cst_21 = arith.constant dense<0.000000e+00> : vector<8x8xf32>
    %24 = tpu.matmul %20, %23, %cst_21 {dimension_numbers = #tpu.dot_dimension_numbers<[1], [0], [0], [1], [0, 0, 1, 1], [], []>} : vector<8x8xf32>, vector<8x8xf32>, vector<8x8xf32> -> vector<8x8xf32>
    %cst_22 = arith.constant 0.353553385 : f32
    %25 = vector.broadcast %cst_22 : f32 to vector<8x8xf32>
    %26 = arith.mulf %24, %25 : vector<8x8xf32>
    %cst_23 = arith.constant dense<0xFF800000> : vector<8xf32>
    %27 = vector.multi_reduction <maximumf>, %26, %cst_23 [1] : vector<8x8xf32> to vector<8xf32>
    %28 = vector.shape_cast %27 : vector<8xf32> to vector<8x1xf32>
    %29 = vector.broadcast %28 : vector<8x1xf32> to vector<8x8xf32>
    %30 = arith.subf %26, %29 : vector<8x8xf32>
    %31 = math.exp %30 : vector<8x8xf32>
    %cst_24 = arith.constant dense<0.000000e+00> : vector<8xf32>
    %32 = vector.multi_reduction <add>, %31, %cst_24 [1] : vector<8x8xf32> to vector<8xf32>
    %33 = vector.shape_cast %32 : vector<8xf32> to vector<8x1xf32>
    %34 = tpu.reciprocal %33 {approx = true} : vector<8x1xf32> -> vector<8x1xf32>
    %35 = vector.broadcast %34 : vector<8x1xf32> to vector<8x8xf32>
    %36 = arith.mulf %31, %35 : vector<8x8xf32>
    %cst_25 = arith.constant dense<0.000000e+00> : vector<8x8xf32>
    %37 = tpu.matmul %36, %22, %cst_25 {dimension_numbers = #tpu.dot_dimension_numbers<[1], [0], [0], [1], [0, 0, 1, 1], [], []>} : vector<8x8xf32>, vector<8x8xf32>, vector<8x8xf32> -> vector<8x8xf32>
    %38 = vector.extract_strided_slice %6 {offsets = [0, 0], sizes = [8, 32], strides = [1, 1]} : vector<32x32xf32> to vector<8x32xf32>
    %cst_26 = arith.constant dense<0.000000e+00> : vector<8x32xf32>
    %39 = tpu.matmul %37, %38, %cst_26 {dimension_numbers = #tpu.dot_dimension_numbers<[1], [0], [0], [1], [0, 0, 1, 1], [], []>} : vector<8x8xf32>, vector<8x32xf32>, vector<8x32xf32> -> vector<8x32xf32>
    %40 = arith.addf %19, %39 : vector<8x32xf32>
    %41 = vector.extract_strided_slice %16 {offsets = [0, 8], sizes = [8, 8], strides = [1, 1]} : vector<8x32xf32> to vector<8x8xf32>
    %42 = vector.extract_strided_slice %17 {offsets = [0, 8], sizes = [8, 8], strides = [1, 1]} : vector<8x32xf32> to vector<8x8xf32>
    %43 = vector.extract_strided_slice %18 {offsets = [0, 8], sizes = [8, 8], strides = [1, 1]} : vector<8x32xf32> to vector<8x8xf32>
    %44 = tpu.transpose %42, [1, 0] : vector<8x8xf32> -> vector<8x8xf32>
    %cst_27 = arith.constant dense<0.000000e+00> : vector<8x8xf32>
    %45 = tpu.matmul %41, %44, %cst_27 {dimension_numbers = #tpu.dot_dimension_numbers<[1], [0], [0], [1], [0, 0, 1, 1], [], []>} : vector<8x8xf32>, vector<8x8xf32>, vector<8x8xf32> -> vector<8x8xf32>
    %cst_28 = arith.constant 0.353553385 : f32
    %46 = vector.broadcast %cst_28 : f32 to vector<8x8xf32>
    %47 = arith.mulf %45, %46 : vector<8x8xf32>
    %cst_29 = arith.constant dense<0xFF800000> : vector<8xf32>
    %48 = vector.multi_reduction <maximumf>, %47, %cst_29 [1] : vector<8x8xf32> to vector<8xf32>
    %49 = vector.shape_cast %48 : vector<8xf32> to vector<8x1xf32>
    %50 = vector.broadcast %49 : vector<8x1xf32> to vector<8x8xf32>
    %51 = arith.subf %47, %50 : vector<8x8xf32>
    %52 = math.exp %51 : vector<8x8xf32>
    %cst_30 = arith.constant dense<0.000000e+00> : vector<8xf32>
    %53 = vector.multi_reduction <add>, %52, %cst_30 [1] : vector<8x8xf32> to vector<8xf32>
    %54 = vector.shape_cast %53 : vector<8xf32> to vector<8x1xf32>
    %55 = tpu.reciprocal %54 {approx = true} : vector<8x1xf32> -> vector<8x1xf32>
    %56 = vector.broadcast %55 : vector<8x1xf32> to vector<8x8xf32>
    %57 = arith.mulf %52, %56 : vector<8x8xf32>
    %cst_31 = arith.constant dense<0.000000e+00> : vector<8x8xf32>
    %58 = tpu.matmul %57, %43, %cst_31 {dimension_numbers = #tpu.dot_dimension_numbers<[1], [0], [0], [1], [0, 0, 1, 1], [], []>} : vector<8x8xf32>, vector<8x8xf32>, vector<8x8xf32> -> vector<8x8xf32>
    %59 = vector.extract_strided_slice %6 {offsets = [8, 0], sizes = [8, 32], strides = [1, 1]} : vector<32x32xf32> to vector<8x32xf32>
    %cst_32 = arith.constant dense<0.000000e+00> : vector<8x32xf32>
    %60 = tpu.matmul %58, %59, %cst_32 {dimension_numbers = #tpu.dot_dimension_numbers<[1], [0], [0], [1], [0, 0, 1, 1], [], []>} : vector<8x8xf32>, vector<8x32xf32>, vector<8x32xf32> -> vector<8x32xf32>
    %61 = arith.addf %40, %60 : vector<8x32xf32>
    %62 = vector.extract_strided_slice %16 {offsets = [0, 16], sizes = [8, 8], strides = [1, 1]} : vector<8x32xf32> to vector<8x8xf32>
    %63 = vector.extract_strided_slice %17 {offsets = [0, 16], sizes = [8, 8], strides = [1, 1]} : vector<8x32xf32> to vector<8x8xf32>
    %64 = vector.extract_strided_slice %18 {offsets = [0, 16], sizes = [8, 8], strides = [1, 1]} : vector<8x32xf32> to vector<8x8xf32>
    %65 = tpu.transpose %63, [1, 0] : vector<8x8xf32> -> vector<8x8xf32>
    %cst_33 = arith.constant dense<0.000000e+00> : vector<8x8xf32>
    %66 = tpu.matmul %62, %65, %cst_33 {dimension_numbers = #tpu.dot_dimension_numbers<[1], [0], [0], [1], [0, 0, 1, 1], [], []>} : vector<8x8xf32>, vector<8x8xf32>, vector<8x8xf32> -> vector<8x8xf32>
    %cst_34 = arith.constant 0.353553385 : f32
    %67 = vector.broadcast %cst_34 : f32 to vector<8x8xf32>
    %68 = arith.mulf %66, %67 : vector<8x8xf32>
    %cst_35 = arith.constant dense<0xFF800000> : vector<8xf32>
    %69 = vector.multi_reduction <maximumf>, %68, %cst_35 [1] : vector<8x8xf32> to vector<8xf32>
    %70 = vector.shape_cast %69 : vector<8xf32> to vector<8x1xf32>
    %71 = vector.broadcast %70 : vector<8x1xf32> to vector<8x8xf32>
    %72 = arith.subf %68, %71 : vector<8x8xf32>
    %73 = math.exp %72 : vector<8x8xf32>
    %cst_36 = arith.constant dense<0.000000e+00> : vector<8xf32>
    %74 = vector.multi_reduction <add>, %73, %cst_36 [1] : vector<8x8xf32> to vector<8xf32>
    %75 = vector.shape_cast %74 : vector<8xf32> to vector<8x1xf32>
    %76 = tpu.reciprocal %75 {approx = true} : vector<8x1xf32> -> vector<8x1xf32>
    %77 = vector.broadcast %76 : vector<8x1xf32> to vector<8x8xf32>
    %78 = arith.mulf %73, %77 : vector<8x8xf32>
    %cst_37 = arith.constant dense<0.000000e+00> : vector<8x8xf32>
    %79 = tpu.matmul %78, %64, %cst_37 {dimension_numbers = #tpu.dot_dimension_numbers<[1], [0], [0], [1], [0, 0, 1, 1], [], []>} : vector<8x8xf32>, vector<8x8xf32>, vector<8x8xf32> -> vector<8x8xf32>
    %80 = vector.extract_strided_slice %6 {offsets = [16, 0], sizes = [8, 32], strides = [1, 1]} : vector<32x32xf32> to vector<8x32xf32>
    %cst_38 = arith.constant dense<0.000000e+00> : vector<8x32xf32>
    %81 = tpu.matmul %79, %80, %cst_38 {dimension_numbers = #tpu.dot_dimension_numbers<[1], [0], [0], [1], [0, 0, 1, 1], [], []>} : vector<8x8xf32>, vector<8x32xf32>, vector<8x32xf32> -> vector<8x32xf32>
    %82 = arith.addf %61, %81 : vector<8x32xf32>
    %83 = vector.extract_strided_slice %16 {offsets = [0, 24], sizes = [8, 8], strides = [1, 1]} : vector<8x32xf32> to vector<8x8xf32>
    %84 = vector.extract_strided_slice %17 {offsets = [0, 24], sizes = [8, 8], strides = [1, 1]} : vector<8x32xf32> to vector<8x8xf32>
    %85 = vector.extract_strided_slice %18 {offsets = [0, 24], sizes = [8, 8], strides = [1, 1]} : vector<8x32xf32> to vector<8x8xf32>
    %86 = tpu.transpose %84, [1, 0] : vector<8x8xf32> -> vector<8x8xf32>
    %cst_39 = arith.constant dense<0.000000e+00> : vector<8x8xf32>
    %87 = tpu.matmul %83, %86, %cst_39 {dimension_numbers = #tpu.dot_dimension_numbers<[1], [0], [0], [1], [0, 0, 1, 1], [], []>} : vector<8x8xf32>, vector<8x8xf32>, vector<8x8xf32> -> vector<8x8xf32>
    %cst_40 = arith.constant 0.353553385 : f32
    %88 = vector.broadcast %cst_40 : f32 to vector<8x8xf32>
    %89 = arith.mulf %87, %88 : vector<8x8xf32>
    %cst_41 = arith.constant dense<0xFF800000> : vector<8xf32>
    %90 = vector.multi_reduction <maximumf>, %89, %cst_41 [1] : vector<8x8xf32> to vector<8xf32>
    %91 = vector.shape_cast %90 : vector<8xf32> to vector<8x1xf32>
    %92 = vector.broadcast %91 : vector<8x1xf32> to vector<8x8xf32>
    %93 = arith.subf %89, %92 : vector<8x8xf32>
    %94 = math.exp %93 : vector<8x8xf32>
    %cst_42 = arith.constant dense<0.000000e+00> : vector<8xf32>
    %95 = vector.multi_reduction <add>, %94, %cst_42 [1] : vector<8x8xf32> to vector<8xf32>
    %96 = vector.shape_cast %95 : vector<8xf32> to vector<8x1xf32>
    %97 = tpu.reciprocal %96 {approx = true} : vector<8x1xf32> -> vector<8x1xf32>
    %98 = vector.broadcast %97 : vector<8x1xf32> to vector<8x8xf32>
    %99 = arith.mulf %94, %98 : vector<8x8xf32>
    %cst_43 = arith.constant dense<0.000000e+00> : vector<8x8xf32>
    %100 = tpu.matmul %99, %85, %cst_43 {dimension_numbers = #tpu.dot_dimension_numbers<[1], [0], [0], [1], [0, 0, 1, 1], [], []>} : vector<8x8xf32>, vector<8x8xf32>, vector<8x8xf32> -> vector<8x8xf32>
    %101 = vector.extract_strided_slice %6 {offsets = [24, 0], sizes = [8, 32], strides = [1, 1]} : vector<32x32xf32> to vector<8x32xf32>
    %cst_44 = arith.constant dense<0.000000e+00> : vector<8x32xf32>
    %102 = tpu.matmul %100, %101, %cst_44 {dimension_numbers = #tpu.dot_dimension_numbers<[1], [0], [0], [1], [0, 0, 1, 1], [], []>} : vector<8x8xf32>, vector<8x32xf32>, vector<8x32xf32> -> vector<8x32xf32>
    %103 = arith.addf %82, %102 : vector<8x32xf32>
    %104 = vector.extract_strided_slice %12 {offsets = [8, 0], sizes = [8, 32], strides = [1, 1]} : vector<16x32xf32> to vector<8x32xf32>
    %105 = vector.extract_strided_slice %15 {offsets = [8, 0], sizes = [8, 32], strides = [1, 1]} : vector<16x64xf32> to vector<8x32xf32>
    %106 = vector.extract_strided_slice %15 {offsets = [8, 32], sizes = [8, 32], strides = [1, 1]} : vector<16x64xf32> to vector<8x32xf32>
    %cst_45 = arith.constant 0.000000e+00 : f32
    %107 = vector.broadcast %cst_45 : f32 to vector<8x32xf32>
    %108 = vector.extract_strided_slice %104 {offsets = [0, 0], sizes = [8, 8], strides = [1, 1]} : vector<8x32xf32> to vector<8x8xf32>
    %109 = vector.extract_strided_slice %105 {offsets = [0, 0], sizes = [8, 8], strides = [1, 1]} : vector<8x32xf32> to vector<8x8xf32>
    %110 = vector.extract_strided_slice %106 {offsets = [0, 0], sizes = [8, 8], strides = [1, 1]} : vector<8x32xf32> to vector<8x8xf32>
    %111 = tpu.transpose %109, [1, 0] : vector<8x8xf32> -> vector<8x8xf32>
    %cst_46 = arith.constant dense<0.000000e+00> : vector<8x8xf32>
    %112 = tpu.matmul %108, %111, %cst_46 {dimension_numbers = #tpu.dot_dimension_numbers<[1], [0], [0], [1], [0, 0, 1, 1], [], []>} : vector<8x8xf32>, vector<8x8xf32>, vector<8x8xf32> -> vector<8x8xf32>
    %cst_47 = arith.constant 0.353553385 : f32
    %113 = vector.broadcast %cst_47 : f32 to vector<8x8xf32>
    %114 = arith.mulf %112, %113 : vector<8x8xf32>
    %cst_48 = arith.constant dense<0xFF800000> : vector<8xf32>
    %115 = vector.multi_reduction <maximumf>, %114, %cst_48 [1] : vector<8x8xf32> to vector<8xf32>
    %116 = vector.shape_cast %115 : vector<8xf32> to vector<8x1xf32>
    %117 = vector.broadcast %116 : vector<8x1xf32> to vector<8x8xf32>
    %118 = arith.subf %114, %117 : vector<8x8xf32>
    %119 = math.exp %118 : vector<8x8xf32>
    %cst_49 = arith.constant dense<0.000000e+00> : vector<8xf32>
    %120 = vector.multi_reduction <add>, %119, %cst_49 [1] : vector<8x8xf32> to vector<8xf32>
    %121 = vector.shape_cast %120 : vector<8xf32> to vector<8x1xf32>
    %122 = tpu.reciprocal %121 {approx = true} : vector<8x1xf32> -> vector<8x1xf32>
    %123 = vector.broadcast %122 : vector<8x1xf32> to vector<8x8xf32>
    %124 = arith.mulf %119, %123 : vector<8x8xf32>
    %cst_50 = arith.constant dense<0.000000e+00> : vector<8x8xf32>
    %125 = tpu.matmul %124, %110, %cst_50 {dimension_numbers = #tpu.dot_dimension_numbers<[1], [0], [0], [1], [0, 0, 1, 1], [], []>} : vector<8x8xf32>, vector<8x8xf32>, vector<8x8xf32> -> vector<8x8xf32>
    %126 = vector.extract_strided_slice %6 {offsets = [0, 0], sizes = [8, 32], strides = [1, 1]} : vector<32x32xf32> to vector<8x32xf32>
    %cst_51 = arith.constant dense<0.000000e+00> : vector<8x32xf32>
    %127 = tpu.matmul %125, %126, %cst_51 {dimension_numbers = #tpu.dot_dimension_numbers<[1], [0], [0], [1], [0, 0, 1, 1], [], []>} : vector<8x8xf32>, vector<8x32xf32>, vector<8x32xf32> -> vector<8x32xf32>
    %128 = arith.addf %107, %127 : vector<8x32xf32>
    %129 = vector.extract_strided_slice %104 {offsets = [0, 8], sizes = [8, 8], strides = [1, 1]} : vector<8x32xf32> to vector<8x8xf32>
    %130 = vector.extract_strided_slice %105 {offsets = [0, 8], sizes = [8, 8], strides = [1, 1]} : vector<8x32xf32> to vector<8x8xf32>
    %131 = vector.extract_strided_slice %106 {offsets = [0, 8], sizes = [8, 8], strides = [1, 1]} : vector<8x32xf32> to vector<8x8xf32>
    %132 = tpu.transpose %130, [1, 0] : vector<8x8xf32> -> vector<8x8xf32>
    %cst_52 = arith.constant dense<0.000000e+00> : vector<8x8xf32>
    %133 = tpu.matmul %129, %132, %cst_52 {dimension_numbers = #tpu.dot_dimension_numbers<[1], [0], [0], [1], [0, 0, 1, 1], [], []>} : vector<8x8xf32>, vector<8x8xf32>, vector<8x8xf32> -> vector<8x8xf32>
    %cst_53 = arith.constant 0.353553385 : f32
    %134 = vector.broadcast %cst_53 : f32 to vector<8x8xf32>
    %135 = arith.mulf %133, %134 : vector<8x8xf32>
    %cst_54 = arith.constant dense<0xFF800000> : vector<8xf32>
    %136 = vector.multi_reduction <maximumf>, %135, %cst_54 [1] : vector<8x8xf32> to vector<8xf32>
    %137 = vector.shape_cast %136 : vector<8xf32> to vector<8x1xf32>
    %138 = vector.broadcast %137 : vector<8x1xf32> to vector<8x8xf32>
    %139 = arith.subf %135, %138 : vector<8x8xf32>
    %140 = math.exp %139 : vector<8x8xf32>
    %cst_55 = arith.constant dense<0.000000e+00> : vector<8xf32>
    %141 = vector.multi_reduction <add>, %140, %cst_55 [1] : vector<8x8xf32> to vector<8xf32>
    %142 = vector.shape_cast %141 : vector<8xf32> to vector<8x1xf32>
    %143 = tpu.reciprocal %142 {approx = true} : vector<8x1xf32> -> vector<8x1xf32>
    %144 = vector.broadcast %143 : vector<8x1xf32> to vector<8x8xf32>
    %145 = arith.mulf %140, %144 : vector<8x8xf32>
    %cst_56 = arith.constant dense<0.000000e+00> : vector<8x8xf32>
    %146 = tpu.matmul %145, %131, %cst_56 {dimension_numbers = #tpu.dot_dimension_numbers<[1], [0], [0], [1], [0, 0, 1, 1], [], []>} : vector<8x8xf32>, vector<8x8xf32>, vector<8x8xf32> -> vector<8x8xf32>
    %147 = vector.extract_strided_slice %6 {offsets = [8, 0], sizes = [8, 32], strides = [1, 1]} : vector<32x32xf32> to vector<8x32xf32>
    %cst_57 = arith.constant dense<0.000000e+00> : vector<8x32xf32>
    %148 = tpu.matmul %146, %147, %cst_57 {dimension_numbers = #tpu.dot_dimension_numbers<[1], [0], [0], [1], [0, 0, 1, 1], [], []>} : vector<8x8xf32>, vector<8x32xf32>, vector<8x32xf32> -> vector<8x32xf32>
    %149 = arith.addf %128, %148 : vector<8x32xf32>
    %150 = vector.extract_strided_slice %104 {offsets = [0, 16], sizes = [8, 8], strides = [1, 1]} : vector<8x32xf32> to vector<8x8xf32>
    %151 = vector.extract_strided_slice %105 {offsets = [0, 16], sizes = [8, 8], strides = [1, 1]} : vector<8x32xf32> to vector<8x8xf32>
    %152 = vector.extract_strided_slice %106 {offsets = [0, 16], sizes = [8, 8], strides = [1, 1]} : vector<8x32xf32> to vector<8x8xf32>
    %153 = tpu.transpose %151, [1, 0] : vector<8x8xf32> -> vector<8x8xf32>
    %cst_58 = arith.constant dense<0.000000e+00> : vector<8x8xf32>
    %154 = tpu.matmul %150, %153, %cst_58 {dimension_numbers = #tpu.dot_dimension_numbers<[1], [0], [0], [1], [0, 0, 1, 1], [], []>} : vector<8x8xf32>, vector<8x8xf32>, vector<8x8xf32> -> vector<8x8xf32>
    %cst_59 = arith.constant 0.353553385 : f32
    %155 = vector.broadcast %cst_59 : f32 to vector<8x8xf32>
    %156 = arith.mulf %154, %155 : vector<8x8xf32>
    %cst_60 = arith.constant dense<0xFF800000> : vector<8xf32>
    %157 = vector.multi_reduction <maximumf>, %156, %cst_60 [1] : vector<8x8xf32> to vector<8xf32>
    %158 = vector.shape_cast %157 : vector<8xf32> to vector<8x1xf32>
    %159 = vector.broadcast %158 : vector<8x1xf32> to vector<8x8xf32>
    %160 = arith.subf %156, %159 : vector<8x8xf32>
    %161 = math.exp %160 : vector<8x8xf32>
    %cst_61 = arith.constant dense<0.000000e+00> : vector<8xf32>
    %162 = vector.multi_reduction <add>, %161, %cst_61 [1] : vector<8x8xf32> to vector<8xf32>
    %163 = vector.shape_cast %162 : vector<8xf32> to vector<8x1xf32>
    %164 = tpu.reciprocal %163 {approx = true} : vector<8x1xf32> -> vector<8x1xf32>
    %165 = vector.broadcast %164 : vector<8x1xf32> to vector<8x8xf32>
    %166 = arith.mulf %161, %165 : vector<8x8xf32>
    %cst_62 = arith.constant dense<0.000000e+00> : vector<8x8xf32>
    %167 = tpu.matmul %166, %152, %cst_62 {dimension_numbers = #tpu.dot_dimension_numbers<[1], [0], [0], [1], [0, 0, 1, 1], [], []>} : vector<8x8xf32>, vector<8x8xf32>, vector<8x8xf32> -> vector<8x8xf32>
    %168 = vector.extract_strided_slice %6 {offsets = [16, 0], sizes = [8, 32], strides = [1, 1]} : vector<32x32xf32> to vector<8x32xf32>
    %cst_63 = arith.constant dense<0.000000e+00> : vector<8x32xf32>
    %169 = tpu.matmul %167, %168, %cst_63 {dimension_numbers = #tpu.dot_dimension_numbers<[1], [0], [0], [1], [0, 0, 1, 1], [], []>} : vector<8x8xf32>, vector<8x32xf32>, vector<8x32xf32> -> vector<8x32xf32>
    %170 = arith.addf %149, %169 : vector<8x32xf32>
    %171 = vector.extract_strided_slice %104 {offsets = [0, 24], sizes = [8, 8], strides = [1, 1]} : vector<8x32xf32> to vector<8x8xf32>
    %172 = vector.extract_strided_slice %105 {offsets = [0, 24], sizes = [8, 8], strides = [1, 1]} : vector<8x32xf32> to vector<8x8xf32>
    %173 = vector.extract_strided_slice %106 {offsets = [0, 24], sizes = [8, 8], strides = [1, 1]} : vector<8x32xf32> to vector<8x8xf32>
    %174 = tpu.transpose %172, [1, 0] : vector<8x8xf32> -> vector<8x8xf32>
    %cst_64 = arith.constant dense<0.000000e+00> : vector<8x8xf32>
    %175 = tpu.matmul %171, %174, %cst_64 {dimension_numbers = #tpu.dot_dimension_numbers<[1], [0], [0], [1], [0, 0, 1, 1], [], []>} : vector<8x8xf32>, vector<8x8xf32>, vector<8x8xf32> -> vector<8x8xf32>
    %cst_65 = arith.constant 0.353553385 : f32
    %176 = vector.broadcast %cst_65 : f32 to vector<8x8xf32>
    %177 = arith.mulf %175, %176 : vector<8x8xf32>
    %cst_66 = arith.constant dense<0xFF800000> : vector<8xf32>
    %178 = vector.multi_reduction <maximumf>, %177, %cst_66 [1] : vector<8x8xf32> to vector<8xf32>
    %179 = vector.shape_cast %178 : vector<8xf32> to vector<8x1xf32>
    %180 = vector.broadcast %179 : vector<8x1xf32> to vector<8x8xf32>
    %181 = arith.subf %177, %180 : vector<8x8xf32>
    %182 = math.exp %181 : vector<8x8xf32>
    %cst_67 = arith.constant dense<0.000000e+00> : vector<8xf32>
    %183 = vector.multi_reduction <add>, %182, %cst_67 [1] : vector<8x8xf32> to vector<8xf32>
    %184 = vector.shape_cast %183 : vector<8xf32> to vector<8x1xf32>
    %185 = tpu.reciprocal %184 {approx = true} : vector<8x1xf32> -> vector<8x1xf32>
    %186 = vector.broadcast %185 : vector<8x1xf32> to vector<8x8xf32>
    %187 = arith.mulf %182, %186 : vector<8x8xf32>
    %cst_68 = arith.constant dense<0.000000e+00> : vector<8x8xf32>
    %188 = tpu.matmul %187, %173, %cst_68 {dimension_numbers = #tpu.dot_dimension_numbers<[1], [0], [0], [1], [0, 0, 1, 1], [], []>} : vector<8x8xf32>, vector<8x8xf32>, vector<8x8xf32> -> vector<8x8xf32>
    %189 = vector.extract_strided_slice %6 {offsets = [24, 0], sizes = [8, 32], strides = [1, 1]} : vector<32x32xf32> to vector<8x32xf32>
    %cst_69 = arith.constant dense<0.000000e+00> : vector<8x32xf32>
    %190 = tpu.matmul %188, %189, %cst_69 {dimension_numbers = #tpu.dot_dimension_numbers<[1], [0], [0], [1], [0, 0, 1, 1], [], []>} : vector<8x8xf32>, vector<8x32xf32>, vector<8x32xf32> -> vector<8x32xf32>
    %191 = arith.addf %170, %190 : vector<8x32xf32>
    %192 = tpu.concatenate %103, %191 in 0 : vector<8x32xf32>, vector<8x32xf32> -> vector<16x32xf32>
    %193 = vector.broadcast %7 : vector<1x32xf32> to vector<16x32xf32>
    %194 = arith.addf %192, %193 : vector<16x32xf32>
    %195 = arith.addf %0, %194 : vector<16x32xf32>
    %cst_70 = arith.constant dense<0.000000e+00> : vector<16xf32>
    %196 = vector.multi_reduction <add>, %195, %cst_70 [1] : vector<16x32xf32> to vector<16xf32>
    %197 = vector.shape_cast %196 : vector<16xf32> to vector<16x1xf32>
    %cst_71 = arith.constant 3.200000e+01 : f32
    %198 = vector.broadcast %cst_71 : f32 to vector<16x1xf32>
    %199 = arith.divf %197, %198 : vector<16x1xf32>
    %200 = vector.broadcast %199 : vector<16x1xf32> to vector<16x32xf32>
    %201 = arith.subf %195, %200 : vector<16x32xf32>
    %202 = arith.mulf %201, %201 : vector<16x32xf32>
    %cst_72 = arith.constant dense<0.000000e+00> : vector<16xf32>
    %203 = vector.multi_reduction <add>, %202, %cst_72 [1] : vector<16x32xf32> to vector<16xf32>
    %204 = vector.shape_cast %203 : vector<16xf32> to vector<16x1xf32>
    %cst_73 = arith.constant 3.200000e+01 : f32
    %205 = vector.broadcast %cst_73 : f32 to vector<16x1xf32>
    %206 = arith.divf %204, %205 : vector<16x1xf32>
    %207 = vector.broadcast %199 : vector<16x1xf32> to vector<16x32xf32>
    %208 = arith.subf %195, %207 : vector<16x32xf32>
    %cst_74 = arith.constant 9.99999974E-6 : f32
    %209 = vector.broadcast %cst_74 : f32 to vector<16x1xf32>
    %210 = arith.addf %206, %209 : vector<16x1xf32>
    %211 = math.rsqrt %210 : vector<16x1xf32>
    %212 = vector.broadcast %211 : vector<16x1xf32> to vector<16x32xf32>
    %213 = arith.mulf %208, %212 : vector<16x32xf32>
    %214 = vector.broadcast %8 : vector<1x32xf32> to vector<16x32xf32>
    %215 = arith.mulf %213, %214 : vector<16x32xf32>
    %216 = vector.broadcast %9 : vector<1x32xf32> to vector<16x32xf32>
    %217 = arith.addf %215, %216 : vector<16x32xf32>
    %c0_75 = arith.constant 0 : index
    %c0_76 = arith.constant 0 : index
    %218 = vector.load %arg10[%c0_75, %c0_76] : memref<32x32xf32, #tpu.memory_space<vmem>>, vector<32x32xf32>
    %c0_77 = arith.constant 0 : index
    %c0_78 = arith.constant 0 : index
    %219 = vector.load %arg11[%c0_77, %c0_78] : memref<1x32xf32, #tpu.memory_space<vmem>>, vector<1x32xf32>
    %c0_79 = arith.constant 0 : index
    %c0_80 = arith.constant 0 : index
    %220 = vector.load %arg12[%c0_79, %c0_80] : memref<32x64xf32, #tpu.memory_space<vmem>>, vector<32x64xf32>
    %c0_81 = arith.constant 0 : index
    %c0_82 = arith.constant 0 : index
    %221 = vector.load %arg13[%c0_81, %c0_82] : memref<1x64xf32, #tpu.memory_space<vmem>>, vector<1x64xf32>
    %c0_83 = arith.constant 0 : index
    %c0_84 = arith.constant 0 : index
    %222 = vector.load %arg14[%c0_83, %c0_84] : memref<32x32xf32, #tpu.memory_space<vmem>>, vector<32x32xf32>
    %c0_85 = arith.constant 0 : index
    %c0_86 = arith.constant 0 : index
    %223 = vector.load %arg15[%c0_85, %c0_86] : memref<1x32xf32, #tpu.memory_space<vmem>>, vector<1x32xf32>
    %c0_87 = arith.constant 0 : index
    %c0_88 = arith.constant 0 : index
    %224 = vector.load %arg16[%c0_87, %c0_88] : memref<1x32xf32, #tpu.memory_space<vmem>>, vector<1x32xf32>
    %c0_89 = arith.constant 0 : index
    %c0_90 = arith.constant 0 : index
    %225 = vector.load %arg17[%c0_89, %c0_90] : memref<1x32xf32, #tpu.memory_space<vmem>>, vector<1x32xf32>
    %cst_91 = arith.constant dense<0.000000e+00> : vector<16x32xf32>
    %226 = tpu.matmul %217, %218, %cst_91 {dimension_numbers = #tpu.dot_dimension_numbers<[1], [0], [0], [1], [0, 0, 1, 1], [], []>} : vector<16x32xf32>, vector<32x32xf32>, vector<16x32xf32> -> vector<16x32xf32>
    %227 = vector.broadcast %219 : vector<1x32xf32> to vector<16x32xf32>
    %228 = arith.addf %226, %227 : vector<16x32xf32>
    %cst_92 = arith.constant dense<0.000000e+00> : vector<16x64xf32>
    %229 = tpu.matmul %1, %220, %cst_92 {dimension_numbers = #tpu.dot_dimension_numbers<[1], [0], [0], [1], [0, 0, 1, 1], [], []>} : vector<16x32xf32>, vector<32x64xf32>, vector<16x64xf32> -> vector<16x64xf32>
    %230 = vector.broadcast %221 : vector<1x64xf32> to vector<16x64xf32>
    %231 = arith.addf %229, %230 : vector<16x64xf32>
    %232 = vector.extract_strided_slice %228 {offsets = [0, 0], sizes = [8, 32], strides = [1, 1]} : vector<16x32xf32> to vector<8x32xf32>
    %233 = vector.extract_strided_slice %231 {offsets = [0, 0], sizes = [8, 32], strides = [1, 1]} : vector<16x64xf32> to vector<8x32xf32>
    %234 = vector.extract_strided_slice %231 {offsets = [0, 32], sizes = [8, 32], strides = [1, 1]} : vector<16x64xf32> to vector<8x32xf32>
    %cst_93 = arith.constant 0.000000e+00 : f32
    %235 = vector.broadcast %cst_93 : f32 to vector<8x32xf32>
    %236 = vector.extract_strided_slice %232 {offsets = [0, 0], sizes = [8, 8], strides = [1, 1]} : vector<8x32xf32> to vector<8x8xf32>
    %237 = vector.extract_strided_slice %233 {offsets = [0, 0], sizes = [8, 8], strides = [1, 1]} : vector<8x32xf32> to vector<8x8xf32>
    %238 = vector.extract_strided_slice %234 {offsets = [0, 0], sizes = [8, 8], strides = [1, 1]} : vector<8x32xf32> to vector<8x8xf32>
    %239 = tpu.transpose %237, [1, 0] : vector<8x8xf32> -> vector<8x8xf32>
    %cst_94 = arith.constant dense<0.000000e+00> : vector<8x8xf32>
    %240 = tpu.matmul %236, %239, %cst_94 {dimension_numbers = #tpu.dot_dimension_numbers<[1], [0], [0], [1], [0, 0, 1, 1], [], []>} : vector<8x8xf32>, vector<8x8xf32>, vector<8x8xf32> -> vector<8x8xf32>
    %cst_95 = arith.constant 0.353553385 : f32
    %241 = vector.broadcast %cst_95 : f32 to vector<8x8xf32>
    %242 = arith.mulf %240, %241 : vector<8x8xf32>
    %cst_96 = arith.constant dense<0xFF800000> : vector<8xf32>
    %243 = vector.multi_reduction <maximumf>, %242, %cst_96 [1] : vector<8x8xf32> to vector<8xf32>
    %244 = vector.shape_cast %243 : vector<8xf32> to vector<8x1xf32>
    %245 = vector.broadcast %244 : vector<8x1xf32> to vector<8x8xf32>
    %246 = arith.subf %242, %245 : vector<8x8xf32>
    %247 = math.exp %246 : vector<8x8xf32>
    %cst_97 = arith.constant dense<0.000000e+00> : vector<8xf32>
    %248 = vector.multi_reduction <add>, %247, %cst_97 [1] : vector<8x8xf32> to vector<8xf32>
    %249 = vector.shape_cast %248 : vector<8xf32> to vector<8x1xf32>
    %250 = tpu.reciprocal %249 {approx = true} : vector<8x1xf32> -> vector<8x1xf32>
    %251 = vector.broadcast %250 : vector<8x1xf32> to vector<8x8xf32>
    %252 = arith.mulf %247, %251 : vector<8x8xf32>
    %cst_98 = arith.constant dense<0.000000e+00> : vector<8x8xf32>
    %253 = tpu.matmul %252, %238, %cst_98 {dimension_numbers = #tpu.dot_dimension_numbers<[1], [0], [0], [1], [0, 0, 1, 1], [], []>} : vector<8x8xf32>, vector<8x8xf32>, vector<8x8xf32> -> vector<8x8xf32>
    %254 = vector.extract_strided_slice %222 {offsets = [0, 0], sizes = [8, 32], strides = [1, 1]} : vector<32x32xf32> to vector<8x32xf32>
    %cst_99 = arith.constant dense<0.000000e+00> : vector<8x32xf32>
    %255 = tpu.matmul %253, %254, %cst_99 {dimension_numbers = #tpu.dot_dimension_numbers<[1], [0], [0], [1], [0, 0, 1, 1], [], []>} : vector<8x8xf32>, vector<8x32xf32>, vector<8x32xf32> -> vector<8x32xf32>
    %256 = arith.addf %235, %255 : vector<8x32xf32>
    %257 = vector.extract_strided_slice %232 {offsets = [0, 8], sizes = [8, 8], strides = [1, 1]} : vector<8x32xf32> to vector<8x8xf32>
    %258 = vector.extract_strided_slice %233 {offsets = [0, 8], sizes = [8, 8], strides = [1, 1]} : vector<8x32xf32> to vector<8x8xf32>
    %259 = vector.extract_strided_slice %234 {offsets = [0, 8], sizes = [8, 8], strides = [1, 1]} : vector<8x32xf32> to vector<8x8xf32>
    %260 = tpu.transpose %258, [1, 0] : vector<8x8xf32> -> vector<8x8xf32>
    %cst_100 = arith.constant dense<0.000000e+00> : vector<8x8xf32>
    %261 = tpu.matmul %257, %260, %cst_100 {dimension_numbers = #tpu.dot_dimension_numbers<[1], [0], [0], [1], [0, 0, 1, 1], [], []>} : vector<8x8xf32>, vector<8x8xf32>, vector<8x8xf32> -> vector<8x8xf32>
    %cst_101 = arith.constant 0.353553385 : f32
    %262 = vector.broadcast %cst_101 : f32 to vector<8x8xf32>
    %263 = arith.mulf %261, %262 : vector<8x8xf32>
    %cst_102 = arith.constant dense<0xFF800000> : vector<8xf32>
    %264 = vector.multi_reduction <maximumf>, %263, %cst_102 [1] : vector<8x8xf32> to vector<8xf32>
    %265 = vector.shape_cast %264 : vector<8xf32> to vector<8x1xf32>
    %266 = vector.broadcast %265 : vector<8x1xf32> to vector<8x8xf32>
    %267 = arith.subf %263, %266 : vector<8x8xf32>
    %268 = math.exp %267 : vector<8x8xf32>
    %cst_103 = arith.constant dense<0.000000e+00> : vector<8xf32>
    %269 = vector.multi_reduction <add>, %268, %cst_103 [1] : vector<8x8xf32> to vector<8xf32>
    %270 = vector.shape_cast %269 : vector<8xf32> to vector<8x1xf32>
    %271 = tpu.reciprocal %270 {approx = true} : vector<8x1xf32> -> vector<8x1xf32>
    %272 = vector.broadcast %271 : vector<8x1xf32> to vector<8x8xf32>
    %273 = arith.mulf %268, %272 : vector<8x8xf32>
    %cst_104 = arith.constant dense<0.000000e+00> : vector<8x8xf32>
    %274 = tpu.matmul %273, %259, %cst_104 {dimension_numbers = #tpu.dot_dimension_numbers<[1], [0], [0], [1], [0, 0, 1, 1], [], []>} : vector<8x8xf32>, vector<8x8xf32>, vector<8x8xf32> -> vector<8x8xf32>
    %275 = vector.extract_strided_slice %222 {offsets = [8, 0], sizes = [8, 32], strides = [1, 1]} : vector<32x32xf32> to vector<8x32xf32>
    %cst_105 = arith.constant dense<0.000000e+00> : vector<8x32xf32>
    %276 = tpu.matmul %274, %275, %cst_105 {dimension_numbers = #tpu.dot_dimension_numbers<[1], [0], [0], [1], [0, 0, 1, 1], [], []>} : vector<8x8xf32>, vector<8x32xf32>, vector<8x32xf32> -> vector<8x32xf32>
    %277 = arith.addf %256, %276 : vector<8x32xf32>
    %278 = vector.extract_strided_slice %232 {offsets = [0, 16], sizes = [8, 8], strides = [1, 1]} : vector<8x32xf32> to vector<8x8xf32>
    %279 = vector.extract_strided_slice %233 {offsets = [0, 16], sizes = [8, 8], strides = [1, 1]} : vector<8x32xf32> to vector<8x8xf32>
    %280 = vector.extract_strided_slice %234 {offsets = [0, 16], sizes = [8, 8], strides = [1, 1]} : vector<8x32xf32> to vector<8x8xf32>
    %281 = tpu.transpose %279, [1, 0] : vector<8x8xf32> -> vector<8x8xf32>
    %cst_106 = arith.constant dense<0.000000e+00> : vector<8x8xf32>
    %282 = tpu.matmul %278, %281, %cst_106 {dimension_numbers = #tpu.dot_dimension_numbers<[1], [0], [0], [1], [0, 0, 1, 1], [], []>} : vector<8x8xf32>, vector<8x8xf32>, vector<8x8xf32> -> vector<8x8xf32>
    %cst_107 = arith.constant 0.353553385 : f32
    %283 = vector.broadcast %cst_107 : f32 to vector<8x8xf32>
    %284 = arith.mulf %282, %283 : vector<8x8xf32>
    %cst_108 = arith.constant dense<0xFF800000> : vector<8xf32>
    %285 = vector.multi_reduction <maximumf>, %284, %cst_108 [1] : vector<8x8xf32> to vector<8xf32>
    %286 = vector.shape_cast %285 : vector<8xf32> to vector<8x1xf32>
    %287 = vector.broadcast %286 : vector<8x1xf32> to vector<8x8xf32>
    %288 = arith.subf %284, %287 : vector<8x8xf32>
    %289 = math.exp %288 : vector<8x8xf32>
    %cst_109 = arith.constant dense<0.000000e+00> : vector<8xf32>
    %290 = vector.multi_reduction <add>, %289, %cst_109 [1] : vector<8x8xf32> to vector<8xf32>
    %291 = vector.shape_cast %290 : vector<8xf32> to vector<8x1xf32>
    %292 = tpu.reciprocal %291 {approx = true} : vector<8x1xf32> -> vector<8x1xf32>
    %293 = vector.broadcast %292 : vector<8x1xf32> to vector<8x8xf32>
    %294 = arith.mulf %289, %293 : vector<8x8xf32>
    %cst_110 = arith.constant dense<0.000000e+00> : vector<8x8xf32>
    %295 = tpu.matmul %294, %280, %cst_110 {dimension_numbers = #tpu.dot_dimension_numbers<[1], [0], [0], [1], [0, 0, 1, 1], [], []>} : vector<8x8xf32>, vector<8x8xf32>, vector<8x8xf32> -> vector<8x8xf32>
    %296 = vector.extract_strided_slice %222 {offsets = [16, 0], sizes = [8, 32], strides = [1, 1]} : vector<32x32xf32> to vector<8x32xf32>
    %cst_111 = arith.constant dense<0.000000e+00> : vector<8x32xf32>
    %297 = tpu.matmul %295, %296, %cst_111 {dimension_numbers = #tpu.dot_dimension_numbers<[1], [0], [0], [1], [0, 0, 1, 1], [], []>} : vector<8x8xf32>, vector<8x32xf32>, vector<8x32xf32> -> vector<8x32xf32>
    %298 = arith.addf %277, %297 : vector<8x32xf32>
    %299 = vector.extract_strided_slice %232 {offsets = [0, 24], sizes = [8, 8], strides = [1, 1]} : vector<8x32xf32> to vector<8x8xf32>
    %300 = vector.extract_strided_slice %233 {offsets = [0, 24], sizes = [8, 8], strides = [1, 1]} : vector<8x32xf32> to vector<8x8xf32>
    %301 = vector.extract_strided_slice %234 {offsets = [0, 24], sizes = [8, 8], strides = [1, 1]} : vector<8x32xf32> to vector<8x8xf32>
    %302 = tpu.transpose %300, [1, 0] : vector<8x8xf32> -> vector<8x8xf32>
    %cst_112 = arith.constant dense<0.000000e+00> : vector<8x8xf32>
    %303 = tpu.matmul %299, %302, %cst_112 {dimension_numbers = #tpu.dot_dimension_numbers<[1], [0], [0], [1], [0, 0, 1, 1], [], []>} : vector<8x8xf32>, vector<8x8xf32>, vector<8x8xf32> -> vector<8x8xf32>
    %cst_113 = arith.constant 0.353553385 : f32
    %304 = vector.broadcast %cst_113 : f32 to vector<8x8xf32>
    %305 = arith.mulf %303, %304 : vector<8x8xf32>
    %cst_114 = arith.constant dense<0xFF800000> : vector<8xf32>
    %306 = vector.multi_reduction <maximumf>, %305, %cst_114 [1] : vector<8x8xf32> to vector<8xf32>
    %307 = vector.shape_cast %306 : vector<8xf32> to vector<8x1xf32>
    %308 = vector.broadcast %307 : vector<8x1xf32> to vector<8x8xf32>
    %309 = arith.subf %305, %308 : vector<8x8xf32>
    %310 = math.exp %309 : vector<8x8xf32>
    %cst_115 = arith.constant dense<0.000000e+00> : vector<8xf32>
    %311 = vector.multi_reduction <add>, %310, %cst_115 [1] : vector<8x8xf32> to vector<8xf32>
    %312 = vector.shape_cast %311 : vector<8xf32> to vector<8x1xf32>
    %313 = tpu.reciprocal %312 {approx = true} : vector<8x1xf32> -> vector<8x1xf32>
    %314 = vector.broadcast %313 : vector<8x1xf32> to vector<8x8xf32>
    %315 = arith.mulf %310, %314 : vector<8x8xf32>
    %cst_116 = arith.constant dense<0.000000e+00> : vector<8x8xf32>
    %316 = tpu.matmul %315, %301, %cst_116 {dimension_numbers = #tpu.dot_dimension_numbers<[1], [0], [0], [1], [0, 0, 1, 1], [], []>} : vector<8x8xf32>, vector<8x8xf32>, vector<8x8xf32> -> vector<8x8xf32>
    %317 = vector.extract_strided_slice %222 {offsets = [24, 0], sizes = [8, 32], strides = [1, 1]} : vector<32x32xf32> to vector<8x32xf32>
    %cst_117 = arith.constant dense<0.000000e+00> : vector<8x32xf32>
    %318 = tpu.matmul %316, %317, %cst_117 {dimension_numbers = #tpu.dot_dimension_numbers<[1], [0], [0], [1], [0, 0, 1, 1], [], []>} : vector<8x8xf32>, vector<8x32xf32>, vector<8x32xf32> -> vector<8x32xf32>
    %319 = arith.addf %298, %318 : vector<8x32xf32>
    %320 = vector.extract_strided_slice %228 {offsets = [8, 0], sizes = [8, 32], strides = [1, 1]} : vector<16x32xf32> to vector<8x32xf32>
    %321 = vector.extract_strided_slice %231 {offsets = [8, 0], sizes = [8, 32], strides = [1, 1]} : vector<16x64xf32> to vector<8x32xf32>
    %322 = vector.extract_strided_slice %231 {offsets = [8, 32], sizes = [8, 32], strides = [1, 1]} : vector<16x64xf32> to vector<8x32xf32>
    %cst_118 = arith.constant 0.000000e+00 : f32
    %323 = vector.broadcast %cst_118 : f32 to vector<8x32xf32>
    %324 = vector.extract_strided_slice %320 {offsets = [0, 0], sizes = [8, 8], strides = [1, 1]} : vector<8x32xf32> to vector<8x8xf32>
    %325 = vector.extract_strided_slice %321 {offsets = [0, 0], sizes = [8, 8], strides = [1, 1]} : vector<8x32xf32> to vector<8x8xf32>
    %326 = vector.extract_strided_slice %322 {offsets = [0, 0], sizes = [8, 8], strides = [1, 1]} : vector<8x32xf32> to vector<8x8xf32>
    %327 = tpu.transpose %325, [1, 0] : vector<8x8xf32> -> vector<8x8xf32>
    %cst_119 = arith.constant dense<0.000000e+00> : vector<8x8xf32>
    %328 = tpu.matmul %324, %327, %cst_119 {dimension_numbers = #tpu.dot_dimension_numbers<[1], [0], [0], [1], [0, 0, 1, 1], [], []>} : vector<8x8xf32>, vector<8x8xf32>, vector<8x8xf32> -> vector<8x8xf32>
    %cst_120 = arith.constant 0.353553385 : f32
    %329 = vector.broadcast %cst_120 : f32 to vector<8x8xf32>
    %330 = arith.mulf %328, %329 : vector<8x8xf32>
    %cst_121 = arith.constant dense<0xFF800000> : vector<8xf32>
    %331 = vector.multi_reduction <maximumf>, %330, %cst_121 [1] : vector<8x8xf32> to vector<8xf32>
    %332 = vector.shape_cast %331 : vector<8xf32> to vector<8x1xf32>
    %333 = vector.broadcast %332 : vector<8x1xf32> to vector<8x8xf32>
    %334 = arith.subf %330, %333 : vector<8x8xf32>
    %335 = math.exp %334 : vector<8x8xf32>
    %cst_122 = arith.constant dense<0.000000e+00> : vector<8xf32>
    %336 = vector.multi_reduction <add>, %335, %cst_122 [1] : vector<8x8xf32> to vector<8xf32>
    %337 = vector.shape_cast %336 : vector<8xf32> to vector<8x1xf32>
    %338 = tpu.reciprocal %337 {approx = true} : vector<8x1xf32> -> vector<8x1xf32>
    %339 = vector.broadcast %338 : vector<8x1xf32> to vector<8x8xf32>
    %340 = arith.mulf %335, %339 : vector<8x8xf32>
    %cst_123 = arith.constant dense<0.000000e+00> : vector<8x8xf32>
    %341 = tpu.matmul %340, %326, %cst_123 {dimension_numbers = #tpu.dot_dimension_numbers<[1], [0], [0], [1], [0, 0, 1, 1], [], []>} : vector<8x8xf32>, vector<8x8xf32>, vector<8x8xf32> -> vector<8x8xf32>
    %342 = vector.extract_strided_slice %222 {offsets = [0, 0], sizes = [8, 32], strides = [1, 1]} : vector<32x32xf32> to vector<8x32xf32>
    %cst_124 = arith.constant dense<0.000000e+00> : vector<8x32xf32>
    %343 = tpu.matmul %341, %342, %cst_124 {dimension_numbers = #tpu.dot_dimension_numbers<[1], [0], [0], [1], [0, 0, 1, 1], [], []>} : vector<8x8xf32>, vector<8x32xf32>, vector<8x32xf32> -> vector<8x32xf32>
    %344 = arith.addf %323, %343 : vector<8x32xf32>
    %345 = vector.extract_strided_slice %320 {offsets = [0, 8], sizes = [8, 8], strides = [1, 1]} : vector<8x32xf32> to vector<8x8xf32>
    %346 = vector.extract_strided_slice %321 {offsets = [0, 8], sizes = [8, 8], strides = [1, 1]} : vector<8x32xf32> to vector<8x8xf32>
    %347 = vector.extract_strided_slice %322 {offsets = [0, 8], sizes = [8, 8], strides = [1, 1]} : vector<8x32xf32> to vector<8x8xf32>
    %348 = tpu.transpose %346, [1, 0] : vector<8x8xf32> -> vector<8x8xf32>
    %cst_125 = arith.constant dense<0.000000e+00> : vector<8x8xf32>
    %349 = tpu.matmul %345, %348, %cst_125 {dimension_numbers = #tpu.dot_dimension_numbers<[1], [0], [0], [1], [0, 0, 1, 1], [], []>} : vector<8x8xf32>, vector<8x8xf32>, vector<8x8xf32> -> vector<8x8xf32>
    %cst_126 = arith.constant 0.353553385 : f32
    %350 = vector.broadcast %cst_126 : f32 to vector<8x8xf32>
    %351 = arith.mulf %349, %350 : vector<8x8xf32>
    %cst_127 = arith.constant dense<0xFF800000> : vector<8xf32>
    %352 = vector.multi_reduction <maximumf>, %351, %cst_127 [1] : vector<8x8xf32> to vector<8xf32>
    %353 = vector.shape_cast %352 : vector<8xf32> to vector<8x1xf32>
    %354 = vector.broadcast %353 : vector<8x1xf32> to vector<8x8xf32>
    %355 = arith.subf %351, %354 : vector<8x8xf32>
    %356 = math.exp %355 : vector<8x8xf32>
    %cst_128 = arith.constant dense<0.000000e+00> : vector<8xf32>
    %357 = vector.multi_reduction <add>, %356, %cst_128 [1] : vector<8x8xf32> to vector<8xf32>
    %358 = vector.shape_cast %357 : vector<8xf32> to vector<8x1xf32>
    %359 = tpu.reciprocal %358 {approx = true} : vector<8x1xf32> -> vector<8x1xf32>
    %360 = vector.broadcast %359 : vector<8x1xf32> to vector<8x8xf32>
    %361 = arith.mulf %356, %360 : vector<8x8xf32>
    %cst_129 = arith.constant dense<0.000000e+00> : vector<8x8xf32>
    %362 = tpu.matmul %361, %347, %cst_129 {dimension_numbers = #tpu.dot_dimension_numbers<[1], [0], [0], [1], [0, 0, 1, 1], [], []>} : vector<8x8xf32>, vector<8x8xf32>, vector<8x8xf32> -> vector<8x8xf32>
    %363 = vector.extract_strided_slice %222 {offsets = [8, 0], sizes = [8, 32], strides = [1, 1]} : vector<32x32xf32> to vector<8x32xf32>
    %cst_130 = arith.constant dense<0.000000e+00> : vector<8x32xf32>
    %364 = tpu.matmul %362, %363, %cst_130 {dimension_numbers = #tpu.dot_dimension_numbers<[1], [0], [0], [1], [0, 0, 1, 1], [], []>} : vector<8x8xf32>, vector<8x32xf32>, vector<8x32xf32> -> vector<8x32xf32>
    %365 = arith.addf %344, %364 : vector<8x32xf32>
    %366 = vector.extract_strided_slice %320 {offsets = [0, 16], sizes = [8, 8], strides = [1, 1]} : vector<8x32xf32> to vector<8x8xf32>
    %367 = vector.extract_strided_slice %321 {offsets = [0, 16], sizes = [8, 8], strides = [1, 1]} : vector<8x32xf32> to vector<8x8xf32>
    %368 = vector.extract_strided_slice %322 {offsets = [0, 16], sizes = [8, 8], strides = [1, 1]} : vector<8x32xf32> to vector<8x8xf32>
    %369 = tpu.transpose %367, [1, 0] : vector<8x8xf32> -> vector<8x8xf32>
    %cst_131 = arith.constant dense<0.000000e+00> : vector<8x8xf32>
    %370 = tpu.matmul %366, %369, %cst_131 {dimension_numbers = #tpu.dot_dimension_numbers<[1], [0], [0], [1], [0, 0, 1, 1], [], []>} : vector<8x8xf32>, vector<8x8xf32>, vector<8x8xf32> -> vector<8x8xf32>
    %cst_132 = arith.constant 0.353553385 : f32
    %371 = vector.broadcast %cst_132 : f32 to vector<8x8xf32>
    %372 = arith.mulf %370, %371 : vector<8x8xf32>
    %cst_133 = arith.constant dense<0xFF800000> : vector<8xf32>
    %373 = vector.multi_reduction <maximumf>, %372, %cst_133 [1] : vector<8x8xf32> to vector<8xf32>
    %374 = vector.shape_cast %373 : vector<8xf32> to vector<8x1xf32>
    %375 = vector.broadcast %374 : vector<8x1xf32> to vector<8x8xf32>
    %376 = arith.subf %372, %375 : vector<8x8xf32>
    %377 = math.exp %376 : vector<8x8xf32>
    %cst_134 = arith.constant dense<0.000000e+00> : vector<8xf32>
    %378 = vector.multi_reduction <add>, %377, %cst_134 [1] : vector<8x8xf32> to vector<8xf32>
    %379 = vector.shape_cast %378 : vector<8xf32> to vector<8x1xf32>
    %380 = tpu.reciprocal %379 {approx = true} : vector<8x1xf32> -> vector<8x1xf32>
    %381 = vector.broadcast %380 : vector<8x1xf32> to vector<8x8xf32>
    %382 = arith.mulf %377, %381 : vector<8x8xf32>
    %cst_135 = arith.constant dense<0.000000e+00> : vector<8x8xf32>
    %383 = tpu.matmul %382, %368, %cst_135 {dimension_numbers = #tpu.dot_dimension_numbers<[1], [0], [0], [1], [0, 0, 1, 1], [], []>} : vector<8x8xf32>, vector<8x8xf32>, vector<8x8xf32> -> vector<8x8xf32>
    %384 = vector.extract_strided_slice %222 {offsets = [16, 0], sizes = [8, 32], strides = [1, 1]} : vector<32x32xf32> to vector<8x32xf32>
    %cst_136 = arith.constant dense<0.000000e+00> : vector<8x32xf32>
    %385 = tpu.matmul %383, %384, %cst_136 {dimension_numbers = #tpu.dot_dimension_numbers<[1], [0], [0], [1], [0, 0, 1, 1], [], []>} : vector<8x8xf32>, vector<8x32xf32>, vector<8x32xf32> -> vector<8x32xf32>
    %386 = arith.addf %365, %385 : vector<8x32xf32>
    %387 = vector.extract_strided_slice %320 {offsets = [0, 24], sizes = [8, 8], strides = [1, 1]} : vector<8x32xf32> to vector<8x8xf32>
    %388 = vector.extract_strided_slice %321 {offsets = [0, 24], sizes = [8, 8], strides = [1, 1]} : vector<8x32xf32> to vector<8x8xf32>
    %389 = vector.extract_strided_slice %322 {offsets = [0, 24], sizes = [8, 8], strides = [1, 1]} : vector<8x32xf32> to vector<8x8xf32>
    %390 = tpu.transpose %388, [1, 0] : vector<8x8xf32> -> vector<8x8xf32>
    %cst_137 = arith.constant dense<0.000000e+00> : vector<8x8xf32>
    %391 = tpu.matmul %387, %390, %cst_137 {dimension_numbers = #tpu.dot_dimension_numbers<[1], [0], [0], [1], [0, 0, 1, 1], [], []>} : vector<8x8xf32>, vector<8x8xf32>, vector<8x8xf32> -> vector<8x8xf32>
    %cst_138 = arith.constant 0.353553385 : f32
    %392 = vector.broadcast %cst_138 : f32 to vector<8x8xf32>
    %393 = arith.mulf %391, %392 : vector<8x8xf32>
    %cst_139 = arith.constant dense<0xFF800000> : vector<8xf32>
    %394 = vector.multi_reduction <maximumf>, %393, %cst_139 [1] : vector<8x8xf32> to vector<8xf32>
    %395 = vector.shape_cast %394 : vector<8xf32> to vector<8x1xf32>
    %396 = vector.broadcast %395 : vector<8x1xf32> to vector<8x8xf32>
    %397 = arith.subf %393, %396 : vector<8x8xf32>
    %398 = math.exp %397 : vector<8x8xf32>
    %cst_140 = arith.constant dense<0.000000e+00> : vector<8xf32>
    %399 = vector.multi_reduction <add>, %398, %cst_140 [1] : vector<8x8xf32> to vector<8xf32>
    %400 = vector.shape_cast %399 : vector<8xf32> to vector<8x1xf32>
    %401 = tpu.reciprocal %400 {approx = true} : vector<8x1xf32> -> vector<8x1xf32>
    %402 = vector.broadcast %401 : vector<8x1xf32> to vector<8x8xf32>
    %403 = arith.mulf %398, %402 : vector<8x8xf32>
    %cst_141 = arith.constant dense<0.000000e+00> : vector<8x8xf32>
    %404 = tpu.matmul %403, %389, %cst_141 {dimension_numbers = #tpu.dot_dimension_numbers<[1], [0], [0], [1], [0, 0, 1, 1], [], []>} : vector<8x8xf32>, vector<8x8xf32>, vector<8x8xf32> -> vector<8x8xf32>
    %405 = vector.extract_strided_slice %222 {offsets = [24, 0], sizes = [8, 32], strides = [1, 1]} : vector<32x32xf32> to vector<8x32xf32>
    %cst_142 = arith.constant dense<0.000000e+00> : vector<8x32xf32>
    %406 = tpu.matmul %404, %405, %cst_142 {dimension_numbers = #tpu.dot_dimension_numbers<[1], [0], [0], [1], [0, 0, 1, 1], [], []>} : vector<8x8xf32>, vector<8x32xf32>, vector<8x32xf32> -> vector<8x32xf32>
    %407 = arith.addf %386, %406 : vector<8x32xf32>
    %408 = tpu.concatenate %319, %407 in 0 : vector<8x32xf32>, vector<8x32xf32> -> vector<16x32xf32>
    %409 = vector.broadcast %223 : vector<1x32xf32> to vector<16x32xf32>
    %410 = arith.addf %408, %409 : vector<16x32xf32>
    %411 = arith.addf %217, %410 : vector<16x32xf32>
    %cst_143 = arith.constant dense<0.000000e+00> : vector<16xf32>
    %412 = vector.multi_reduction <add>, %411, %cst_143 [1] : vector<16x32xf32> to vector<16xf32>
    %413 = vector.shape_cast %412 : vector<16xf32> to vector<16x1xf32>
    %cst_144 = arith.constant 3.200000e+01 : f32
    %414 = vector.broadcast %cst_144 : f32 to vector<16x1xf32>
    %415 = arith.divf %413, %414 : vector<16x1xf32>
    %416 = vector.broadcast %415 : vector<16x1xf32> to vector<16x32xf32>
    %417 = arith.subf %411, %416 : vector<16x32xf32>
    %418 = arith.mulf %417, %417 : vector<16x32xf32>
    %cst_145 = arith.constant dense<0.000000e+00> : vector<16xf32>
    %419 = vector.multi_reduction <add>, %418, %cst_145 [1] : vector<16x32xf32> to vector<16xf32>
    %420 = vector.shape_cast %419 : vector<16xf32> to vector<16x1xf32>
    %cst_146 = arith.constant 3.200000e+01 : f32
    %421 = vector.broadcast %cst_146 : f32 to vector<16x1xf32>
    %422 = arith.divf %420, %421 : vector<16x1xf32>
    %423 = vector.broadcast %415 : vector<16x1xf32> to vector<16x32xf32>
    %424 = arith.subf %411, %423 : vector<16x32xf32>
    %cst_147 = arith.constant 9.99999974E-6 : f32
    %425 = vector.broadcast %cst_147 : f32 to vector<16x1xf32>
    %426 = arith.addf %422, %425 : vector<16x1xf32>
    %427 = math.rsqrt %426 : vector<16x1xf32>
    %428 = vector.broadcast %427 : vector<16x1xf32> to vector<16x32xf32>
    %429 = arith.mulf %424, %428 : vector<16x32xf32>
    %430 = vector.broadcast %224 : vector<1x32xf32> to vector<16x32xf32>
    %431 = arith.mulf %429, %430 : vector<16x32xf32>
    %432 = vector.broadcast %225 : vector<1x32xf32> to vector<16x32xf32>
    %433 = arith.addf %431, %432 : vector<16x32xf32>
    %c0_148 = arith.constant 0 : index
    %c0_149 = arith.constant 0 : index
    %434 = vector.load %arg18[%c0_148, %c0_149] : memref<32x64xf32, #tpu.memory_space<vmem>>, vector<32x64xf32>
    %c0_150 = arith.constant 0 : index
    %c0_151 = arith.constant 0 : index
    %435 = vector.load %arg19[%c0_150, %c0_151] : memref<1x64xf32, #tpu.memory_space<vmem>>, vector<1x64xf32>
    %c0_152 = arith.constant 0 : index
    %c0_153 = arith.constant 0 : index
    %436 = vector.load %arg20[%c0_152, %c0_153] : memref<64x32xf32, #tpu.memory_space<vmem>>, vector<64x32xf32>
    %c0_154 = arith.constant 0 : index
    %c0_155 = arith.constant 0 : index
    %437 = vector.load %arg21[%c0_154, %c0_155] : memref<1x32xf32, #tpu.memory_space<vmem>>, vector<1x32xf32>
    %c0_156 = arith.constant 0 : index
    %c0_157 = arith.constant 0 : index
    %438 = vector.load %arg22[%c0_156, %c0_157] : memref<1x32xf32, #tpu.memory_space<vmem>>, vector<1x32xf32>
    %c0_158 = arith.constant 0 : index
    %c0_159 = arith.constant 0 : index
    %439 = vector.load %arg23[%c0_158, %c0_159] : memref<1x32xf32, #tpu.memory_space<vmem>>, vector<1x32xf32>
    %cst_160 = arith.constant dense<0.000000e+00> : vector<16x64xf32>
    %440 = tpu.matmul %433, %434, %cst_160 {dimension_numbers = #tpu.dot_dimension_numbers<[1], [0], [0], [1], [0, 0, 1, 1], [], []>} : vector<16x32xf32>, vector<32x64xf32>, vector<16x64xf32> -> vector<16x64xf32>
    %441 = vector.broadcast %435 : vector<1x64xf32> to vector<16x64xf32>
    %442 = arith.addf %440, %441 : vector<16x64xf32>
    %cst_161 = arith.constant 0.000000e+00 : f32
    %443 = vector.broadcast %cst_161 : f32 to vector<16x64xf32>
    %444 = arith.maximumf %442, %443 : vector<16x64xf32>
    %cst_162 = arith.constant dense<0.000000e+00> : vector<16x32xf32>
    %445 = tpu.matmul %444, %436, %cst_162 {dimension_numbers = #tpu.dot_dimension_numbers<[1], [0], [0], [1], [0, 0, 1, 1], [], []>} : vector<16x64xf32>, vector<64x32xf32>, vector<16x32xf32> -> vector<16x32xf32>
    %446 = vector.broadcast %437 : vector<1x32xf32> to vector<16x32xf32>
    %447 = arith.addf %445, %446 : vector<16x32xf32>
    %448 = arith.addf %433, %447 : vector<16x32xf32>
    %cst_163 = arith.constant dense<0.000000e+00> : vector<16xf32>
    %449 = vector.multi_reduction <add>, %448, %cst_163 [1] : vector<16x32xf32> to vector<16xf32>
    %450 = vector.shape_cast %449 : vector<16xf32> to vector<16x1xf32>
    %cst_164 = arith.constant 3.200000e+01 : f32
    %451 = vector.broadcast %cst_164 : f32 to vector<16x1xf32>
    %452 = arith.divf %450, %451 : vector<16x1xf32>
    %453 = vector.broadcast %452 : vector<16x1xf32> to vector<16x32xf32>
    %454 = arith.subf %448, %453 : vector<16x32xf32>
    %455 = arith.mulf %454, %454 : vector<16x32xf32>
    %cst_165 = arith.constant dense<0.000000e+00> : vector<16xf32>
    %456 = vector.multi_reduction <add>, %455, %cst_165 [1] : vector<16x32xf32> to vector<16xf32>
    %457 = vector.shape_cast %456 : vector<16xf32> to vector<16x1xf32>
    %cst_166 = arith.constant 3.200000e+01 : f32
    %458 = vector.broadcast %cst_166 : f32 to vector<16x1xf32>
    %459 = arith.divf %457, %458 : vector<16x1xf32>
    %460 = vector.broadcast %452 : vector<16x1xf32> to vector<16x32xf32>
    %461 = arith.subf %448, %460 : vector<16x32xf32>
    %cst_167 = arith.constant 9.99999974E-6 : f32
    %462 = vector.broadcast %cst_167 : f32 to vector<16x1xf32>
    %463 = arith.addf %459, %462 : vector<16x1xf32>
    %464 = math.rsqrt %463 : vector<16x1xf32>
    %465 = vector.broadcast %464 : vector<16x1xf32> to vector<16x32xf32>
    %466 = arith.mulf %461, %465 : vector<16x32xf32>
    %467 = vector.broadcast %438 : vector<1x32xf32> to vector<16x32xf32>
    %468 = arith.mulf %466, %467 : vector<16x32xf32>
    %469 = vector.broadcast %439 : vector<1x32xf32> to vector<16x32xf32>
    %470 = arith.addf %468, %469 : vector<16x32xf32>
    %c0_168 = arith.constant 0 : index
    %c0_169 = arith.constant 0 : index
    %471 = vector.load %arg24[%c0_168, %c0_169] : memref<16x32xf32, #tpu.memory_space<vmem>>, vector<16x32xf32>
    tpu.vector_store %arg24[%c0_168, %c0_169], %470 {strides = array<i32>} : memref<16x32xf32, #tpu.memory_space<vmem>>, vector<16x32xf32>,
    return
  }
}

</mosaic_0001>

<llo_original>
// kernel: tpu_custom_call.1
$region0: #{tpu_custom_call.1}
  #allocation0 [shape = 'u32[]', space=smem, size = 0x4, offset = 0x4, fixed_abs, tag = 'smem constant byte address 0x4 - core index']
  #allocation1 [shape = 'u32[72,128]{1,0:T(1,128)}', space=vmem, size = 0x9000, scoped, tag = 'internal scratch']
  %s0 = inlined_call_operand.hbm [shape: f32[16,32], index: 0, kind: input, shape index: {}]
  %s1 = inlined_call_operand.hbm [shape: f32[16,32], index: 1, kind: input, shape index: {}]
  %s2 = inlined_call_operand.vmem [shape: f32[32,32], index: 2, kind: input, shape index: {}]
  %s3 = inlined_call_operand.vmem [shape: f32[1,32], index: 3, kind: input, shape index: {}]
  %s4 = inlined_call_operand.vmem [shape: f32[32,64], index: 4, kind: input, shape index: {}]
  %s5 = inlined_call_operand.vmem [shape: f32[1,64], index: 5, kind: input, shape index: {}]
  %s6 = inlined_call_operand.vmem [shape: f32[32,32], index: 6, kind: input, shape index: {}]
  %s7 = inlined_call_operand.vmem [shape: f32[1,32], index: 7, kind: input, shape index: {}]
  %s8 = inlined_call_operand.vmem [shape: f32[1,32], index: 8, kind: input, shape index: {}]
  %s9 = inlined_call_operand.vmem [shape: f32[1,32], index: 9, kind: input, shape index: {}]
  %s10 = inlined_call_operand.hbm [shape: f32[32,32], index: 10, kind: input, shape index: {}]
  %s11 = inlined_call_operand.vmem [shape: f32[1,32], index: 11, kind: input, shape index: {}]
  %s12 = inlined_call_operand.hbm [shape: f32[32,64], index: 12, kind: input, shape index: {}]
  %s13 = inlined_call_operand.vmem [shape: f32[1,64], index: 13, kind: input, shape index: {}]
  %s14 = inlined_call_operand.hbm [shape: f32[32,32], index: 14, kind: input, shape index: {}]
  %s15 = inlined_call_operand.vmem [shape: f32[1,32], index: 15, kind: input, shape index: {}]
  %s16 = inlined_call_operand.vmem [shape: f32[1,32], index: 16, kind: input, shape index: {}]
  %s17 = inlined_call_operand.vmem [shape: f32[1,32], index: 17, kind: input, shape index: {}]
  %s18 = inlined_call_operand.hbm [shape: f32[32,64], index: 18, kind: input, shape index: {}]
  %s19 = inlined_call_operand.vmem [shape: f32[1,64], index: 19, kind: input, shape index: {}]
  %s20 = inlined_call_operand.vmem [shape: f32[64,32], index: 20, kind: input, shape index: {}]
  %s21 = inlined_call_operand.vmem [shape: f32[1,32], index: 21, kind: input, shape index: {}]
  %s22 = inlined_call_operand.vmem [shape: f32[1,32], index: 22, kind: input, shape index: {}]
  %s23 = inlined_call_operand.vmem [shape: f32[1,32], index: 23, kind: input, shape index: {}]
  %s24 = inlined_call_operand.hbm [shape: f32[16,32], index: 24, kind: output, shape index: {}]
  %s25 = sld [smem:[#allocation0]]
  $region130: #{tpu_custom_call.1} parent=0
    _
  %s27 = ssub.s32 1, %s25
  %s28 = scalar_select 0, %s27, %s25
  $region1: #{tpu_custom_call.1} parent=0
    #allocation2 [shape = 'u8[8192]{0}', space=vmem, size = 0x2000, scoped, tag = 'input window, operand 0, single buffered']
    #allocation3 [shape = 's32[1]{0}', space=sflag, size = 0x4, scoped, tag = 'scoped memory for tpu_custom_call.1']
    #allocation4 [shape = 's32[1]{0}', space=sflag, size = 0x4, scoped, tag = 'scoped memory for tpu_custom_call.1']
    #allocation5 [shape = 'u8[8192]{0}', space=vmem, size = 0x2000, scoped, tag = 'input window, operand 1, single buffered']
    #allocation6 [shape = 's32[1]{0}', space=sflag, size = 0x4, scoped, tag = 'scoped memory for tpu_custom_call.1']
    #allocation7 [shape = 'u8[16384]{0}', space=vmem, size = 0x4000, scoped, tag = 'input window, operand 10, single buffered']
    #allocation8 [shape = 'u8[16384]{0}', space=vmem, size = 0x4000, scoped, tag = 'input window, operand 12, single buffered']
    #allocation9 [shape = 's32[1]{0}', space=sflag, size = 0x4, scoped, tag = 'scoped memory for tpu_custom_call.1']
    #allocation10 [shape = 'u8[16384]{0}', space=vmem, size = 0x4000, scoped, tag = 'input window, operand 14, single buffered']
    #allocation11 [shape = 'u8[16384]{0}', space=vmem, size = 0x4000, scoped, tag = 'input window, operand 18, single buffered']
    #allocation12 [shape = 's32[1]{0}', space=sflag, size = 0x4, scoped, tag = 'scoped memory for tpu_custom_call.1']
    #allocation13 [shape = 'u8[8192]{0}', space=vmem, size = 0x2000, scoped, tag = 'output window, operand 0, single buffered']
    %29 = vsyncpa [#allocation3], 0
    %30 = vsyncpa [#allocation6], 0
    %31 = vsyncpa [#allocation9], 0
    %32 = vsyncpa [#allocation12], 0
    %33 = vsyncpa [#allocation4], 0
    // Predicated region
    $region2: #{tpu_custom_call.1} parent=1 // pred_check
      _
    $region3: #{tpu_custom_call.1} parent=1 // pred_check_branch
      %35 = sbr.rel (0) target = $region5
    $region4: #{tpu_custom_call.1} parent=1 // pred_region
      %37 = vsyncadd [#allocation3], 0
      %s38 = sshll.u32 %s0, 4
      %s39 = int_to_ptr.hbm [resolvable:$true] %s38
      %s40 = sshll.u32 [#allocation2], 4
      %s41 = int_to_ptr.vmem [resolvable:$true] %s40
      %46 = dma.hbm_to_vmem [thread:$0]  %s39, 256, %s41, [#allocation3], 128, 128, 8
    $region5: #{tpu_custom_call.1} parent=1 // pred_fallthru
      _
    // Predicated region
    $region6: #{tpu_custom_call.1} parent=1 // pred_check
      _
    $region7: #{tpu_custom_call.1} parent=1 // pred_check_branch
      %48 = sbr.rel (0) target = $region9
    $region8: #{tpu_custom_call.1} parent=1 // pred_region
      %50 = vsyncadd [#allocation6], 0
      %s51 = sshll.u32 %s1, 4
      %s52 = int_to_ptr.hbm [resolvable:$true] %s51
      %s53 = sshll.u32 [#allocation5], 4
      %s54 = int_to_ptr.vmem [resolvable:$true] %s53
      %59 = dma.hbm_to_vmem [thread:$0]  %s52, 256, %s54, [#allocation6], 128, 128, 8
    $region9: #{tpu_custom_call.1} parent=1 // pred_fallthru
      _
    // Predicated region
    $region10: #{tpu_custom_call.1} parent=1 // pred_check
      _
    $region11: #{tpu_custom_call.1} parent=1 // pred_check_branch
      %61 = sbr.rel (0) target = $region13
    $region12: #{tpu_custom_call.1} parent=1 // pred_region
      _
    $region13: #{tpu_custom_call.1} parent=1 // pred_fallthru
      _
    // Predicated region
    $region14: #{tpu_custom_call.1} parent=1 // pred_check
      _
    $region15: #{tpu_custom_call.1} parent=1 // pred_check_branch
      %63 = sbr.rel (0) target = $region17
    $region16: #{tpu_custom_call.1} parent=1 // pred_region
      _
    $region17: #{tpu_custom_call.1} parent=1 // pred_fallthru
      _
    // Predicated region
    $region18: #{tpu_custom_call.1} parent=1 // pred_check
      _
    $region19: #{tpu_custom_call.1} parent=1 // pred_check_branch
      %65 = sbr.rel (0) target = $region21
    $region20: #{tpu_custom_call.1} parent=1 // pred_region
      _
    $region21: #{tpu_custom_call.1} parent=1 // pred_fallthru
      _
    // Predicated region
    $region22: #{tpu_custom_call.1} parent=1 // pred_check
      _
    $region23: #{tpu_custom_call.1} parent=1 // pred_check_branch
      %67 = sbr.rel (0) target = $region25
    $region24: #{tpu_custom_call.1} parent=1 // pred_region
      _
    $region25: #{tpu_custom_call.1} parent=1 // pred_fallthru
      _
    // Predicated region
    $region26: #{tpu_custom_call.1} parent=1 // pred_check
      _
    $region27: #{tpu_custom_call.1} parent=1 // pred_check_branch
      %69 = sbr.rel (0) target = $region29
    $region28: #{tpu_custom_call.1} parent=1 // pred_region
      _
    $region29: #{tpu_custom_call.1} parent=1 // pred_fallthru
      _
    // Predicated region
    $region30: #{tpu_custom_call.1} parent=1 // pred_check
      _
    $region31: #{tpu_custom_call.1} parent=1 // pred_check_branch
      %71 = sbr.rel (0) target = $region33
    $region32: #{tpu_custom_call.1} parent=1 // pred_region
      _
    $region33: #{tpu_custom_call.1} parent=1 // pred_fallthru
      _
    // Predicated region
    $region34: #{tpu_custom_call.1} parent=1 // pred_check
      _
    $region35: #{tpu_custom_call.1} parent=1 // pred_check_branch
      %73 = sbr.rel (0) target = $region37
    $region36: #{tpu_custom_call.1} parent=1 // pred_region
      _
    $region37: #{tpu_custom_call.1} parent=1 // pred_fallthru
      _
    // Predicated region
    $region38: #{tpu_custom_call.1} parent=1 // pred_check
      _
    $region39: #{tpu_custom_call.1} parent=1 // pred_check_branch
      %75 = sbr.rel (0) target = $region41
    $region40: #{tpu_custom_call.1} parent=1 // pred_region
      _
    $region41: #{tpu_custom_call.1} parent=1 // pred_fallthru
      _
    // Predicated region
    $region42: #{tpu_custom_call.1} parent=1 // pred_check
      _
    $region43: #{tpu_custom_call.1} parent=1 // pred_check_branch
      %77 = sbr.rel (0) target = $region45
    $region44: #{tpu_custom_call.1} parent=1 // pred_region
      %79 = vsyncadd [#allocation6], 0
      %s80 = sshll.u32 %s10, 4
      %s81 = int_to_ptr.hbm [resolvable:$true] %s80
      %s82 = sshll.u32 [#allocation7], 4
      %s83 = int_to_ptr.vmem [resolvable:$true] %s82
      %88 = dma.hbm_to_vmem [thread:$0]  %s81, 512, %s83, [#allocation6], 128, 128, 8
    $region45: #{tpu_custom_call.1} parent=1 // pred_fallthru
      _
    // Predicated region
    $region46: #{tpu_custom_call.1} parent=1 // pred_check
      _
    $region47: #{tpu_custom_call.1} parent=1 // pred_check_branch
      %90 = sbr.rel (0) target = $region49
    $region48: #{tpu_custom_call.1} parent=1 // pred_region
      _
    $region49: #{tpu_custom_call.1} parent=1 // pred_fallthru
      _
    // Predicated region
    $region50: #{tpu_custom_call.1} parent=1 // pred_check
      _
    $region51: #{tpu_custom_call.1} parent=1 // pred_check_branch
      %92 = sbr.rel (0) target = $region53
    $region52: #{tpu_custom_call.1} parent=1 // pred_region
      %94 = vsyncadd [#allocation9], 0
      %s95 = sshll.u32 %s12, 4
      %s96 = int_to_ptr.hbm [resolvable:$true] %s95
      %s97 = sshll.u32 [#allocation8], 4
      %s98 = int_to_ptr.vmem [resolvable:$true] %s97
      %103 = dma.hbm_to_vmem [thread:$0]  %s96, 512, %s98, [#allocation9], 128, 128, 8
    $region53: #{tpu_custom_call.1} parent=1 // pred_fallthru
      _
    // Predicated region
    $region54: #{tpu_custom_call.1} parent=1 // pred_check
      _
    $region55: #{tpu_custom_call.1} parent=1 // pred_check_branch
      %105 = sbr.rel (0) target = $region57
    $region56: #{tpu_custom_call.1} parent=1 // pred_region
      _
    $region57: #{tpu_custom_call.1} parent=1 // pred_fallthru
      _
    // Predicated region
    $region58: #{tpu_custom_call.1} parent=1 // pred_check
      _
    $region59: #{tpu_custom_call.1} parent=1 // pred_check_branch
      %107 = sbr.rel (0) target = $region61
    $region60: #{tpu_custom_call.1} parent=1 // pred_region
      %109 = vsyncadd [#allocation9], 0
      %s110 = sshll.u32 %s14, 4
      %s111 = int_to_ptr.hbm [resolvable:$true] %s110
      %s112 = sshll.u32 [#allocation10], 4
      %s113 = int_to_ptr.vmem [resolvable:$true] %s112
      %118 = dma.hbm_to_vmem [thread:$0]  %s111, 512, %s113, [#allocation9], 128, 128, 8
    $region61: #{tpu_custom_call.1} parent=1 // pred_fallthru
      _
    // Predicated region
    $region62: #{tpu_custom_call.1} parent=1 // pred_check
      _
    $region63: #{tpu_custom_call.1} parent=1 // pred_check_branch
      %120 = sbr.rel (0) target = $region65
    $region64: #{tpu_custom_call.1} parent=1 // pred_region
      _
    $region65: #{tpu_custom_call.1} parent=1 // pred_fallthru
      _
    // Predicated region
    $region66: #{tpu_custom_call.1} parent=1 // pred_check
      _
    $region67: #{tpu_custom_call.1} parent=1 // pred_check_branch
      %122 = sbr.rel (0) target = $region69
    $region68: #{tpu_custom_call.1} parent=1 // pred_region
      _
    $region69: #{tpu_custom_call.1} parent=1 // pred_fallthru
      _
    // Predicated region
    $region70: #{tpu_custom_call.1} parent=1 // pred_check
      _
    $region71: #{tpu_custom_call.1} parent=1 // pred_check_branch
      %124 = sbr.rel (0) target = $region73
    $region72: #{tpu_custom_call.1} parent=1 // pred_region
      _
    $region73: #{tpu_custom_call.1} parent=1 // pred_fallthru
      _
    // Predicated region
    $region74: #{tpu_custom_call.1} parent=1 // pred_check
      _
    $region75: #{tpu_custom_call.1} parent=1 // pred_check_branch
      %126 = sbr.rel (0) target = $region77
    $region76: #{tpu_custom_call.1} parent=1 // pred_region
      %128 = vsyncadd [#allocation12], 0
      %s129 = sshll.u32 %s18, 4
      %s130 = int_to_ptr.hbm [resolvable:$true] %s129
      %s131 = sshll.u32 [#allocation11], 4
      %s132 = int_to_ptr.vmem [resolvable:$true] %s131
      %137 = dma.hbm_to_vmem [thread:$0]  %s130, 512, %s132, [#allocation12], 128, 128, 8
    $region77: #{tpu_custom_call.1} parent=1 // pred_fallthru
      _
    // Predicated region
    $region78: #{tpu_custom_call.1} parent=1 // pred_check
      _
    $region79: #{tpu_custom_call.1} parent=1 // pred_check_branch
      %139 = sbr.rel (0) target = $region81
    $region80: #{tpu_custom_call.1} parent=1 // pred_region
      _
    $region81: #{tpu_custom_call.1} parent=1 // pred_fallthru
      _
    // Predicated region
    $region82: #{tpu_custom_call.1} parent=1 // pred_check
      _
    $region83: #{tpu_custom_call.1} parent=1 // pred_check_branch
      %141 = sbr.rel (0) target = $region85
    $region84: #{tpu_custom_call.1} parent=1 // pred_region
      _
    $region85: #{tpu_custom_call.1} parent=1 // pred_fallthru
      _
    // Predicated region
    $region86: #{tpu_custom_call.1} parent=1 // pred_check
      _
    $region87: #{tpu_custom_call.1} parent=1 // pred_check_branch
      %143 = sbr.rel (0) target = $region89
    $region88: #{tpu_custom_call.1} parent=1 // pred_region
      _
    $region89: #{tpu_custom_call.1} parent=1 // pred_fallthru
      _
    // Predicated region
    $region90: #{tpu_custom_call.1} parent=1 // pred_check
      _
    $region91: #{tpu_custom_call.1} parent=1 // pred_check_branch
      %145 = sbr.rel (0) target = $region93
    $region92: #{tpu_custom_call.1} parent=1 // pred_region
      _
    $region93: #{tpu_custom_call.1} parent=1 // pred_fallthru
      _
    // Predicated region
    $region94: #{tpu_custom_call.1} parent=1 // pred_check
      _
    $region95: #{tpu_custom_call.1} parent=1 // pred_check_branch
      %147 = sbr.rel (0) target = $region97
    $region96: #{tpu_custom_call.1} parent=1 // pred_region
      _
    $region97: #{tpu_custom_call.1} parent=1 // pred_fallthru
      _
    // Predicated region
    $region98: #{tpu_custom_call.1} parent=1 // pred_check
      _
    $region99: #{tpu_custom_call.1} parent=1 // pred_check_branch
      %149 = sbr.rel (0) target = $region101
    $region100: #{tpu_custom_call.1} parent=1 // pred_region
      %151 = dma.done [#allocation3], 256
    $region101: #{tpu_custom_call.1} parent=1 // pred_fallthru
      _
    // Predicated region
    $region102: #{tpu_custom_call.1} parent=1 // pred_check
      _
    $region103: #{tpu_custom_call.1} parent=1 // pred_check_branch
      %153 = sbr.rel (0) target = $region105
    $region104: #{tpu_custom_call.1} parent=1 // pred_region
      %155 = dma.done [#allocation6], 256
    $region105: #{tpu_custom_call.1} parent=1 // pred_fallthru
      _
    // Predicated region
    $region106: #{tpu_custom_call.1} parent=1 // pred_check
      _
    $region107: #{tpu_custom_call.1} parent=1 // pred_check_branch
      %157 = sbr.rel (0) target = $region109
    $region108: #{tpu_custom_call.1} parent=1 // pred_region
      %159 = dma.done [#allocation6], 512
    $region109: #{tpu_custom_call.1} parent=1 // pred_fallthru
      _
    // Predicated region
    $region110: #{tpu_custom_call.1} parent=1 // pred_check
      _
    $region111: #{tpu_custom_call.1} parent=1 // pred_check_branch
      %161 = sbr.rel (0) target = $region113
    $region112: #{tpu_custom_call.1} parent=1 // pred_region
      %163 = dma.done [#allocation9], 512
    $region113: #{tpu_custom_call.1} parent=1 // pred_fallthru
      _
    // Predicated region
    $region114: #{tpu_custom_call.1} parent=1 // pred_check
      _
    $region115: #{tpu_custom_call.1} parent=1 // pred_check_branch
      %165 = sbr.rel (0) target = $region117
    $region116: #{tpu_custom_call.1} parent=1 // pred_region
      %167 = dma.done [#allocation9], 512
    $region117: #{tpu_custom_call.1} parent=1 // pred_fallthru
      _
    // Predicated region
    $region118: #{tpu_custom_call.1} parent=1 // pred_check
      _
    $region119: #{tpu_custom_call.1} parent=1 // pred_check_branch
      %169 = sbr.rel (0) target = $region121
    $region120: #{tpu_custom_call.1} parent=1 // pred_region
      %171 = dma.done [#allocation12], 512
    $region121: #{tpu_custom_call.1} parent=1 // pred_fallthru
      _
    %v172 = vld [vmem:[#allocation2] sm:$0xff]
    %v173 = vld [vmem:[#allocation2 + $0x8] sm:$0xff]
    %v174 = vld [vmem:[#allocation5] sm:$0xff]
    %v175 = vld [vmem:[#allocation5 + $0x8] sm:$0xff]
    %v176 = vld [vmem:[%s2] sm:$0xff]
    %v177 = vld [vmem:[%s2 + $0x8] sm:$0xff]
    %v178 = vld [vmem:[%s2 + $0x10] sm:$0xff]
    %v179 = vld [vmem:[%s2 + $0x18] sm:$0xff]
    %v180 = vld [vmem:[%s3] sm:$0x1]
    %v181 = vld [vmem:[%s4] sm:$0xff]
    %v182 = vld [vmem:[%s4 + $0x8] sm:$0xff]
    %v183 = vld [vmem:[%s4 + $0x10] sm:$0xff]
    %v184 = vld [vmem:[%s4 + $0x18] sm:$0xff]
    %v185 = vld [vmem:[%s5] sm:$0x1]
    %v186 = vld [vmem:[%s6] sm:$0xff]
    %v187 = vld [vmem:[%s6 + $0x8] sm:$0xff]
    %v188 = vld [vmem:[%s6 + $0x10] sm:$0xff]
    %v189 = vld [vmem:[%s6 + $0x18] sm:$0xff]
    %v190 = vld [vmem:[%s7] sm:$0x1]
    %v191 = vld [vmem:[%s8] sm:$0x1]
    %v192 = vld [vmem:[%s9] sm:$0x1]
    %v194 = vperm.slane %v180, 0
    %vm196 = vcmask 261120
    %v198 = vsel %vm196, %v172, 0
    %v201 = vsel %vm196, %v173, 0
    %203 = vmatpush.msra.mxu0 0.0
    %204 = vmatpush.msra.mxu0 0.0
    %205 = vmatpush.msra.mxu0 0.0
    %206 = vmatpush.msra.mxu0 0.0
    %207 = vmatpush.msra.mxu0 0.0
    %208 = vmatpush.msra.mxu0 0.0
    %209 = vmatpush.msra.mxu0 0.0
    %210 = vmatpush.msra.mxu0 0.0
    %211 = vmatpush.msra.mxu0 0.0
    %212 = vmatpush.msra.mxu0 0.0
    %213 = vmatpush.msra.mxu0 0.0
    %214 = vmatpush.msra.mxu0 0.0
    %215 = vmatpush.msra.mxu0 %v179
    %216 = vmatpush.msra.mxu0 %v178
    %217 = vmatpush.msra.mxu0 %v177
    %218 = vmatpush.msra.mxu0 %v176
    %219 = vmatmul.f32.gmra.mxu0 %v198
    %v220 = vpop.f32.mrf.mxu0
    %v221 = vadd.f32 %v194, %v220
    %222 = vmatmul.f32.gmra.mxu0 %v201
    %v223 = vpop.f32.mrf.mxu0
    %v224 = vadd.f32 %v194, %v223
    %225 = vdwg.mxu0
    %v227 = vperm.slane %v185, 0
    %229 = vmatpush.msra.mxu0 0.0
    %230 = vmatpush.msra.mxu0 0.0
    %231 = vmatpush.msra.mxu0 0.0
    %232 = vmatpush.msra.mxu0 0.0
    %233 = vmatpush.msra.mxu0 0.0
    %234 = vmatpush.msra.mxu0 0.0
    %235 = vmatpush.msra.mxu0 0.0
    %236 = vmatpush.msra.mxu0 0.0
    %237 = vmatpush.msra.mxu0 0.0
    %238 = vmatpush.msra.mxu0 0.0
    %239 = vmatpush.msra.mxu0 0.0
    %240 = vmatpush.msra.mxu0 0.0
    %241 = vmatpush.msra.mxu0 %v184
    %242 = vmatpush.msra.mxu0 %v183
    %243 = vmatpush.msra.mxu0 %v182
    %244 = vmatpush.msra.mxu0 %v181
    %245 = vmatmul.f32.gmra.mxu0 %v198
    %v246 = vpop.f32.mrf.mxu0
    %v247 = vadd.f32 %v227, %v246
    %248 = vmatmul.f32.gmra.mxu0 %v201
    %v249 = vpop.f32.mrf.mxu0
    %v250 = vadd.f32 %v227, %v249
    %251 = vdwg.mxu0
    %vm252 = vcmask 64512
    %v254 = vsel %vm252, %v221, 0
    %v257 = vsel %vm252, %v247, 0
    %259 = vmatpush.xpose.msra.mxu0 0.0
    %260 = vmatpush.xpose.msra.mxu0 0.0
    %261 = vmatpush.xpose.msra.mxu0 0.0
    %262 = vmatpush.xpose.msra.mxu0 0.0
    %263 = vmatpush.xpose.msra.mxu0 0.0
    %264 = vmatpush.xpose.msra.mxu0 0.0
    %265 = vmatpush.xpose.msra.mxu0 0.0
    %266 = vmatpush.xpose.msra.mxu0 0.0
    %267 = vmatpush.xpose.msra.mxu0 0.0
    %268 = vmatpush.xpose.msra.mxu0 0.0
    %269 = vmatpush.xpose.msra.mxu0 0.0
    %270 = vmatpush.xpose.msra.mxu0 0.0
    %271 = vmatpush.xpose.msra.mxu0 0.0
    %272 = vmatpush.xpose.msra.mxu0 0.0
    %273 = vmatpush.xpose.msra.mxu0 0.0
    %274 = vmatpush.xpose.msra.mxu0 %v257
    %275 = vmatmul.f32.gmra.mxu0 %v254
    %v276 = vpop.f32.mrf.mxu0
    %v277 = vadd.f32 0.0, %v276
    %278 = vdwg.mxu0
    %v279 = vmul.f32 %v277, 0.35355338
    %v280 = vsel %vm252, %v279, -inf
    %281 = vmax.xlane.f32.xlu0 %v280
    %v282 = vpop.xlane.xlu0 %281
    %v283 = vsub.f32 %v279, %v282
    %v284 = vmul.f32 %v283, 1.442695
    %v285 = vpow.pop %v284
    %v286 = vsel %vm252, %v285, 0.0
    %287 = vadd.xlane.f32.xlu0 %v286
    %v288 = vpop.xlane.xlu0 %287
    %v289 = vrcp.pop %v288
    %v290 = vmul.f32 %v285, %v289
    %291 = vrot.lane.b32.xlu0 %v247, 96
    %v292 = vpop.permute.xlu0 %291
    %v295 = vsel %vm252, %v290, 0
    %297 = vmatpush.msra.mxu0 0.0
    %298 = vmatpush.msra.mxu0 0.0
    %299 = vmatpush.msra.mxu0 0.0
    %300 = vmatpush.msra.mxu0 0.0
    %301 = vmatpush.msra.mxu0 0.0
    %302 = vmatpush.msra.mxu0 0.0
    %303 = vmatpush.msra.mxu0 0.0
    %304 = vmatpush.msra.mxu0 0.0
    %305 = vmatpush.msra.mxu0 0.0
    %306 = vmatpush.msra.mxu0 0.0
    %307 = vmatpush.msra.mxu0 0.0
    %308 = vmatpush.msra.mxu0 0.0
    %309 = vmatpush.msra.mxu0 0.0
    %310 = vmatpush.msra.mxu0 0.0
    %311 = vmatpush.msra.mxu0 0.0
    %312 = vmatpush.msra.mxu0 %v292
    %313 = vmatmul.f32.gmra.mxu0 %v295
    %v314 = vpop.f32.mrf.mxu0
    %v315 = vadd.f32 0.0, %v314
    %316 = vdwg.mxu0
    %317 = vrot.lane.b32.xlu0 %v221, 120
    %v318 = vpop.permute.xlu0 %317
    %319 = vrot.lane.b32.xlu0 %v247, 120
    %v320 = vpop.permute.xlu0 %319
    %v321 = vsel %vm252, %v318, 0
    %v323 = vsel %vm252, %v320, 0
    %325 = vmatpush.xpose.msra.mxu0 0.0
    %326 = vmatpush.xpose.msra.mxu0 0.0
    %327 = vmatpush.xpose.msra.mxu0 0.0
    %328 = vmatpush.xpose.msra.mxu0 0.0
    %329 = vmatpush.xpose.msra.mxu0 0.0
    %330 = vmatpush.xpose.msra.mxu0 0.0
    %331 = vmatpush.xpose.msra.mxu0 0.0
    %332 = vmatpush.xpose.msra.mxu0 0.0
    %333 = vmatpush.xpose.msra.mxu0 0.0
    %334 = vmatpush.xpose.msra.mxu0 0.0
    %335 = vmatpush.xpose.msra.mxu0 0.0
    %336 = vmatpush.xpose.msra.mxu0 0.0
    %337 = vmatpush.xpose.msra.mxu0 0.0
    %338 = vmatpush.xpose.msra.mxu0 0.0
    %339 = vmatpush.xpose.msra.mxu0 0.0
    %340 = vmatpush.xpose.msra.mxu0 %v323
    %341 = vmatmul.f32.gmra.mxu0 %v321
    %v342 = vpop.f32.mrf.mxu0
    %v343 = vadd.f32 0.0, %v342
    %344 = vdwg.mxu0
    %v345 = vmul.f32 %v343, 0.35355338
    %v346 = vsel %vm252, %v345, -inf
    %347 = vmax.xlane.f32.xlu0 %v346
    %v348 = vpop.xlane.xlu0 %347
    %v349 = vsub.f32 %v345, %v348
    %v350 = vmul.f32 %v349, 1.442695
    %v351 = vpow.pop %v350
    %v352 = vsel %vm252, %v351, 0.0
    %353 = vadd.xlane.f32.xlu0 %v352
    %v354 = vpop.xlane.xlu0 %353
    %v355 = vrcp.pop %v354
    %v356 = vmul.f32 %v351, %v355
    %357 = vrot.lane.b32.xlu0 %v247, 88
    %v358 = vpop.permute.xlu0 %357
    %v361 = vsel %vm252, %v356, 0
    %363 = vmatpush.msra.mxu0 0.0
    %364 = vmatpush.msra.mxu0 0.0
    %365 = vmatpush.msra.mxu0 0.0
    %366 = vmatpush.msra.mxu0 0.0
    %367 = vmatpush.msra.mxu0 0.0
    %368 = vmatpush.msra.mxu0 0.0
    %369 = vmatpush.msra.mxu0 0.0
    %370 = vmatpush.msra.mxu0 0.0
    %371 = vmatpush.msra.mxu0 0.0
    %372 = vmatpush.msra.mxu0 0.0
    %373 = vmatpush.msra.mxu0 0.0
    %374 = vmatpush.msra.mxu0 0.0
    %375 = vmatpush.msra.mxu0 0.0
    %376 = vmatpush.msra.mxu0 0.0
    %377 = vmatpush.msra.mxu0 0.0
    %378 = vmatpush.msra.mxu0 %v358
    %379 = vmatmul.f32.gmra.mxu0 %v361
    %v380 = vpop.f32.mrf.mxu0
    %v381 = vadd.f32 0.0, %v380
    %382 = vdwg.mxu0
    %v384 = vsel %vm252, %v381, 0
    %386 = vmatpush.msra.mxu0 0.0
    %387 = vmatpush.msra.mxu0 0.0
    %388 = vmatpush.msra.mxu0 0.0
    %389 = vmatpush.msra.mxu0 0.0
    %390 = vmatpush.msra.mxu0 0.0
    %391 = vmatpush.msra.mxu0 0.0
    %392 = vmatpush.msra.mxu0 0.0
    %393 = vmatpush.msra.mxu0 0.0
    %394 = vmatpush.msra.mxu0 0.0
    %395 = vmatpush.msra.mxu0 0.0
    %396 = vmatpush.msra.mxu0 0.0
    %397 = vmatpush.msra.mxu0 0.0
    %398 = vmatpush.msra.mxu0 0.0
    %399 = vmatpush.msra.mxu0 0.0
    %400 = vmatpush.msra.mxu0 0.0
    %401 = vmatpush.msra.mxu0 %v187
    %402 = vmatmul.f32.gmra.mxu0 %v384
    %v403 = vpop.f32.mrf.mxu0
    %v404 = vadd.f32 0.0, %v403
    %405 = vdwg.mxu0
    %v407 = vsel %vm252, %v315, 0
    %409 = vmatpush.msra.mxu0 0.0
    %410 = vmatpush.msra.mxu0 0.0
    %411 = vmatpush.msra.mxu0 0.0
    %412 = vmatpush.msra.mxu0 0.0
    %413 = vmatpush.msra.mxu0 0.0
    %414 = vmatpush.msra.mxu0 0.0
    %415 = vmatpush.msra.mxu0 0.0
    %416 = vmatpush.msra.mxu0 0.0
    %417 = vmatpush.msra.mxu0 0.0
    %418 = vmatpush.msra.mxu0 0.0
    %419 = vmatpush.msra.mxu0 0.0
    %420 = vmatpush.msra.mxu0 0.0
    %421 = vmatpush.msra.mxu0 0.0
    %422 = vmatpush.msra.mxu0 0.0
    %423 = vmatpush.msra.mxu0 0.0
    %424 = vmatpush.msra.mxu0 %v186
    %425 = vmatmul.f32.gmra.mxu0 %v407
    %v426 = vpop.f32.mrf.mxu0
    %v427 = vadd.f32 %v404, %v426
    %428 = vdwg.mxu0
    %429 = vrot.lane.b32.xlu0 %v221, 112
    %v430 = vpop.permute.xlu0 %429
    %431 = vrot.lane.b32.xlu0 %v247, 112
    %v432 = vpop.permute.xlu0 %431
    %v433 = vsel %vm252, %v430, 0
    %v435 = vsel %vm252, %v432, 0
    %437 = vmatpush.xpose.msra.mxu0 0.0
    %438 = vmatpush.xpose.msra.mxu0 0.0
    %439 = vmatpush.xpose.msra.mxu0 0.0
    %440 = vmatpush.xpose.msra.mxu0 0.0
    %441 = vmatpush.xpose.msra.mxu0 0.0
    %442 = vmatpush.xpose.msra.mxu0 0.0
    %443 = vmatpush.xpose.msra.mxu0 0.0
    %444 = vmatpush.xpose.msra.mxu0 0.0
    %445 = vmatpush.xpose.msra.mxu0 0.0
    %446 = vmatpush.xpose.msra.mxu0 0.0
    %447 = vmatpush.xpose.msra.mxu0 0.0
    %448 = vmatpush.xpose.msra.mxu0 0.0
    %449 = vmatpush.xpose.msra.mxu0 0.0
    %450 = vmatpush.xpose.msra.mxu0 0.0
    %451 = vmatpush.xpose.msra.mxu0 0.0
    %452 = vmatpush.xpose.msra.mxu0 %v435
    %453 = vmatmul.f32.gmra.mxu0 %v433
    %v454 = vpop.f32.mrf.mxu0
    %v455 = vadd.f32 0.0, %v454
    %456 = vdwg.mxu0
    %v457 = vmul.f32 %v455, 0.35355338
    %v458 = vsel %vm252, %v457, -inf
    %459 = vmax.xlane.f32.xlu0 %v458
    %v460 = vpop.xlane.xlu0 %459
    %v461 = vsub.f32 %v457, %v460
    %v462 = vmul.f32 %v461, 1.442695
    %v463 = vpow.pop %v462
    %v464 = vsel %vm252, %v463, 0.0
    %465 = vadd.xlane.f32.xlu0 %v464
    %v466 = vpop.xlane.xlu0 %465
    %v467 = vrcp.pop %v466
    %v468 = vmul.f32 %v463, %v467
    %469 = vrot.lane.b32.xlu0 %v247, 80
    %v470 = vpop.permute.xlu0 %469
    %v473 = vsel %vm252, %v468, 0
    %475 = vmatpush.msra.mxu0 0.0
    %476 = vmatpush.msra.mxu0 0.0
    %477 = vmatpush.msra.mxu0 0.0
    %478 = vmatpush.msra.mxu0 0.0
    %479 = vmatpush.msra.mxu0 0.0
    %480 = vmatpush.msra.mxu0 0.0
    %481 = vmatpush.msra.mxu0 0.0
    %482 = vmatpush.msra.mxu0 0.0
    %483 = vmatpush.msra.mxu0 0.0
    %484 = vmatpush.msra.mxu0 0.0
    %485 = vmatpush.msra.mxu0 0.0
    %486 = vmatpush.msra.mxu0 0.0
    %487 = vmatpush.msra.mxu0 0.0
    %488 = vmatpush.msra.mxu0 0.0
    %489 = vmatpush.msra.mxu0 0.0
    %490 = vmatpush.msra.mxu0 %v470
    %491 = vmatmul.f32.gmra.mxu0 %v473
    %v492 = vpop.f32.mrf.mxu0
    %v493 = vadd.f32 0.0, %v492
    %494 = vdwg.mxu0
    %v496 = vsel %vm252, %v493, 0
    %498 = vmatpush.msra.mxu0 0.0
    %499 = vmatpush.msra.mxu0 0.0
    %500 = vmatpush.msra.mxu0 0.0
    %501 = vmatpush.msra.mxu0 0.0
    %502 = vmatpush.msra.mxu0 0.0
    %503 = vmatpush.msra.mxu0 0.0
    %504 = vmatpush.msra.mxu0 0.0
    %505 = vmatpush.msra.mxu0 0.0
    %506 = vmatpush.msra.mxu0 0.0
    %507 = vmatpush.msra.mxu0 0.0
    %508 = vmatpush.msra.mxu0 0.0
    %509 = vmatpush.msra.mxu0 0.0
    %510 = vmatpush.msra.mxu0 0.0
    %511 = vmatpush.msra.mxu0 0.0
    %512 = vmatpush.msra.mxu0 0.0
    %513 = vmatpush.msra.mxu0 %v188
    %514 = vmatmul.f32.gmra.mxu0 %v496
    %v515 = vpop.f32.mrf.mxu0
    %v516 = vadd.f32 0.0, %v515
    %517 = vdwg.mxu0
    %v518 = vadd.f32 %v427, %v516
    %519 = vrot.lane.b32.xlu0 %v221, 104
    %v520 = vpop.permute.xlu0 %519
    %521 = vrot.lane.b32.xlu0 %v247, 104
    %v522 = vpop.permute.xlu0 %521
    %v523 = vsel %vm252, %v520, 0
    %v525 = vsel %vm252, %v522, 0
    %527 = vmatpush.xpose.msra.mxu0 0.0
    %528 = vmatpush.xpose.msra.mxu0 0.0
    %529 = vmatpush.xpose.msra.mxu0 0.0
    %530 = vmatpush.xpose.msra.mxu0 0.0
    %531 = vmatpush.xpose.msra.mxu0 0.0
    %532 = vmatpush.xpose.msra.mxu0 0.0
    %533 = vmatpush.xpose.msra.mxu0 0.0
    %534 = vmatpush.xpose.msra.mxu0 0.0
    %535 = vmatpush.xpose.msra.mxu0 0.0
    %536 = vmatpush.xpose.msra.mxu0 0.0
    %537 = vmatpush.xpose.msra.mxu0 0.0
    %538 = vmatpush.xpose.msra.mxu0 0.0
    %539 = vmatpush.xpose.msra.mxu0 0.0
    %540 = vmatpush.xpose.msra.mxu0 0.0
    %541 = vmatpush.xpose.msra.mxu0 0.0
    %542 = vmatpush.xpose.msra.mxu0 %v525
    %543 = vmatmul.f32.gmra.mxu0 %v523
    %v544 = vpop.f32.mrf.mxu0
    %v545 = vadd.f32 0.0, %v544
    %546 = vdwg.mxu0
    %v547 = vmul.f32 %v545, 0.35355338
    %v548 = vsel %vm252, %v547, -inf
    %549 = vmax.xlane.f32.xlu0 %v548
    %v550 = vpop.xlane.xlu0 %549
    %v551 = vsub.f32 %v547, %v550
    %v552 = vmul.f32 %v551, 1.442695
    %v553 = vpow.pop %v552
    %v554 = vsel %vm252, %v553, 0.0
    %555 = vadd.xlane.f32.xlu0 %v554
    %v556 = vpop.xlane.xlu0 %555
    %v557 = vrcp.pop %v556
    %v558 = vmul.f32 %v553, %v557
    %559 = vrot.lane.b32.xlu0 %v247, 72
    %v560 = vpop.permute.xlu0 %559
    %v563 = vsel %vm252, %v558, 0
    %565 = vmatpush.msra.mxu0 0.0
    %566 = vmatpush.msra.mxu0 0.0
    %567 = vmatpush.msra.mxu0 0.0
    %568 = vmatpush.msra.mxu0 0.0
    %569 = vmatpush.msra.mxu0 0.0
    %570 = vmatpush.msra.mxu0 0.0
    %571 = vmatpush.msra.mxu0 0.0
    %572 = vmatpush.msra.mxu0 0.0
    %573 = vmatpush.msra.mxu0 0.0
    %574 = vmatpush.msra.mxu0 0.0
    %575 = vmatpush.msra.mxu0 0.0
    %576 = vmatpush.msra.mxu0 0.0
    %577 = vmatpush.msra.mxu0 0.0
    %578 = vmatpush.msra.mxu0 0.0
    %579 = vmatpush.msra.mxu0 0.0
    %580 = vmatpush.msra.mxu0 %v560
    %581 = vmatmul.f32.gmra.mxu0 %v563
    %v582 = vpop.f32.mrf.mxu0
    %v583 = vadd.f32 0.0, %v582
    %584 = vdwg.mxu0
    %v586 = vsel %vm252, %v583, 0
    %588 = vmatpush.msra.mxu0 0.0
    %589 = vmatpush.msra.mxu0 0.0
    %590 = vmatpush.msra.mxu0 0.0
    %591 = vmatpush.msra.mxu0 0.0
    %592 = vmatpush.msra.mxu0 0.0
    %593 = vmatpush.msra.mxu0 0.0
    %594 = vmatpush.msra.mxu0 0.0
    %595 = vmatpush.msra.mxu0 0.0
    %596 = vmatpush.msra.mxu0 0.0
    %597 = vmatpush.msra.mxu0 0.0
    %598 = vmatpush.msra.mxu0 0.0
    %599 = vmatpush.msra.mxu0 0.0
    %600 = vmatpush.msra.mxu0 0.0
    %601 = vmatpush.msra.mxu0 0.0
    %602 = vmatpush.msra.mxu0 0.0
    %603 = vmatpush.msra.mxu0 %v189
    %604 = vmatmul.f32.gmra.mxu0 %v586
    %v605 = vpop.f32.mrf.mxu0
    %v606 = vadd.f32 0.0, %v605
    %607 = vdwg.mxu0
    %v608 = vadd.f32 %v518, %v606
    %v610 = vsel %vm252, %v224, 0
    %v613 = vsel %vm252, %v250, 0
    %615 = vmatpush.xpose.msra.mxu0 0.0
    %616 = vmatpush.xpose.msra.mxu0 0.0
    %617 = vmatpush.xpose.msra.mxu0 0.0
    %618 = vmatpush.xpose.msra.mxu0 0.0
    %619 = vmatpush.xpose.msra.mxu0 0.0
    %620 = vmatpush.xpose.msra.mxu0 0.0
    %621 = vmatpush.xpose.msra.mxu0 0.0
    %622 = vmatpush.xpose.msra.mxu0 0.0
    %623 = vmatpush.xpose.msra.mxu0 0.0
    %624 = vmatpush.xpose.msra.mxu0 0.0
    %625 = vmatpush.xpose.msra.mxu0 0.0
    %626 = vmatpush.xpose.msra.mxu0 0.0
    %627 = vmatpush.xpose.msra.mxu0 0.0
    %628 = vmatpush.xpose.msra.mxu0 0.0
    %629 = vmatpush.xpose.msra.mxu0 0.0
    %630 = vmatpush.xpose.msra.mxu0 %v613
    %631 = vmatmul.f32.gmra.mxu0 %v610
    %v632 = vpop.f32.mrf.mxu0
    %v633 = vadd.f32 0.0, %v632
    %634 = vdwg.mxu0
    %v635 = vmul.f32 %v633, 0.35355338
    %v636 = vsel %vm252, %v635, -inf
    %637 = vmax.xlane.f32.xlu0 %v636
    %v638 = vpop.xlane.xlu0 %637
    %v639 = vsub.f32 %v635, %v638
    %v640 = vmul.f32 %v639, 1.442695
    %v641 = vpow.pop %v640
    %v642 = vsel %vm252, %v641, 0.0
    %643 = vadd.xlane.f32.xlu0 %v642
    %v644 = vpop.xlane.xlu0 %643
    %v645 = vrcp.pop %v644
    %v646 = vmul.f32 %v641, %v645
    %647 = vrot.lane.b32.xlu0 %v250, 96
    %v648 = vpop.permute.xlu0 %647
    %v651 = vsel %vm252, %v646, 0
    %653 = vmatpush.msra.mxu0 0.0
    %654 = vmatpush.msra.mxu0 0.0
    %655 = vmatpush.msra.mxu0 0.0
    %656 = vmatpush.msra.mxu0 0.0
    %657 = vmatpush.msra.mxu0 0.0
    %658 = vmatpush.msra.mxu0 0.0
    %659 = vmatpush.msra.mxu0 0.0
    %660 = vmatpush.msra.mxu0 0.0
    %661 = vmatpush.msra.mxu0 0.0
    %662 = vmatpush.msra.mxu0 0.0
    %663 = vmatpush.msra.mxu0 0.0
    %664 = vmatpush.msra.mxu0 0.0
    %665 = vmatpush.msra.mxu0 0.0
    %666 = vmatpush.msra.mxu0 0.0
    %667 = vmatpush.msra.mxu0 0.0
    %668 = vmatpush.msra.mxu0 %v648
    %669 = vmatmul.f32.gmra.mxu0 %v651
    %v670 = vpop.f32.mrf.mxu0
    %v671 = vadd.f32 0.0, %v670
    %672 = vdwg.mxu0
    %673 = vrot.lane.b32.xlu0 %v224, 120
    %v674 = vpop.permute.xlu0 %673
    %675 = vrot.lane.b32.xlu0 %v250, 120
    %v676 = vpop.permute.xlu0 %675
    %v677 = vsel %vm252, %v674, 0
    %v679 = vsel %vm252, %v676, 0
    %681 = vmatpush.xpose.msra.mxu0 0.0
    %682 = vmatpush.xpose.msra.mxu0 0.0
    %683 = vmatpush.xpose.msra.mxu0 0.0
    %684 = vmatpush.xpose.msra.mxu0 0.0
    %685 = vmatpush.xpose.msra.mxu0 0.0
    %686 = vmatpush.xpose.msra.mxu0 0.0
    %687 = vmatpush.xpose.msra.mxu0 0.0
    %688 = vmatpush.xpose.msra.mxu0 0.0
    %689 = vmatpush.xpose.msra.mxu0 0.0
    %690 = vmatpush.xpose.msra.mxu0 0.0
    %691 = vmatpush.xpose.msra.mxu0 0.0
    %692 = vmatpush.xpose.msra.mxu0 0.0
    %693 = vmatpush.xpose.msra.mxu0 0.0
    %694 = vmatpush.xpose.msra.mxu0 0.0
    %695 = vmatpush.xpose.msra.mxu0 0.0
    %696 = vmatpush.xpose.msra.mxu0 %v679
    %697 = vmatmul.f32.gmra.mxu0 %v677
    %v698 = vpop.f32.mrf.mxu0
    %v699 = vadd.f32 0.0, %v698
    %700 = vdwg.mxu0
    %v701 = vmul.f32 %v699, 0.35355338
    %v702 = vsel %vm252, %v701, -inf
    %703 = vmax.xlane.f32.xlu0 %v702
    %v704 = vpop.xlane.xlu0 %703
    %v705 = vsub.f32 %v701, %v704
    %v706 = vmul.f32 %v705, 1.442695
    %v707 = vpow.pop %v706
    %v708 = vsel %vm252, %v707, 0.0
    %709 = vadd.xlane.f32.xlu0 %v708
    %v710 = vpop.xlane.xlu0 %709
    %v711 = vrcp.pop %v710
    %v712 = vmul.f32 %v707, %v711
    %713 = vrot.lane.b32.xlu0 %v250, 88
    %v714 = vpop.permute.xlu0 %713
    %v717 = vsel %vm252, %v712, 0
    %719 = vmatpush.msra.mxu0 0.0
    %720 = vmatpush.msra.mxu0 0.0
    %721 = vmatpush.msra.mxu0 0.0
    %722 = vmatpush.msra.mxu0 0.0
    %723 = vmatpush.msra.mxu0 0.0
    %724 = vmatpush.msra.mxu0 0.0
    %725 = vmatpush.msra.mxu0 0.0
    %726 = vmatpush.msra.mxu0 0.0
    %727 = vmatpush.msra.mxu0 0.0
    %728 = vmatpush.msra.mxu0 0.0
    %729 = vmatpush.msra.mxu0 0.0
    %730 = vmatpush.msra.mxu0 0.0
    %731 = vmatpush.msra.mxu0 0.0
    %732 = vmatpush.msra.mxu0 0.0
    %733 = vmatpush.msra.mxu0 0.0
    %734 = vmatpush.msra.mxu0 %v714
    %735 = vmatmul.f32.gmra.mxu0 %v717
    %v736 = vpop.f32.mrf.mxu0
    %v737 = vadd.f32 0.0, %v736
    %738 = vdwg.mxu0
    %v740 = vsel %vm252, %v737, 0
    %742 = vmatpush.msra.mxu0 0.0
    %743 = vmatpush.msra.mxu0 0.0
    %744 = vmatpush.msra.mxu0 0.0
    %745 = vmatpush.msra.mxu0 0.0
    %746 = vmatpush.msra.mxu0 0.0
    %747 = vmatpush.msra.mxu0 0.0
    %748 = vmatpush.msra.mxu0 0.0
    %749 = vmatpush.msra.mxu0 0.0
    %750 = vmatpush.msra.mxu0 0.0
    %751 = vmatpush.msra.mxu0 0.0
    %752 = vmatpush.msra.mxu0 0.0
    %753 = vmatpush.msra.mxu0 0.0
    %754 = vmatpush.msra.mxu0 0.0
    %755 = vmatpush.msra.mxu0 0.0
    %756 = vmatpush.msra.mxu0 0.0
    %757 = vmatpush.msra.mxu0 %v187
    %758 = vmatmul.f32.gmra.mxu0 %v740
    %v759 = vpop.f32.mrf.mxu0
    %v760 = vadd.f32 0.0, %v759
    %761 = vdwg.mxu0
    %v763 = vsel %vm252, %v671, 0
    %765 = vmatpush.msra.mxu0 0.0
    %766 = vmatpush.msra.mxu0 0.0
    %767 = vmatpush.msra.mxu0 0.0
    %768 = vmatpush.msra.mxu0 0.0
    %769 = vmatpush.msra.mxu0 0.0
    %770 = vmatpush.msra.mxu0 0.0
    %771 = vmatpush.msra.mxu0 0.0
    %772 = vmatpush.msra.mxu0 0.0
    %773 = vmatpush.msra.mxu0 0.0
    %774 = vmatpush.msra.mxu0 0.0
    %775 = vmatpush.msra.mxu0 0.0
    %776 = vmatpush.msra.mxu0 0.0
    %777 = vmatpush.msra.mxu0 0.0
    %778 = vmatpush.msra.mxu0 0.0
    %779 = vmatpush.msra.mxu0 0.0
    %780 = vmatpush.msra.mxu0 %v186
    %781 = vmatmul.f32.gmra.mxu0 %v763
    %v782 = vpop.f32.mrf.mxu0
    %v783 = vadd.f32 %v760, %v782
    %784 = vdwg.mxu0
    %785 = vrot.lane.b32.xlu0 %v224, 112
    %v786 = vpop.permute.xlu0 %785
    %787 = vrot.lane.b32.xlu0 %v250, 112
    %v788 = vpop.permute.xlu0 %787
    %v789 = vsel %vm252, %v786, 0
    %v791 = vsel %vm252, %v788, 0
    %793 = vmatpush.xpose.msra.mxu0 0.0
    %794 = vmatpush.xpose.msra.mxu0 0.0
    %795 = vmatpush.xpose.msra.mxu0 0.0
    %796 = vmatpush.xpose.msra.mxu0 0.0
    %797 = vmatpush.xpose.msra.mxu0 0.0
    %798 = vmatpush.xpose.msra.mxu0 0.0
    %799 = vmatpush.xpose.msra.mxu0 0.0
    %800 = vmatpush.xpose.msra.mxu0 0.0
    %801 = vmatpush.xpose.msra.mxu0 0.0
    %802 = vmatpush.xpose.msra.mxu0 0.0
    %803 = vmatpush.xpose.msra.mxu0 0.0
    %804 = vmatpush.xpose.msra.mxu0 0.0
    %805 = vmatpush.xpose.msra.mxu0 0.0
    %806 = vmatpush.xpose.msra.mxu0 0.0
    %807 = vmatpush.xpose.msra.mxu0 0.0
    %808 = vmatpush.xpose.msra.mxu0 %v791
    %809 = vmatmul.f32.gmra.mxu0 %v789
    %v810 = vpop.f32.mrf.mxu0
    %v811 = vadd.f32 0.0, %v810
    %812 = vdwg.mxu0
    %v813 = vmul.f32 %v811, 0.35355338
    %v814 = vsel %vm252, %v813, -inf
    %815 = vmax.xlane.f32.xlu0 %v814
    %v816 = vpop.xlane.xlu0 %815
    %v817 = vsub.f32 %v813, %v816
    %v818 = vmul.f32 %v817, 1.442695
    %v819 = vpow.pop %v818
    %v820 = vsel %vm252, %v819, 0.0
    %821 = vadd.xlane.f32.xlu0 %v820
    %v822 = vpop.xlane.xlu0 %821
    %v823 = vrcp.pop %v822
    %v824 = vmul.f32 %v819, %v823
    %825 = vrot.lane.b32.xlu0 %v250, 80
    %v826 = vpop.permute.xlu0 %825
    %v829 = vsel %vm252, %v824, 0
    %831 = vmatpush.msra.mxu0 0.0
    %832 = vmatpush.msra.mxu0 0.0
    %833 = vmatpush.msra.mxu0 0.0
    %834 = vmatpush.msra.mxu0 0.0
    %835 = vmatpush.msra.mxu0 0.0
    %836 = vmatpush.msra.mxu0 0.0
    %837 = vmatpush.msra.mxu0 0.0
    %838 = vmatpush.msra.mxu0 0.0
    %839 = vmatpush.msra.mxu0 0.0
    %840 = vmatpush.msra.mxu0 0.0
    %841 = vmatpush.msra.mxu0 0.0
    %842 = vmatpush.msra.mxu0 0.0
    %843 = vmatpush.msra.mxu0 0.0
    %844 = vmatpush.msra.mxu0 0.0
    %845 = vmatpush.msra.mxu0 0.0
    %846 = vmatpush.msra.mxu0 %v826
    %847 = vmatmul.f32.gmra.mxu0 %v829
    %v848 = vpop.f32.mrf.mxu0
    %v849 = vadd.f32 0.0, %v848
    %850 = vdwg.mxu0
    %v852 = vsel %vm252, %v849, 0
    %854 = vmatpush.msra.mxu0 0.0
    %855 = vmatpush.msra.mxu0 0.0
    %856 = vmatpush.msra.mxu0 0.0
    %857 = vmatpush.msra.mxu0 0.0
    %858 = vmatpush.msra.mxu0 0.0
    %859 = vmatpush.msra.mxu0 0.0
    %860 = vmatpush.msra.mxu0 0.0
    %861 = vmatpush.msra.mxu0 0.0
    %862 = vmatpush.msra.mxu0 0.0
    %863 = vmatpush.msra.mxu0 0.0
    %864 = vmatpush.msra.mxu0 0.0
    %865 = vmatpush.msra.mxu0 0.0
    %866 = vmatpush.msra.mxu0 0.0
    %867 = vmatpush.msra.mxu0 0.0
    %868 = vmatpush.msra.mxu0 0.0
    %869 = vmatpush.msra.mxu0 %v188
    %870 = vmatmul.f32.gmra.mxu0 %v852
    %v871 = vpop.f32.mrf.mxu0
    %v872 = vadd.f32 0.0, %v871
    %873 = vdwg.mxu0
    %v874 = vadd.f32 %v783, %v872
    %875 = vrot.lane.b32.xlu0 %v224, 104
    %v876 = vpop.permute.xlu0 %875
    %877 = vrot.lane.b32.xlu0 %v250, 104
    %v878 = vpop.permute.xlu0 %877
    %v879 = vsel %vm252, %v876, 0
    %v881 = vsel %vm252, %v878, 0
    %883 = vmatpush.xpose.msra.mxu0 0.0
    %884 = vmatpush.xpose.msra.mxu0 0.0
    %885 = vmatpush.xpose.msra.mxu0 0.0
    %886 = vmatpush.xpose.msra.mxu0 0.0
    %887 = vmatpush.xpose.msra.mxu0 0.0
    %888 = vmatpush.xpose.msra.mxu0 0.0
    %889 = vmatpush.xpose.msra.mxu0 0.0
    %890 = vmatpush.xpose.msra.mxu0 0.0
    %891 = vmatpush.xpose.msra.mxu0 0.0
    %892 = vmatpush.xpose.msra.mxu0 0.0
    %893 = vmatpush.xpose.msra.mxu0 0.0
    %894 = vmatpush.xpose.msra.mxu0 0.0
    %895 = vmatpush.xpose.msra.mxu0 0.0
    %896 = vmatpush.xpose.msra.mxu0 0.0
    %897 = vmatpush.xpose.msra.mxu0 0.0
    %898 = vmatpush.xpose.msra.mxu0 %v881
    %899 = vmatmul.f32.gmra.mxu0 %v879
    %v900 = vpop.f32.mrf.mxu0
    %v901 = vadd.f32 0.0, %v900
    %902 = vdwg.mxu0
    %v903 = vmul.f32 %v901, 0.35355338
    %v904 = vsel %vm252, %v903, -inf
    %905 = vmax.xlane.f32.xlu0 %v904
    %v906 = vpop.xlane.xlu0 %905
    %v907 = vsub.f32 %v903, %v906
    %v908 = vmul.f32 %v907, 1.442695
    %v909 = vpow.pop %v908
    %v910 = vsel %vm252, %v909, 0.0
    %911 = vadd.xlane.f32.xlu0 %v910
    %v912 = vpop.xlane.xlu0 %911
    %v913 = vrcp.pop %v912
    %v914 = vmul.f32 %v909, %v913
    %915 = vrot.lane.b32.xlu0 %v250, 72
    %v916 = vpop.permute.xlu0 %915
    %v919 = vsel %vm252, %v914, 0
    %921 = vmatpush.msra.mxu0 0.0
    %922 = vmatpush.msra.mxu0 0.0
    %923 = vmatpush.msra.mxu0 0.0
    %924 = vmatpush.msra.mxu0 0.0
    %925 = vmatpush.msra.mxu0 0.0
    %926 = vmatpush.msra.mxu0 0.0
    %927 = vmatpush.msra.mxu0 0.0
    %928 = vmatpush.msra.mxu0 0.0
    %929 = vmatpush.msra.mxu0 0.0
    %930 = vmatpush.msra.mxu0 0.0
    %931 = vmatpush.msra.mxu0 0.0
    %932 = vmatpush.msra.mxu0 0.0
    %933 = vmatpush.msra.mxu0 0.0
    %934 = vmatpush.msra.mxu0 0.0
    %935 = vmatpush.msra.mxu0 0.0
    %936 = vmatpush.msra.mxu0 %v916
    %937 = vmatmul.f32.gmra.mxu0 %v919
    %v938 = vpop.f32.mrf.mxu0
    %v939 = vadd.f32 0.0, %v938
    %940 = vdwg.mxu0
    %v942 = vsel %vm252, %v939, 0
    %944 = vmatpush.msra.mxu0 0.0
    %945 = vmatpush.msra.mxu0 0.0
    %946 = vmatpush.msra.mxu0 0.0
    %947 = vmatpush.msra.mxu0 0.0
    %948 = vmatpush.msra.mxu0 0.0
    %949 = vmatpush.msra.mxu0 0.0
    %950 = vmatpush.msra.mxu0 0.0
    %951 = vmatpush.msra.mxu0 0.0
    %952 = vmatpush.msra.mxu0 0.0
    %953 = vmatpush.msra.mxu0 0.0
    %954 = vmatpush.msra.mxu0 0.0
    %955 = vmatpush.msra.mxu0 0.0
    %956 = vmatpush.msra.mxu0 0.0
    %957 = vmatpush.msra.mxu0 0.0
    %958 = vmatpush.msra.mxu0 0.0
    %959 = vmatpush.msra.mxu0 %v189
    %960 = vmatmul.f32.gmra.mxu0 %v942
    %v961 = vpop.f32.mrf.mxu0
    %v962 = vadd.f32 0.0, %v961
    %963 = vdwg.mxu0
    %v964 = vadd.f32 %v874, %v962
    %v966 = vperm.slane %v190, 0
    %v968 = vadd.f32 %v608, %v966
    %v969 = vadd.f32 %v964, %v966
    %v970 = vadd.f32 %v172, %v968
    %v971 = vadd.f32 %v173, %v969
    %v972 = vsel %vm196, %v970, 0.0
    %973 = vadd.xlane.f32.xlu0 %v972
    %v974 = vpop.xlane.xlu0 %973
    %v975 = vsel %vm196, %v971, 0.0
    %976 = vadd.xlane.f32.xlu0 %v975
    %v977 = vpop.xlane.xlu0 %976
    %v978 = vrcp.pop 32.0
    %v979 = vmul.f32 32.0, %v978
    %v980 = vsub.f32 1.0, %v979
    %v981 = vmul.f32 %v978, %v980
    %v982 = vadd.f32 %v978, %v981
    %vm983 = vweird.f32 %v978
    %v984 = vsel %vm983, %v978, %v982
    %v985 = vmul.f32 %v974, %v984
    %v986 = vmul.f32 %v977, %v984
    %v987 = vsub.f32 %v970, %v985
    %v988 = vsub.f32 %v971, %v986
    %v989 = vmul.f32 %v987, %v987
    %v990 = vmul.f32 %v988, %v988
    %v991 = vsel %vm196, %v989, 0.0
    %992 = vadd.xlane.f32.xlu0 %v991
    %v993 = vpop.xlane.xlu0 %992
    %v994 = vsel %vm196, %v990, 0.0
    %995 = vadd.xlane.f32.xlu0 %v994
    %v996 = vpop.xlane.xlu0 %995
    %v997 = vmul.f32 %v993, %v984
    %v998 = vmul.f32 %v996, %v984
    %v999 = vadd.f32 %v997, 1e-05
    %v1000 = vadd.f32 %v998, 1e-05
    %v1001 = vrsqrt.pop %v999
    %v1002 = vmul.f32 %v1001, %v999
    %v1003 = vmul.f32 %v1002, %v1001
    %v1004 = vmul.f32 0.5, %v1003
    %v1005 = vsub.f32 1.5, %v1004
    %v1006 = vmul.f32 %v1001, %v1005
    %vm1007 = vweird.f32 %v999
    %vm1008 = vweird.f32 %v1001
    %vm1009 = vmor %vm1007, %vm1008
    %v1010 = vsel %vm1009, %v1001, %v1006
    %v1011 = vrsqrt.pop %v1000
    %v1012 = vmul.f32 %v1011, %v1000
    %v1013 = vmul.f32 %v1012, %v1011
    %v1014 = vmul.f32 0.5, %v1013
    %v1015 = vsub.f32 1.5, %v1014
    %v1016 = vmul.f32 %v1011, %v1015
    %vm1017 = vweird.f32 %v1000
    %vm1018 = vweird.f32 %v1011
    %vm1019 = vmor %vm1017, %vm1018
    %v1020 = vsel %vm1019, %v1011, %v1016
    %v1021 = vmul.f32 %v987, %v1010
    %v1022 = vmul.f32 %v988, %v1020
    %v1024 = vperm.slane %v191, 0
    %v1026 = vmul.f32 %v1021, %v1024
    %v1027 = vmul.f32 %v1022, %v1024
    %v1029 = vperm.slane %v192, 0
    %v1031 = vadd.f32 %v1026, %v1029
    %v1032 = vadd.f32 %v1027, %v1029
    %v1033 = vld [vmem:[#allocation7] sm:$0xff]
    %v1034 = vld [vmem:[#allocation7 + $0x8] sm:$0xff]
    %v1035 = vld [vmem:[#allocation7 + $0x10] sm:$0xff]
    %v1036 = vld [vmem:[#allocation7 + $0x18] sm:$0xff]
    %v1037 = vld [vmem:[%s11] sm:$0x1]
    %v1038 = vld [vmem:[#allocation8] sm:$0xff]
    %v1039 = vld [vmem:[#allocation8 + $0x8] sm:$0xff]
    %v1040 = vld [vmem:[#allocation8 + $0x10] sm:$0xff]
    %v1041 = vld [vmem:[#allocation8 + $0x18] sm:$0xff]
    %v1042 = vld [vmem:[%s13] sm:$0x1]
    %v1043 = vld [vmem:[#allocation10] sm:$0xff]
    %v1044 = vld [vmem:[#allocation10 + $0x8] sm:$0xff]
    %v1045 = vld [vmem:[#allocation10 + $0x10] sm:$0xff]
    %v1046 = vld [vmem:[#allocation10 + $0x18] sm:$0xff]
    %v1047 = vld [vmem:[%s15] sm:$0x1]
    %v1048 = vld [vmem:[%s16] sm:$0x1]
    %v1049 = vld [vmem:[%s17] sm:$0x1]
    %v1051 = vperm.slane %v1037, 0
    %v1054 = vsel %vm196, %v1031, 0
    %v1057 = vsel %vm196, %v1032, 0
    %1059 = vmatpush.msra.mxu0 0.0
    %1060 = vmatpush.msra.mxu0 0.0
    %1061 = vmatpush.msra.mxu0 0.0
    %1062 = vmatpush.msra.mxu0 0.0
    %1063 = vmatpush.msra.mxu0 0.0
    %1064 = vmatpush.msra.mxu0 0.0
    %1065 = vmatpush.msra.mxu0 0.0
    %1066 = vmatpush.msra.mxu0 0.0
    %1067 = vmatpush.msra.mxu0 0.0
    %1068 = vmatpush.msra.mxu0 0.0
    %1069 = vmatpush.msra.mxu0 0.0
    %1070 = vmatpush.msra.mxu0 0.0
    %1071 = vmatpush.msra.mxu0 %v1036
    %1072 = vmatpush.msra.mxu0 %v1035
    %1073 = vmatpush.msra.mxu0 %v1034
    %1074 = vmatpush.msra.mxu0 %v1033
    %1075 = vmatmul.f32.gmra.mxu0 %v1054
    %v1076 = vpop.f32.mrf.mxu0
    %v1077 = vadd.f32 %v1051, %v1076
    %1078 = vmatmul.f32.gmra.mxu0 %v1057
    %v1079 = vpop.f32.mrf.mxu0
    %v1080 = vadd.f32 %v1051, %v1079
    %1081 = vdwg.mxu0
    %v1083 = vperm.slane %v1042, 0
    %v1086 = vsel %vm196, %v174, 0
    %v1089 = vsel %vm196, %v175, 0
    %1091 = vmatpush.msra.mxu0 0.0
    %1092 = vmatpush.msra.mxu0 0.0
    %1093 = vmatpush.msra.mxu0 0.0
    %1094 = vmatpush.msra.mxu0 0.0
    %1095 = vmatpush.msra.mxu0 0.0
    %1096 = vmatpush.msra.mxu0 0.0
    %1097 = vmatpush.msra.mxu0 0.0
    %1098 = vmatpush.msra.mxu0 0.0
    %1099 = vmatpush.msra.mxu0 0.0
    %1100 = vmatpush.msra.mxu0 0.0
    %1101 = vmatpush.msra.mxu0 0.0
    %1102 = vmatpush.msra.mxu0 0.0
    %1103 = vmatpush.msra.mxu0 %v1041
    %1104 = vmatpush.msra.mxu0 %v1040
    %1105 = vmatpush.msra.mxu0 %v1039
    %1106 = vmatpush.msra.mxu0 %v1038
    %1107 = vmatmul.f32.gmra.mxu0 %v1086
    %v1108 = vpop.f32.mrf.mxu0
    %v1109 = vadd.f32 %v1083, %v1108
    %1110 = vmatmul.f32.gmra.mxu0 %v1089
    %v1111 = vpop.f32.mrf.mxu0
    %v1112 = vadd.f32 %v1083, %v1111
    %1113 = vdwg.mxu0
    %v1115 = vsel %vm252, %v1077, 0
    %v1118 = vsel %vm252, %v1109, 0
    %1120 = vmatpush.xpose.msra.mxu0 0.0
    %1121 = vmatpush.xpose.msra.mxu0 0.0
    %1122 = vmatpush.xpose.msra.mxu0 0.0
    %1123 = vmatpush.xpose.msra.mxu0 0.0
    %1124 = vmatpush.xpose.msra.mxu0 0.0
    %1125 = vmatpush.xpose.msra.mxu0 0.0
    %1126 = vmatpush.xpose.msra.mxu0 0.0
    %1127 = vmatpush.xpose.msra.mxu0 0.0
    %1128 = vmatpush.xpose.msra.mxu0 0.0
    %1129 = vmatpush.xpose.msra.mxu0 0.0
    %1130 = vmatpush.xpose.msra.mxu0 0.0
    %1131 = vmatpush.xpose.msra.mxu0 0.0
    %1132 = vmatpush.xpose.msra.mxu0 0.0
    %1133 = vmatpush.xpose.msra.mxu0 0.0
    %1134 = vmatpush.xpose.msra.mxu0 0.0
    %1135 = vmatpush.xpose.msra.mxu0 %v1118
    %1136 = vmatmul.f32.gmra.mxu0 %v1115
    %v1137 = vpop.f32.mrf.mxu0
    %v1138 = vadd.f32 0.0, %v1137
    %1139 = vdwg.mxu0
    %v1140 = vmul.f32 %v1138, 0.35355338
    %v1141 = vsel %vm252, %v1140, -inf
    %1142 = vmax.xlane.f32.xlu0 %v1141
    %v1143 = vpop.xlane.xlu0 %1142
    %v1144 = vsub.f32 %v1140, %v1143
    %v1145 = vmul.f32 %v1144, 1.442695
    %v1146 = vpow.pop %v1145
    %v1147 = vsel %vm252, %v1146, 0.0
    %1148 = vadd.xlane.f32.xlu0 %v1147
    %v1149 = vpop.xlane.xlu0 %1148
    %v1150 = vrcp.pop %v1149
    %v1151 = vmul.f32 %v1146, %v1150
    %1152 = vrot.lane.b32.xlu0 %v1109, 96
    %v1153 = vpop.permute.xlu0 %1152
    %v1156 = vsel %vm252, %v1151, 0
    %1158 = vmatpush.msra.mxu0 0.0
    %1159 = vmatpush.msra.mxu0 0.0
    %1160 = vmatpush.msra.mxu0 0.0
    %1161 = vmatpush.msra.mxu0 0.0
    %1162 = vmatpush.msra.mxu0 0.0
    %1163 = vmatpush.msra.mxu0 0.0
    %1164 = vmatpush.msra.mxu0 0.0
    %1165 = vmatpush.msra.mxu0 0.0
    %1166 = vmatpush.msra.mxu0 0.0
    %1167 = vmatpush.msra.mxu0 0.0
    %1168 = vmatpush.msra.mxu0 0.0
    %1169 = vmatpush.msra.mxu0 0.0
    %1170 = vmatpush.msra.mxu0 0.0
    %1171 = vmatpush.msra.mxu0 0.0
    %1172 = vmatpush.msra.mxu0 0.0
    %1173 = vmatpush.msra.mxu0 %v1153
    %1174 = vmatmul.f32.gmra.mxu0 %v1156
    %v1175 = vpop.f32.mrf.mxu0
    %v1176 = vadd.f32 0.0, %v1175
    %1177 = vdwg.mxu0
    %1178 = vrot.lane.b32.xlu0 %v1077, 120
    %v1179 = vpop.permute.xlu0 %1178
    %1180 = vrot.lane.b32.xlu0 %v1109, 120
    %v1181 = vpop.permute.xlu0 %1180
    %v1182 = vsel %vm252, %v1179, 0
    %v1184 = vsel %vm252, %v1181, 0
    %1186 = vmatpush.xpose.msra.mxu0 0.0
    %1187 = vmatpush.xpose.msra.mxu0 0.0
    %1188 = vmatpush.xpose.msra.mxu0 0.0
    %1189 = vmatpush.xpose.msra.mxu0 0.0
    %1190 = vmatpush.xpose.msra.mxu0 0.0
    %1191 = vmatpush.xpose.msra.mxu0 0.0
    %1192 = vmatpush.xpose.msra.mxu0 0.0
    %1193 = vmatpush.xpose.msra.mxu0 0.0
    %1194 = vmatpush.xpose.msra.mxu0 0.0
    %1195 = vmatpush.xpose.msra.mxu0 0.0
    %1196 = vmatpush.xpose.msra.mxu0 0.0
    %1197 = vmatpush.xpose.msra.mxu0 0.0
    %1198 = vmatpush.xpose.msra.mxu0 0.0
    %1199 = vmatpush.xpose.msra.mxu0 0.0
    %1200 = vmatpush.xpose.msra.mxu0 0.0
    %1201 = vmatpush.xpose.msra.mxu0 %v1184
    %1202 = vmatmul.f32.gmra.mxu0 %v1182
    %v1203 = vpop.f32.mrf.mxu0
    %v1204 = vadd.f32 0.0, %v1203
    %1205 = vdwg.mxu0
    %v1206 = vmul.f32 %v1204, 0.35355338
    %v1207 = vsel %vm252, %v1206, -inf
    %1208 = vmax.xlane.f32.xlu0 %v1207
    %v1209 = vpop.xlane.xlu0 %1208
    %v1210 = vsub.f32 %v1206, %v1209
    %v1211 = vmul.f32 %v1210, 1.442695
    %v1212 = vpow.pop %v1211
    %v1213 = vsel %vm252, %v1212, 0.0
    %1214 = vadd.xlane.f32.xlu0 %v1213
    %v1215 = vpop.xlane.xlu0 %1214
    %v1216 = vrcp.pop %v1215
    %v1217 = vmul.f32 %v1212, %v1216
    %1218 = vrot.lane.b32.xlu0 %v1109, 88
    %v1219 = vpop.permute.xlu0 %1218
    %v1222 = vsel %vm252, %v1217, 0
    %1224 = vmatpush.msra.mxu0 0.0
    %1225 = vmatpush.msra.mxu0 0.0
    %1226 = vmatpush.msra.mxu0 0.0
    %1227 = vmatpush.msra.mxu0 0.0
    %1228 = vmatpush.msra.mxu0 0.0
    %1229 = vmatpush.msra.mxu0 0.0
    %1230 = vmatpush.msra.mxu0 0.0
    %1231 = vmatpush.msra.mxu0 0.0
    %1232 = vmatpush.msra.mxu0 0.0
    %1233 = vmatpush.msra.mxu0 0.0
    %1234 = vmatpush.msra.mxu0 0.0
    %1235 = vmatpush.msra.mxu0 0.0
    %1236 = vmatpush.msra.mxu0 0.0
    %1237 = vmatpush.msra.mxu0 0.0
    %1238 = vmatpush.msra.mxu0 0.0
    %1239 = vmatpush.msra.mxu0 %v1219
    %1240 = vmatmul.f32.gmra.mxu0 %v1222
    %v1241 = vpop.f32.mrf.mxu0
    %v1242 = vadd.f32 0.0, %v1241
    %1243 = vdwg.mxu0
    %v1245 = vsel %vm252, %v1242, 0
    %1247 = vmatpush.msra.mxu0 0.0
    %1248 = vmatpush.msra.mxu0 0.0
    %1249 = vmatpush.msra.mxu0 0.0
    %1250 = vmatpush.msra.mxu0 0.0
    %1251 = vmatpush.msra.mxu0 0.0
    %1252 = vmatpush.msra.mxu0 0.0
    %1253 = vmatpush.msra.mxu0 0.0
    %1254 = vmatpush.msra.mxu0 0.0
    %1255 = vmatpush.msra.mxu0 0.0
    %1256 = vmatpush.msra.mxu0 0.0
    %1257 = vmatpush.msra.mxu0 0.0
    %1258 = vmatpush.msra.mxu0 0.0
    %1259 = vmatpush.msra.mxu0 0.0
    %1260 = vmatpush.msra.mxu0 0.0
    %1261 = vmatpush.msra.mxu0 0.0
    %1262 = vmatpush.msra.mxu0 %v1044
    %1263 = vmatmul.f32.gmra.mxu0 %v1245
    %v1264 = vpop.f32.mrf.mxu0
    %v1265 = vadd.f32 0.0, %v1264
    %1266 = vdwg.mxu0
    %v1268 = vsel %vm252, %v1176, 0
    %1270 = vmatpush.msra.mxu0 0.0
    %1271 = vmatpush.msra.mxu0 0.0
    %1272 = vmatpush.msra.mxu0 0.0
    %1273 = vmatpush.msra.mxu0 0.0
    %1274 = vmatpush.msra.mxu0 0.0
    %1275 = vmatpush.msra.mxu0 0.0
    %1276 = vmatpush.msra.mxu0 0.0
    %1277 = vmatpush.msra.mxu0 0.0
    %1278 = vmatpush.msra.mxu0 0.0
    %1279 = vmatpush.msra.mxu0 0.0
    %1280 = vmatpush.msra.mxu0 0.0
    %1281 = vmatpush.msra.mxu0 0.0
    %1282 = vmatpush.msra.mxu0 0.0
    %1283 = vmatpush.msra.mxu0 0.0
    %1284 = vmatpush.msra.mxu0 0.0
    %1285 = vmatpush.msra.mxu0 %v1043
    %1286 = vmatmul.f32.gmra.mxu0 %v1268
    %v1287 = vpop.f32.mrf.mxu0
    %v1288 = vadd.f32 %v1265, %v1287
    %1289 = vdwg.mxu0
    %1290 = vrot.lane.b32.xlu0 %v1077, 112
    %v1291 = vpop.permute.xlu0 %1290
    %1292 = vrot.lane.b32.xlu0 %v1109, 112
    %v1293 = vpop.permute.xlu0 %1292
    %v1294 = vsel %vm252, %v1291, 0
    %v1296 = vsel %vm252, %v1293, 0
    %1298 = vmatpush.xpose.msra.mxu0 0.0
    %1299 = vmatpush.xpose.msra.mxu0 0.0
    %1300 = vmatpush.xpose.msra.mxu0 0.0
    %1301 = vmatpush.xpose.msra.mxu0 0.0
    %1302 = vmatpush.xpose.msra.mxu0 0.0
    %1303 = vmatpush.xpose.msra.mxu0 0.0
    %1304 = vmatpush.xpose.msra.mxu0 0.0
    %1305 = vmatpush.xpose.msra.mxu0 0.0
    %1306 = vmatpush.xpose.msra.mxu0 0.0
    %1307 = vmatpush.xpose.msra.mxu0 0.0
    %1308 = vmatpush.xpose.msra.mxu0 0.0
    %1309 = vmatpush.xpose.msra.mxu0 0.0
    %1310 = vmatpush.xpose.msra.mxu0 0.0
    %1311 = vmatpush.xpose.msra.mxu0 0.0
    %1312 = vmatpush.xpose.msra.mxu0 0.0
    %1313 = vmatpush.xpose.msra.mxu0 %v1296
    %1314 = vmatmul.f32.gmra.mxu0 %v1294
    %v1315 = vpop.f32.mrf.mxu0
    %v1316 = vadd.f32 0.0, %v1315
    %1317 = vdwg.mxu0
    %v1318 = vmul.f32 %v1316, 0.35355338
    %v1319 = vsel %vm252, %v1318, -inf
    %1320 = vmax.xlane.f32.xlu0 %v1319
    %v1321 = vpop.xlane.xlu0 %1320
    %v1322 = vsub.f32 %v1318, %v1321
    %v1323 = vmul.f32 %v1322, 1.442695
    %v1324 = vpow.pop %v1323
    %v1325 = vsel %vm252, %v1324, 0.0
    %1326 = vadd.xlane.f32.xlu0 %v1325
    %v1327 = vpop.xlane.xlu0 %1326
    %v1328 = vrcp.pop %v1327
    %v1329 = vmul.f32 %v1324, %v1328
    %1330 = vrot.lane.b32.xlu0 %v1109, 80
    %v1331 = vpop.permute.xlu0 %1330
    %v1334 = vsel %vm252, %v1329, 0
    %1336 = vmatpush.msra.mxu0 0.0
    %1337 = vmatpush.msra.mxu0 0.0
    %1338 = vmatpush.msra.mxu0 0.0
    %1339 = vmatpush.msra.mxu0 0.0
    %1340 = vmatpush.msra.mxu0 0.0
    %1341 = vmatpush.msra.mxu0 0.0
    %1342 = vmatpush.msra.mxu0 0.0
    %1343 = vmatpush.msra.mxu0 0.0
    %1344 = vmatpush.msra.mxu0 0.0
    %1345 = vmatpush.msra.mxu0 0.0
    %1346 = vmatpush.msra.mxu0 0.0
    %1347 = vmatpush.msra.mxu0 0.0
    %1348 = vmatpush.msra.mxu0 0.0
    %1349 = vmatpush.msra.mxu0 0.0
    %1350 = vmatpush.msra.mxu0 0.0
    %1351 = vmatpush.msra.mxu0 %v1331
    %1352 = vmatmul.f32.gmra.mxu0 %v1334
    %v1353 = vpop.f32.mrf.mxu0
    %v1354 = vadd.f32 0.0, %v1353
    %1355 = vdwg.mxu0
    %v1357 = vsel %vm252, %v1354, 0
    %1359 = vmatpush.msra.mxu0 0.0
    %1360 = vmatpush.msra.mxu0 0.0
    %1361 = vmatpush.msra.mxu0 0.0
    %1362 = vmatpush.msra.mxu0 0.0
    %1363 = vmatpush.msra.mxu0 0.0
    %1364 = vmatpush.msra.mxu0 0.0
    %1365 = vmatpush.msra.mxu0 0.0
    %1366 = vmatpush.msra.mxu0 0.0
    %1367 = vmatpush.msra.mxu0 0.0
    %1368 = vmatpush.msra.mxu0 0.0
    %1369 = vmatpush.msra.mxu0 0.0
    %1370 = vmatpush.msra.mxu0 0.0
    %1371 = vmatpush.msra.mxu0 0.0
    %1372 = vmatpush.msra.mxu0 0.0
    %1373 = vmatpush.msra.mxu0 0.0
    %1374 = vmatpush.msra.mxu0 %v1045
    %1375 = vmatmul.f32.gmra.mxu0 %v1357
    %v1376 = vpop.f32.mrf.mxu0
    %v1377 = vadd.f32 0.0, %v1376
    %1378 = vdwg.mxu0
    %v1379 = vadd.f32 %v1288, %v1377
    %1380 = vrot.lane.b32.xlu0 %v1077, 104
    %v1381 = vpop.permute.xlu0 %1380
    %1382 = vrot.lane.b32.xlu0 %v1109, 104
    %v1383 = vpop.permute.xlu0 %1382
    %v1384 = vsel %vm252, %v1381, 0
    %v1386 = vsel %vm252, %v1383, 0
    %1388 = vmatpush.xpose.msra.mxu0 0.0
    %1389 = vmatpush.xpose.msra.mxu0 0.0
    %1390 = vmatpush.xpose.msra.mxu0 0.0
    %1391 = vmatpush.xpose.msra.mxu0 0.0
    %1392 = vmatpush.xpose.msra.mxu0 0.0
    %1393 = vmatpush.xpose.msra.mxu0 0.0
    %1394 = vmatpush.xpose.msra.mxu0 0.0
    %1395 = vmatpush.xpose.msra.mxu0 0.0
    %1396 = vmatpush.xpose.msra.mxu0 0.0
    %1397 = vmatpush.xpose.msra.mxu0 0.0
    %1398 = vmatpush.xpose.msra.mxu0 0.0
    %1399 = vmatpush.xpose.msra.mxu0 0.0
    %1400 = vmatpush.xpose.msra.mxu0 0.0
    %1401 = vmatpush.xpose.msra.mxu0 0.0
    %1402 = vmatpush.xpose.msra.mxu0 0.0
    %1403 = vmatpush.xpose.msra.mxu0 %v1386
    %1404 = vmatmul.f32.gmra.mxu0 %v1384
    %v1405 = vpop.f32.mrf.mxu0
    %v1406 = vadd.f32 0.0, %v1405
    %1407 = vdwg.mxu0
    %v1408 = vmul.f32 %v1406, 0.35355338
    %v1409 = vsel %vm252, %v1408, -inf
    %1410 = vmax.xlane.f32.xlu0 %v1409
    %v1411 = vpop.xlane.xlu0 %1410
    %v1412 = vsub.f32 %v1408, %v1411
    %v1413 = vmul.f32 %v1412, 1.442695
    %v1414 = vpow.pop %v1413
    %v1415 = vsel %vm252, %v1414, 0.0
    %1416 = vadd.xlane.f32.xlu0 %v1415
    %v1417 = vpop.xlane.xlu0 %1416
    %v1418 = vrcp.pop %v1417
    %v1419 = vmul.f32 %v1414, %v1418
    %1420 = vrot.lane.b32.xlu0 %v1109, 72
    %v1421 = vpop.permute.xlu0 %1420
    %v1424 = vsel %vm252, %v1419, 0
    %1426 = vmatpush.msra.mxu0 0.0
    %1427 = vmatpush.msra.mxu0 0.0
    %1428 = vmatpush.msra.mxu0 0.0
    %1429 = vmatpush.msra.mxu0 0.0
    %1430 = vmatpush.msra.mxu0 0.0
    %1431 = vmatpush.msra.mxu0 0.0
    %1432 = vmatpush.msra.mxu0 0.0
    %1433 = vmatpush.msra.mxu0 0.0
    %1434 = vmatpush.msra.mxu0 0.0
    %1435 = vmatpush.msra.mxu0 0.0
    %1436 = vmatpush.msra.mxu0 0.0
    %1437 = vmatpush.msra.mxu0 0.0
    %1438 = vmatpush.msra.mxu0 0.0
    %1439 = vmatpush.msra.mxu0 0.0
    %1440 = vmatpush.msra.mxu0 0.0
    %1441 = vmatpush.msra.mxu0 %v1421
    %1442 = vmatmul.f32.gmra.mxu0 %v1424
    %v1443 = vpop.f32.mrf.mxu0
    %v1444 = vadd.f32 0.0, %v1443
    %1445 = vdwg.mxu0
    %v1447 = vsel %vm252, %v1444, 0
    %1449 = vmatpush.msra.mxu0 0.0
    %1450 = vmatpush.msra.mxu0 0.0
    %1451 = vmatpush.msra.mxu0 0.0
    %1452 = vmatpush.msra.mxu0 0.0
    %1453 = vmatpush.msra.mxu0 0.0
    %1454 = vmatpush.msra.mxu0 0.0
    %1455 = vmatpush.msra.mxu0 0.0
    %1456 = vmatpush.msra.mxu0 0.0
    %1457 = vmatpush.msra.mxu0 0.0
    %1458 = vmatpush.msra.mxu0 0.0
    %1459 = vmatpush.msra.mxu0 0.0
    %1460 = vmatpush.msra.mxu0 0.0
    %1461 = vmatpush.msra.mxu0 0.0
    %1462 = vmatpush.msra.mxu0 0.0
    %1463 = vmatpush.msra.mxu0 0.0
    %1464 = vmatpush.msra.mxu0 %v1046
    %1465 = vmatmul.f32.gmra.mxu0 %v1447
    %v1466 = vpop.f32.mrf.mxu0
    %v1467 = vadd.f32 0.0, %v1466
    %1468 = vdwg.mxu0
    %v1469 = vadd.f32 %v1379, %v1467
    %v1471 = vsel %vm252, %v1080, 0
    %v1474 = vsel %vm252, %v1112, 0
    %1476 = vmatpush.xpose.msra.mxu0 0.0
    %1477 = vmatpush.xpose.msra.mxu0 0.0
    %1478 = vmatpush.xpose.msra.mxu0 0.0
    %1479 = vmatpush.xpose.msra.mxu0 0.0
    %1480 = vmatpush.xpose.msra.mxu0 0.0
    %1481 = vmatpush.xpose.msra.mxu0 0.0
    %1482 = vmatpush.xpose.msra.mxu0 0.0
    %1483 = vmatpush.xpose.msra.mxu0 0.0
    %1484 = vmatpush.xpose.msra.mxu0 0.0
    %1485 = vmatpush.xpose.msra.mxu0 0.0
    %1486 = vmatpush.xpose.msra.mxu0 0.0
    %1487 = vmatpush.xpose.msra.mxu0 0.0
    %1488 = vmatpush.xpose.msra.mxu0 0.0
    %1489 = vmatpush.xpose.msra.mxu0 0.0
    %1490 = vmatpush.xpose.msra.mxu0 0.0
    %1491 = vmatpush.xpose.msra.mxu0 %v1474
    %1492 = vmatmul.f32.gmra.mxu0 %v1471
    %v1493 = vpop.f32.mrf.mxu0
    %v1494 = vadd.f32 0.0, %v1493
    %1495 = vdwg.mxu0
    %v1496 = vmul.f32 %v1494, 0.35355338
    %v1497 = vsel %vm252, %v1496, -inf
    %1498 = vmax.xlane.f32.xlu0 %v1497
    %v1499 = vpop.xlane.xlu0 %1498
    %v1500 = vsub.f32 %v1496, %v1499
    %v1501 = vmul.f32 %v1500, 1.442695
    %v1502 = vpow.pop %v1501
    %v1503 = vsel %vm252, %v1502, 0.0
    %1504 = vadd.xlane.f32.xlu0 %v1503
    %v1505 = vpop.xlane.xlu0 %1504
    %v1506 = vrcp.pop %v1505
    %v1507 = vmul.f32 %v1502, %v1506
    %1508 = vrot.lane.b32.xlu0 %v1112, 96
    %v1509 = vpop.permute.xlu0 %1508
    %v1512 = vsel %vm252, %v1507, 0
    %1514 = vmatpush.msra.mxu0 0.0
    %1515 = vmatpush.msra.mxu0 0.0
    %1516 = vmatpush.msra.mxu0 0.0
    %1517 = vmatpush.msra.mxu0 0.0
    %1518 = vmatpush.msra.mxu0 0.0
    %1519 = vmatpush.msra.mxu0 0.0
    %1520 = vmatpush.msra.mxu0 0.0
    %1521 = vmatpush.msra.mxu0 0.0
    %1522 = vmatpush.msra.mxu0 0.0
    %1523 = vmatpush.msra.mxu0 0.0
    %1524 = vmatpush.msra.mxu0 0.0
    %1525 = vmatpush.msra.mxu0 0.0
    %1526 = vmatpush.msra.mxu0 0.0
    %1527 = vmatpush.msra.mxu0 0.0
    %1528 = vmatpush.msra.mxu0 0.0
    %1529 = vmatpush.msra.mxu0 %v1509
    %1530 = vmatmul.f32.gmra.mxu0 %v1512
    %v1531 = vpop.f32.mrf.mxu0
    %v1532 = vadd.f32 0.0, %v1531
    %1533 = vdwg.mxu0
    %1534 = vrot.lane.b32.xlu0 %v1080, 120
    %v1535 = vpop.permute.xlu0 %1534
    %1536 = vrot.lane.b32.xlu0 %v1112, 120
    %v1537 = vpop.permute.xlu0 %1536
    %v1538 = vsel %vm252, %v1535, 0
    %v1540 = vsel %vm252, %v1537, 0
    %1542 = vmatpush.xpose.msra.mxu0 0.0
    %1543 = vmatpush.xpose.msra.mxu0 0.0
    %1544 = vmatpush.xpose.msra.mxu0 0.0
    %1545 = vmatpush.xpose.msra.mxu0 0.0
    %1546 = vmatpush.xpose.msra.mxu0 0.0
    %1547 = vmatpush.xpose.msra.mxu0 0.0
    %1548 = vmatpush.xpose.msra.mxu0 0.0
    %1549 = vmatpush.xpose.msra.mxu0 0.0
    %1550 = vmatpush.xpose.msra.mxu0 0.0
    %1551 = vmatpush.xpose.msra.mxu0 0.0
    %1552 = vmatpush.xpose.msra.mxu0 0.0
    %1553 = vmatpush.xpose.msra.mxu0 0.0
    %1554 = vmatpush.xpose.msra.mxu0 0.0
    %1555 = vmatpush.xpose.msra.mxu0 0.0
    %1556 = vmatpush.xpose.msra.mxu0 0.0
    %1557 = vmatpush.xpose.msra.mxu0 %v1540
    %1558 = vmatmul.f32.gmra.mxu0 %v1538
    %v1559 = vpop.f32.mrf.mxu0
    %v1560 = vadd.f32 0.0, %v1559
    %1561 = vdwg.mxu0
    %v1562 = vmul.f32 %v1560, 0.35355338
    %v1563 = vsel %vm252, %v1562, -inf
    %1564 = vmax.xlane.f32.xlu0 %v1563
    %v1565 = vpop.xlane.xlu0 %1564
    %v1566 = vsub.f32 %v1562, %v1565
    %v1567 = vmul.f32 %v1566, 1.442695
    %v1568 = vpow.pop %v1567
    %v1569 = vsel %vm252, %v1568, 0.0
    %1570 = vadd.xlane.f32.xlu0 %v1569
    %v1571 = vpop.xlane.xlu0 %1570
    %v1572 = vrcp.pop %v1571
    %v1573 = vmul.f32 %v1568, %v1572
    %1574 = vrot.lane.b32.xlu0 %v1112, 88
    %v1575 = vpop.permute.xlu0 %1574
    %v1578 = vsel %vm252, %v1573, 0
    %1580 = vmatpush.msra.mxu0 0.0
    %1581 = vmatpush.msra.mxu0 0.0
    %1582 = vmatpush.msra.mxu0 0.0
    %1583 = vmatpush.msra.mxu0 0.0
    %1584 = vmatpush.msra.mxu0 0.0
    %1585 = vmatpush.msra.mxu0 0.0
    %1586 = vmatpush.msra.mxu0 0.0
    %1587 = vmatpush.msra.mxu0 0.0
    %1588 = vmatpush.msra.mxu0 0.0
    %1589 = vmatpush.msra.mxu0 0.0
    %1590 = vmatpush.msra.mxu0 0.0
    %1591 = vmatpush.msra.mxu0 0.0
    %1592 = vmatpush.msra.mxu0 0.0
    %1593 = vmatpush.msra.mxu0 0.0
    %1594 = vmatpush.msra.mxu0 0.0
    %1595 = vmatpush.msra.mxu0 %v1575
    %1596 = vmatmul.f32.gmra.mxu0 %v1578
    %v1597 = vpop.f32.mrf.mxu0
    %v1598 = vadd.f32 0.0, %v1597
    %1599 = vdwg.mxu0
    %v1601 = vsel %vm252, %v1598, 0
    %1603 = vmatpush.msra.mxu0 0.0
    %1604 = vmatpush.msra.mxu0 0.0
    %1605 = vmatpush.msra.mxu0 0.0
    %1606 = vmatpush.msra.mxu0 0.0
    %1607 = vmatpush.msra.mxu0 0.0
    %1608 = vmatpush.msra.mxu0 0.0
    %1609 = vmatpush.msra.mxu0 0.0
    %1610 = vmatpush.msra.mxu0 0.0
    %1611 = vmatpush.msra.mxu0 0.0
    %1612 = vmatpush.msra.mxu0 0.0
    %1613 = vmatpush.msra.mxu0 0.0
    %1614 = vmatpush.msra.mxu0 0.0
    %1615 = vmatpush.msra.mxu0 0.0
    %1616 = vmatpush.msra.mxu0 0.0
    %1617 = vmatpush.msra.mxu0 0.0
    %1618 = vmatpush.msra.mxu0 %v1044
    %1619 = vmatmul.f32.gmra.mxu0 %v1601
    %v1620 = vpop.f32.mrf.mxu0
    %v1621 = vadd.f32 0.0, %v1620
    %1622 = vdwg.mxu0
    %v1624 = vsel %vm252, %v1532, 0
    %1626 = vmatpush.msra.mxu0 0.0
    %1627 = vmatpush.msra.mxu0 0.0
    %1628 = vmatpush.msra.mxu0 0.0
    %1629 = vmatpush.msra.mxu0 0.0
    %1630 = vmatpush.msra.mxu0 0.0
    %1631 = vmatpush.msra.mxu0 0.0
    %1632 = vmatpush.msra.mxu0 0.0
    %1633 = vmatpush.msra.mxu0 0.0
    %1634 = vmatpush.msra.mxu0 0.0
    %1635 = vmatpush.msra.mxu0 0.0
    %1636 = vmatpush.msra.mxu0 0.0
    %1637 = vmatpush.msra.mxu0 0.0
    %1638 = vmatpush.msra.mxu0 0.0
    %1639 = vmatpush.msra.mxu0 0.0
    %1640 = vmatpush.msra.mxu0 0.0
    %1641 = vmatpush.msra.mxu0 %v1043
    %1642 = vmatmul.f32.gmra.mxu0 %v1624
    %v1643 = vpop.f32.mrf.mxu0
    %v1644 = vadd.f32 %v1621, %v1643
    %1645 = vdwg.mxu0
    %1646 = vrot.lane.b32.xlu0 %v1080, 112
    %v1647 = vpop.permute.xlu0 %1646
    %1648 = vrot.lane.b32.xlu0 %v1112, 112
    %v1649 = vpop.permute.xlu0 %1648
    %v1650 = vsel %vm252, %v1647, 0
    %v1652 = vsel %vm252, %v1649, 0
    %1654 = vmatpush.xpose.msra.mxu0 0.0
    %1655 = vmatpush.xpose.msra.mxu0 0.0
    %1656 = vmatpush.xpose.msra.mxu0 0.0
    %1657 = vmatpush.xpose.msra.mxu0 0.0
    %1658 = vmatpush.xpose.msra.mxu0 0.0
    %1659 = vmatpush.xpose.msra.mxu0 0.0
    %1660 = vmatpush.xpose.msra.mxu0 0.0
    %1661 = vmatpush.xpose.msra.mxu0 0.0
    %1662 = vmatpush.xpose.msra.mxu0 0.0
    %1663 = vmatpush.xpose.msra.mxu0 0.0
    %1664 = vmatpush.xpose.msra.mxu0 0.0
    %1665 = vmatpush.xpose.msra.mxu0 0.0
    %1666 = vmatpush.xpose.msra.mxu0 0.0
    %1667 = vmatpush.xpose.msra.mxu0 0.0
    %1668 = vmatpush.xpose.msra.mxu0 0.0
    %1669 = vmatpush.xpose.msra.mxu0 %v1652
    %1670 = vmatmul.f32.gmra.mxu0 %v1650
    %v1671 = vpop.f32.mrf.mxu0
    %v1672 = vadd.f32 0.0, %v1671
    %1673 = vdwg.mxu0
    %v1674 = vmul.f32 %v1672, 0.35355338
    %v1675 = vsel %vm252, %v1674, -inf
    %1676 = vmax.xlane.f32.xlu0 %v1675
    %v1677 = vpop.xlane.xlu0 %1676
    %v1678 = vsub.f32 %v1674, %v1677
    %v1679 = vmul.f32 %v1678, 1.442695
    %v1680 = vpow.pop %v1679
    %v1681 = vsel %vm252, %v1680, 0.0
    %1682 = vadd.xlane.f32.xlu0 %v1681
    %v1683 = vpop.xlane.xlu0 %1682
    %v1684 = vrcp.pop %v1683
    %v1685 = vmul.f32 %v1680, %v1684
    %1686 = vrot.lane.b32.xlu0 %v1112, 80
    %v1687 = vpop.permute.xlu0 %1686
    %v1690 = vsel %vm252, %v1685, 0
    %1692 = vmatpush.msra.mxu0 0.0
    %1693 = vmatpush.msra.mxu0 0.0
    %1694 = vmatpush.msra.mxu0 0.0
    %1695 = vmatpush.msra.mxu0 0.0
    %1696 = vmatpush.msra.mxu0 0.0
    %1697 = vmatpush.msra.mxu0 0.0
    %1698 = vmatpush.msra.mxu0 0.0
    %1699 = vmatpush.msra.mxu0 0.0
    %1700 = vmatpush.msra.mxu0 0.0
    %1701 = vmatpush.msra.mxu0 0.0
    %1702 = vmatpush.msra.mxu0 0.0
    %1703 = vmatpush.msra.mxu0 0.0
    %1704 = vmatpush.msra.mxu0 0.0
    %1705 = vmatpush.msra.mxu0 0.0
    %1706 = vmatpush.msra.mxu0 0.0
    %1707 = vmatpush.msra.mxu0 %v1687
    %1708 = vmatmul.f32.gmra.mxu0 %v1690
    %v1709 = vpop.f32.mrf.mxu0
    %v1710 = vadd.f32 0.0, %v1709
    %1711 = vdwg.mxu0
    %v1713 = vsel %vm252, %v1710, 0
    %1715 = vmatpush.msra.mxu0 0.0
    %1716 = vmatpush.msra.mxu0 0.0
    %1717 = vmatpush.msra.mxu0 0.0
    %1718 = vmatpush.msra.mxu0 0.0
    %1719 = vmatpush.msra.mxu0 0.0
    %1720 = vmatpush.msra.mxu0 0.0
    %1721 = vmatpush.msra.mxu0 0.0
    %1722 = vmatpush.msra.mxu0 0.0
    %1723 = vmatpush.msra.mxu0 0.0
    %1724 = vmatpush.msra.mxu0 0.0
    %1725 = vmatpush.msra.mxu0 0.0
    %1726 = vmatpush.msra.mxu0 0.0
    %1727 = vmatpush.msra.mxu0 0.0
    %1728 = vmatpush.msra.mxu0 0.0
    %1729 = vmatpush.msra.mxu0 0.0
    %1730 = vmatpush.msra.mxu0 %v1045
    %1731 = vmatmul.f32.gmra.mxu0 %v1713
    %v1732 = vpop.f32.mrf.mxu0
    %v1733 = vadd.f32 0.0, %v1732
    %1734 = vdwg.mxu0
    %v1735 = vadd.f32 %v1644, %v1733
    %1736 = vrot.lane.b32.xlu0 %v1080, 104
    %v1737 = vpop.permute.xlu0 %1736
    %1738 = vrot.lane.b32.xlu0 %v1112, 104
    %v1739 = vpop.permute.xlu0 %1738
    %v1740 = vsel %vm252, %v1737, 0
    %v1742 = vsel %vm252, %v1739, 0
    %1744 = vmatpush.xpose.msra.mxu0 0.0
    %1745 = vmatpush.xpose.msra.mxu0 0.0
    %1746 = vmatpush.xpose.msra.mxu0 0.0
    %1747 = vmatpush.xpose.msra.mxu0 0.0
    %1748 = vmatpush.xpose.msra.mxu0 0.0
    %1749 = vmatpush.xpose.msra.mxu0 0.0
    %1750 = vmatpush.xpose.msra.mxu0 0.0
    %1751 = vmatpush.xpose.msra.mxu0 0.0
    %1752 = vmatpush.xpose.msra.mxu0 0.0
    %1753 = vmatpush.xpose.msra.mxu0 0.0
    %1754 = vmatpush.xpose.msra.mxu0 0.0
    %1755 = vmatpush.xpose.msra.mxu0 0.0
    %1756 = vmatpush.xpose.msra.mxu0 0.0
    %1757 = vmatpush.xpose.msra.mxu0 0.0
    %1758 = vmatpush.xpose.msra.mxu0 0.0
    %1759 = vmatpush.xpose.msra.mxu0 %v1742
    %1760 = vmatmul.f32.gmra.mxu0 %v1740
    %v1761 = vpop.f32.mrf.mxu0
    %v1762 = vadd.f32 0.0, %v1761
    %1763 = vdwg.mxu0
    %v1764 = vmul.f32 %v1762, 0.35355338
    %v1765 = vsel %vm252, %v1764, -inf
    %1766 = vmax.xlane.f32.xlu0 %v1765
    %v1767 = vpop.xlane.xlu0 %1766
    %v1768 = vsub.f32 %v1764, %v1767
    %v1769 = vmul.f32 %v1768, 1.442695
    %v1770 = vpow.pop %v1769
    %v1771 = vsel %vm252, %v1770, 0.0
    %1772 = vadd.xlane.f32.xlu0 %v1771
    %v1773 = vpop.xlane.xlu0 %1772
    %v1774 = vrcp.pop %v1773
    %v1775 = vmul.f32 %v1770, %v1774
    %1776 = vrot.lane.b32.xlu0 %v1112, 72
    %v1777 = vpop.permute.xlu0 %1776
    %v1780 = vsel %vm252, %v1775, 0
    %1782 = vmatpush.msra.mxu0 0.0
    %1783 = vmatpush.msra.mxu0 0.0
    %1784 = vmatpush.msra.mxu0 0.0
    %1785 = vmatpush.msra.mxu0 0.0
    %1786 = vmatpush.msra.mxu0 0.0
    %1787 = vmatpush.msra.mxu0 0.0
    %1788 = vmatpush.msra.mxu0 0.0
    %1789 = vmatpush.msra.mxu0 0.0
    %1790 = vmatpush.msra.mxu0 0.0
    %1791 = vmatpush.msra.mxu0 0.0
    %1792 = vmatpush.msra.mxu0 0.0
    %1793 = vmatpush.msra.mxu0 0.0
    %1794 = vmatpush.msra.mxu0 0.0
    %1795 = vmatpush.msra.mxu0 0.0
    %1796 = vmatpush.msra.mxu0 0.0
    %1797 = vmatpush.msra.mxu0 %v1777
    %1798 = vmatmul.f32.gmra.mxu0 %v1780
    %v1799 = vpop.f32.mrf.mxu0
    %v1800 = vadd.f32 0.0, %v1799
    %1801 = vdwg.mxu0
    %v1803 = vsel %vm252, %v1800, 0
    %1805 = vmatpush.msra.mxu0 0.0
    %1806 = vmatpush.msra.mxu0 0.0
    %1807 = vmatpush.msra.mxu0 0.0
    %1808 = vmatpush.msra.mxu0 0.0
    %1809 = vmatpush.msra.mxu0 0.0
    %1810 = vmatpush.msra.mxu0 0.0
    %1811 = vmatpush.msra.mxu0 0.0
    %1812 = vmatpush.msra.mxu0 0.0
    %1813 = vmatpush.msra.mxu0 0.0
    %1814 = vmatpush.msra.mxu0 0.0
    %1815 = vmatpush.msra.mxu0 0.0
    %1816 = vmatpush.msra.mxu0 0.0
    %1817 = vmatpush.msra.mxu0 0.0
    %1818 = vmatpush.msra.mxu0 0.0
    %1819 = vmatpush.msra.mxu0 0.0
    %1820 = vmatpush.msra.mxu0 %v1046
    %1821 = vmatmul.f32.gmra.mxu0 %v1803
    %v1822 = vpop.f32.mrf.mxu0
    %v1823 = vadd.f32 0.0, %v1822
    %1824 = vdwg.mxu0
    %v1825 = vadd.f32 %v1735, %v1823
    %v1827 = vperm.slane %v1047, 0
    %v1829 = vadd.f32 %v1469, %v1827
    %v1830 = vadd.f32 %v1825, %v1827
    %v1831 = vadd.f32 %v1031, %v1829
    %v1832 = vadd.f32 %v1032, %v1830
    %v1833 = vsel %vm196, %v1831, 0.0
    %1834 = vadd.xlane.f32.xlu0 %v1833
    %v1835 = vpop.xlane.xlu0 %1834
    %v1836 = vsel %vm196, %v1832, 0.0
    %1837 = vadd.xlane.f32.xlu0 %v1836
    %v1838 = vpop.xlane.xlu0 %1837
    %v1839 = vmul.f32 %v1835, %v984
    %v1840 = vmul.f32 %v1838, %v984
    %v1841 = vsub.f32 %v1831, %v1839
    %v1842 = vsub.f32 %v1832, %v1840
    %v1843 = vmul.f32 %v1841, %v1841
    %v1844 = vmul.f32 %v1842, %v1842
    %v1845 = vsel %vm196, %v1843, 0.0
    %1846 = vadd.xlane.f32.xlu0 %v1845
    %v1847 = vpop.xlane.xlu0 %1846
    %v1848 = vsel %vm196, %v1844, 0.0
    %1849 = vadd.xlane.f32.xlu0 %v1848
    %v1850 = vpop.xlane.xlu0 %1849
    %v1851 = vmul.f32 %v1847, %v984
    %v1852 = vmul.f32 %v1850, %v984
    %v1853 = vadd.f32 %v1851, 1e-05
    %v1854 = vadd.f32 %v1852, 1e-05
    %v1855 = vrsqrt.pop %v1853
    %v1856 = vmul.f32 %v1855, %v1853
    %v1857 = vmul.f32 %v1856, %v1855
    %v1858 = vmul.f32 0.5, %v1857
    %v1859 = vsub.f32 1.5, %v1858
    %v1860 = vmul.f32 %v1855, %v1859
    %vm1861 = vweird.f32 %v1853
    %vm1862 = vweird.f32 %v1855
    %vm1863 = vmor %vm1861, %vm1862
    %v1864 = vsel %vm1863, %v1855, %v1860
    %v1865 = vrsqrt.pop %v1854
    %v1866 = vmul.f32 %v1865, %v1854
    %v1867 = vmul.f32 %v1866, %v1865
    %v1868 = vmul.f32 0.5, %v1867
    %v1869 = vsub.f32 1.5, %v1868
    %v1870 = vmul.f32 %v1865, %v1869
    %vm1871 = vweird.f32 %v1854
    %vm1872 = vweird.f32 %v1865
    %vm1873 = vmor %vm1871, %vm1872
    %v1874 = vsel %vm1873, %v1865, %v1870
    %v1875 = vmul.f32 %v1841, %v1864
    %v1876 = vmul.f32 %v1842, %v1874
    %v1878 = vperm.slane %v1048, 0
    %v1880 = vmul.f32 %v1875, %v1878
    %v1881 = vmul.f32 %v1876, %v1878
    %v1883 = vperm.slane %v1049, 0
    %v1885 = vadd.f32 %v1880, %v1883
    %v1886 = vadd.f32 %v1881, %v1883
    %v1887 = vld [vmem:[#allocation11] sm:$0xff]
    %v1888 = vld [vmem:[#allocation11 + $0x8] sm:$0xff]
    %v1889 = vld [vmem:[#allocation11 + $0x10] sm:$0xff]
    %v1890 = vld [vmem:[#allocation11 + $0x18] sm:$0xff]
    %v1891 = vld [vmem:[%s19] sm:$0x1]
    %v1892 = vld [vmem:[%s20] sm:$0xff]
    %v1893 = vld [vmem:[%s20 + $0x8] sm:$0xff]
    %v1894 = vld [vmem:[%s20 + $0x10] sm:$0xff]
    %v1895 = vld [vmem:[%s20 + $0x18] sm:$0xff]
    %v1896 = vld [vmem:[%s20 + $0x20] sm:$0xff]
    %v1897 = vld [vmem:[%s20 + $0x28] sm:$0xff]
    %v1898 = vld [vmem:[%s20 + $0x30] sm:$0xff]
    %v1899 = vld [vmem:[%s20 + $0x38] sm:$0xff]
    %v1900 = vld [vmem:[%s21] sm:$0x1]
    %v1901 = vld [vmem:[%s22] sm:$0x1]
    %v1902 = vld [vmem:[%s23] sm:$0x1]
    %v1904 = vperm.slane %v1891, 0
    %v1907 = vsel %vm196, %v1885, 0
    %v1910 = vsel %vm196, %v1886, 0
    %1912 = vmatpush.msra.mxu0 0.0
    %1913 = vmatpush.msra.mxu0 0.0
    %1914 = vmatpush.msra.mxu0 0.0
    %1915 = vmatpush.msra.mxu0 0.0
    %1916 = vmatpush.msra.mxu0 0.0
    %1917 = vmatpush.msra.mxu0 0.0
    %1918 = vmatpush.msra.mxu0 0.0
    %1919 = vmatpush.msra.mxu0 0.0
    %1920 = vmatpush.msra.mxu0 0.0
    %1921 = vmatpush.msra.mxu0 0.0
    %1922 = vmatpush.msra.mxu0 0.0
    %1923 = vmatpush.msra.mxu0 0.0
    %1924 = vmatpush.msra.mxu0 %v1890
    %1925 = vmatpush.msra.mxu0 %v1889
    %1926 = vmatpush.msra.mxu0 %v1888
    %1927 = vmatpush.msra.mxu0 %v1887
    %1928 = vmatmul.f32.gmra.mxu0 %v1907
    %v1929 = vpop.f32.mrf.mxu0
    %v1930 = vadd.f32 %v1904, %v1929
    %1931 = vmatmul.f32.gmra.mxu0 %v1910
    %v1932 = vpop.f32.mrf.mxu0
    %v1933 = vadd.f32 %v1904, %v1932
    %1934 = vdwg.mxu0
    %v1935 = vmax.f32 %v1930, 0.0
    %v1936 = vmax.f32 %v1933, 0.0
    %v1938 = vperm.slane %v1900, 0
    %vm1940 = vcmask 523264
    %v1942 = vsel %vm1940, %v1935, 0
    %v1945 = vsel %vm1940, %v1936, 0
    %1947 = vmatpush.msra.mxu0 0.0
    %1948 = vmatpush.msra.mxu0 0.0
    %1949 = vmatpush.msra.mxu0 0.0
    %1950 = vmatpush.msra.mxu0 0.0
    %1951 = vmatpush.msra.mxu0 0.0
    %1952 = vmatpush.msra.mxu0 0.0
    %1953 = vmatpush.msra.mxu0 0.0
    %1954 = vmatpush.msra.mxu0 0.0
    %1955 = vmatpush.msra.mxu0 %v1899
    %1956 = vmatpush.msra.mxu0 %v1898
    %1957 = vmatpush.msra.mxu0 %v1897
    %1958 = vmatpush.msra.mxu0 %v1896
    %1959 = vmatpush.msra.mxu0 %v1895
    %1960 = vmatpush.msra.mxu0 %v1894
    %1961 = vmatpush.msra.mxu0 %v1893
    %1962 = vmatpush.msra.mxu0 %v1892
    %1963 = vmatmul.f32.gmra.mxu0 %v1942
    %v1964 = vpop.f32.mrf.mxu0
    %v1965 = vadd.f32 %v1938, %v1964
    %1966 = vmatmul.f32.gmra.mxu0 %v1945
    %v1967 = vpop.f32.mrf.mxu0
    %v1968 = vadd.f32 %v1938, %v1967
    %1969 = vdwg.mxu0
    %v1970 = vadd.f32 %v1885, %v1965
    %v1971 = vadd.f32 %v1886, %v1968
    %v1972 = vsel %vm196, %v1970, 0.0
    %1973 = vadd.xlane.f32.xlu0 %v1972
    %v1974 = vpop.xlane.xlu0 %1973
    %v1975 = vsel %vm196, %v1971, 0.0
    %1976 = vadd.xlane.f32.xlu0 %v1975
    %v1977 = vpop.xlane.xlu0 %1976
    %v1978 = vmul.f32 %v1974, %v984
    %v1979 = vmul.f32 %v1977, %v984
    %v1980 = vsub.f32 %v1970, %v1978
    %v1981 = vsub.f32 %v1971, %v1979
    %v1982 = vmul.f32 %v1980, %v1980
    %v1983 = vmul.f32 %v1981, %v1981
    %v1984 = vsel %vm196, %v1982, 0.0
    %1985 = vadd.xlane.f32.xlu0 %v1984
    %v1986 = vpop.xlane.xlu0 %1985
    %v1987 = vsel %vm196, %v1983, 0.0
    %1988 = vadd.xlane.f32.xlu0 %v1987
    %v1989 = vpop.xlane.xlu0 %1988
    %v1990 = vmul.f32 %v1986, %v984
    %v1991 = vmul.f32 %v1989, %v984
    %v1992 = vadd.f32 %v1990, 1e-05
    %v1993 = vadd.f32 %v1991, 1e-05
    %v1994 = vrsqrt.pop %v1992
    %v1995 = vmul.f32 %v1994, %v1992
    %v1996 = vmul.f32 %v1995, %v1994
    %v1997 = vmul.f32 0.5, %v1996
    %v1998 = vsub.f32 1.5, %v1997
    %v1999 = vmul.f32 %v1994, %v1998
    %vm2000 = vweird.f32 %v1992
    %vm2001 = vweird.f32 %v1994
    %vm2002 = vmor %vm2000, %vm2001
    %v2003 = vsel %vm2002, %v1994, %v1999
    %v2004 = vrsqrt.pop %v1993
    %v2005 = vmul.f32 %v2004, %v1993
    %v2006 = vmul.f32 %v2005, %v2004
    %v2007 = vmul.f32 0.5, %v2006
    %v2008 = vsub.f32 1.5, %v2007
    %v2009 = vmul.f32 %v2004, %v2008
    %vm2010 = vweird.f32 %v1993
    %vm2011 = vweird.f32 %v2004
    %vm2012 = vmor %vm2010, %vm2011
    %v2013 = vsel %vm2012, %v2004, %v2009
    %v2014 = vmul.f32 %v1980, %v2003
    %v2015 = vmul.f32 %v1981, %v2013
    %v2017 = vperm.slane %v1901, 0
    %v2019 = vmul.f32 %v2014, %v2017
    %v2020 = vmul.f32 %v2015, %v2017
    %v2022 = vperm.slane %v1902, 0
    %v2024 = vadd.f32 %v2019, %v2022
    %v2025 = vadd.f32 %v2020, %v2022
    %2026 = vst.msk [vmem:[#allocation13] sm:$0xff] %vm196, %v2024
    %2027 = vst.msk [vmem:[#allocation13 + $0x8] sm:$0xff] %vm196, %v2025
    // Predicated region
    $region122: #{tpu_custom_call.1} parent=1 // pred_check
      _
    $region123: #{tpu_custom_call.1} parent=1 // pred_check_branch
      %2029 = sbr.rel (0) target = $region125
    $region124: #{tpu_custom_call.1} parent=1 // pred_region
      %2031 = vsyncadd [#allocation4], 0
      %s2032 = sshll.u32 [#allocation13], 4
      %s2033 = int_to_ptr.vmem [resolvable:$true] %s2032
      %s2034 = sshll.u32 %s24, 4
      %s2035 = int_to_ptr.hbm [resolvable:$true] %s2034
      %2040 = dma.vmem_to_hbm [thread:$0]  %s2033, 256, %s2035, [#allocation4], 128, 128, 8
    $region125: #{tpu_custom_call.1} parent=1 // pred_fallthru
      _
    // Predicated region
    $region126: #{tpu_custom_call.1} parent=1 // pred_check
      _
    $region127: #{tpu_custom_call.1} parent=1 // pred_check_branch
      %2042 = sbr.rel (0) target = $region129
    $region128: #{tpu_custom_call.1} parent=1 // pred_region
      %2044 = dma.done [#allocation4], 256
    $region129: #{tpu_custom_call.1} parent=1 // pred_fallthru
      _
    %2045 = vsyncpa [#allocation3], 1
    %2046 = vsyncpa [#allocation6], 1
    %2047 = vsyncpa [#allocation9], 1
    %2048 = vsyncpa [#allocation12], 1
    %2049 = vsyncpa [#allocation4], 1

</llo_original>
